<compile_context>
chip_gen: v7x
topology: tpu7x:2x2x1
jax: 0.10.0
libtpu: 0.0.40
codegen_flags: <defaults>
</compile_context>

<pallas_src>
import jax
import jax.numpy as jnp
from jax.experimental import pallas as pl
from jax.experimental.pallas import tpu as pltpu


# ---------------------------------------------------------------------------
# Pallas kernels
# ---------------------------------------------------------------------------
def _conv_gemm_pool_kernel(p_ref, w_ref, b_ref, o_ref):
    """Fused conv-as-GEMM + (optional slab max-pool) + bias + ReLU.

    p_ref : (n_par, TM, K) bf16  im2col patches (n_par=4 pool-offset slabs for
            conv1, n_par=1 plain conv-resolution patches for conv2)
    w_ref : (K, N)          bf16  packed conv weight (kh*kw*Cin, Cout)
    b_ref : (1, N)          f32
    o_ref : (TM, N)         bf16
    """
    f32 = jnp.float32
    n_par, tm, k = p_ref.shape
    w = w_ref[...]
    if n_par == 1:
        acc = jnp.dot(p_ref[0], w, preferred_element_type=f32)
    else:
        # One long LHS stream (weight-stationary MXU, single accumulate).
        # TM is a multiple of 16, so this flatten is a layout-preserving no-op.
        lhs = p_ref[...].reshape(n_par * tm, k)
        acc = jnp.dot(lhs, w, preferred_element_type=f32)
        # maxpool(relu(conv+b)) == relu(max over slabs + b): VPU max over
        # tile-aligned row slices of the f32 accumulator.
        m = acc[0:tm]
        for s in range(1, n_par):
            m = jnp.maximum(m, acc[s * tm:(s + 1) * tm])
        acc = m
    o_ref[...] = jnp.maximum(acc + b_ref[...], 0.0).astype(o_ref.dtype)


def _head_kernel(x_ref, cw3_ref, cb3_ref, fw1_ref, fb1_ref, fw2_ref, fb2_ref,
                 fw3_ref, fb3_ref, o_ref):
    """pool2(2x2,stride 1) + conv3 + ReLU + fc1 + ReLU + fc2 + ReLU + fc3.

    x_ref : (TB, 5*5*128) bf16 -- ReLU'd conv2 output at conv resolution,
            (h, w, c)-order flatten.  The stride-1 max-pool is done here with
            128-lane-aligned slices + VPU max, so conv2 never materializes
            pool-offset patch slabs.  All intermediates stay in vregs; only
            the (TB, 1) value is stored.
    """
    f32 = jnp.float32
    x = x_ref[...]

    def pix(h, w):                                   # (TB, 128) conv2 pixel (h, w)
        a = (h * 5 + w) * 128
        return x[:, a:a + 128]

    # maxpool2: 4x4 pooled pixels, each max of a 2x2 window (stride 1).
    pooled = [[jnp.maximum(jnp.maximum(pix(h, w), pix(h, w + 1)),
                           jnp.maximum(pix(h + 1, w), pix(h + 1, w + 1)))
               for w in range(4)] for h in range(4)]

    # conv3: 2x2 kernel, stride 2 -> 4 output pixels, one K=512 dot each.
    cw3 = cw3_ref[...]                               # rows ordered (kh, kw, cin)
    cb3 = cb3_ref[...]
    h3_parts = []
    for oh in range(2):
        for ow in range(2):
            xin = jnp.concatenate(
                [pooled[2 * oh][2 * ow], pooled[2 * oh][2 * ow + 1],
                 pooled[2 * oh + 1][2 * ow], pooled[2 * oh + 1][2 * ow + 1]],
                axis=-1)                             # (TB, 512)
            h3 = jnp.dot(xin, cw3, preferred_element_type=f32) + cb3
            h3_parts.append(jnp.maximum(h3, 0.0).astype(jnp.bfloat16))

    # fc1 as ONE K=512 dot (not 4 accumulated K=128 dots).
    h3 = jnp.concatenate(h3_parts, axis=-1)          # (TB, 512), (oh, ow, c) order
    h1 = jnp.dot(h3, fw1_ref[...], preferred_element_type=f32) + fb1_ref[...]
    h1 = jnp.maximum(h1, 0.0).astype(jnp.bfloat16)
    h2 = jnp.dot(h1, fw2_ref[...], preferred_element_type=f32) + fb2_ref[...]
    h2 = jnp.maximum(h2, 0.0)                        # (TB, 32) f32
    # fc3 (32 -> 1): VPU multiply-reduce instead of a lane-1 MXU matmul.
    out = jnp.sum(h2 * fw3_ref[...], axis=-1, keepdims=True) + fb3_ref[...]
    o_ref[...] = out.astype(o_ref.dtype)


# ---------------------------------------------------------------------------
# pallas_call wrappers
# ---------------------------------------------------------------------------
def _pick_row_tile(m_pad, tmax):
    """m_pad and tmax are multiples of 16."""
    if m_pad <= tmax:
        # Split into 2 blocks at large-ish M so both v7x TensorCores get work.
        if m_pad >= 1024 and m_pad % 32 == 0:
            return m_pad // 2
        return m_pad
    return tmax


def conv_gemm(patches, w, b, *, tm_max=2048, vmem_mb=48):
    """(n_par, M, K) bf16 patches @ (K, N) bf16 -> (M, N) bf16 (bias + ReLU fused)."""
    n_par, M, K = patches.shape
    K2, N = w.shape
    assert K == K2
    # Pad rows to a multiple of 16 so the in-kernel slab flatten / slices are
    # tile-aligned (bf16 sublane tile = 16).  Pad rows are sliced off below.
    M_pad = -(-M // 16) * 16
    if M_pad != M:
        patches = jnp.pad(patches, ((0, 0), (0, M_pad - M), (0, 0)))
    TM = _pick_row_tile(M_pad, tm_max)
    grid = (pl.cdiv(M_pad, TM),)
    flops = 2 * n_par * M_pad * K * N
    bytes_accessed = (patches.size + w.size + M_pad * N) * 2 + b.size * 4
    out = pl.pallas_call(
        _conv_gemm_pool_kernel,
        out_shape=jax.ShapeDtypeStruct((M_pad, N), jnp.bfloat16),
        grid=grid,
        in_specs=[
            pl.BlockSpec((n_par, TM, K), lambda i: (0, i, 0)),
            pl.BlockSpec((K, N), lambda i: (0, 0)),
            pl.BlockSpec((1, N), lambda i: (0, 0)),
        ],
        out_specs=pl.BlockSpec((TM, N), lambda i: (i, 0)),
        compiler_params=pltpu.CompilerParams(
            dimension_semantics=("parallel",),
            vmem_limit_bytes=vmem_mb * 1024 * 1024,
        ),
        cost_estimate=pl.CostEstimate(
            flops=flops, transcendentals=0, bytes_accessed=bytes_accessed),
    )(patches, w, b)
    return out if M_pad == M else out[:M]


def _pick_batch_tile(b, tb_max=256):
    if b > tb_max:
        return tb_max
    if b >= 64 and b % 32 == 0:          # 2 blocks -> both v7x TCs get work
        return b // 2
    return b


def head_forward(x2, q, *, tb_max=256):
    """x2: (B, 5*5*128) bf16 conv2 output. Returns (B, 1) f32 value."""
    B, F = x2.shape
    TB = _pick_batch_tile(B, tb_max)
    grid = (pl.cdiv(B, TB),)
    const = lambda i: (0, 0)             # weights stay resident across the grid
    weight_names = ("cw3", "cb3", "fw1", "fb1", "fw2", "fb2", "fw3", "fb3")
    flops = 2 * B * (4 * 512 * 128 + 512 * 768 + 768 * 32 + 32)
    bytes_accessed = x2.size * 2 + sum(int(q[n].size) * 2 for n in weight_names) + B * 4
    return pl.pallas_call(
        _head_kernel,
        out_shape=jax.ShapeDtypeStruct((B, 1), jnp.float32),
        grid=grid,
        in_specs=[pl.BlockSpec((TB, F), lambda i: (i, 0))]
                 + [pl.BlockSpec(q[n].shape, const) for n in weight_names],
        out_specs=pl.BlockSpec((TB, 1), lambda i: (i, 0)),
        compiler_params=pltpu.CompilerParams(
            dimension_semantics=("parallel",),
            vmem_limit_bytes=32 * 1024 * 1024,
        ),
        cost_estimate=pl.CostEstimate(
            flops=flops, transcendentals=0, bytes_accessed=bytes_accessed),
    )(x2, *(q[n] for n in weight_names))


# ---------------------------------------------------------------------------
# im2col glue (plain XLA strided slices; fuses with the input transpose/cast)
# ---------------------------------------------------------------------------
def _pooled_conv_patches(x_pad, kh, kw, cs, pk, ps):
    """One im2col slab per pool-window offset (dh, dw), so
    maxpool(relu(conv(x)+b)) == relu(max over slabs of slab@W + b).
    Returns ((pk*pk, B*OHp*OWp, kh*kw*C), OHp, OWp)."""
    B, Hp, Wp, C = x_pad.shape
    OH = (Hp - kh) // cs + 1
    OW = (Wp - kw) // cs + 1
    OHp = (OH - pk) // ps + 1
    OWp = (OW - pk) // ps + 1
    step = ps * cs
    slabs = []
    for dh in range(pk):
        for dw in range(pk):
            taps = []
            for i in range(kh):
                for j in range(kw):
                    h0 = dh * cs + i
                    w0 = dw * cs + j
                    taps.append(
                        x_pad[:, h0:h0 + (OHp - 1) * step + 1:step,
                                 w0:w0 + (OWp - 1) * step + 1:step, :])
            patch = jnp.stack(taps, axis=3)              # (B, OHp, OWp, kh*kw, C)
            slabs.append(patch.reshape(B * OHp * OWp, kh * kw * C))
    return jnp.stack(slabs, axis=0), OHp, OWp


def _conv_patches(x_pad, kh, kw, cs):
    """Plain conv-resolution im2col (no pool slabs). Returns ((1, B*OH*OW, kh*kw*C), OH, OW)."""
    B, Hp, Wp, C = x_pad.shape
    OH = (Hp - kh) // cs + 1
    OW = (Wp - kw) // cs + 1
    taps = []
    for i in range(kh):
        for j in range(kw):
            taps.append(x_pad[:, i:i + (OH - 1) * cs + 1:cs,
                                 j:j + (OW - 1) * cs + 1:cs, :])
    patch = jnp.stack(taps, axis=3)                      # (B, OH, OW, kh*kw, C)
    return patch.reshape(1, B * OH * OW, kh * kw * C), OH, OW


def conv1_relu_pool(x_nhwc, q):
    """conv1 (8x8, stride 4, pad 2) + bias + ReLU + maxpool(2,2)/2 -> (B,10,10,64)."""
    x_pad = jnp.pad(x_nhwc, ((0, 0), (2, 2), (2, 2), (0, 0)))
    patches, OHp, OWp = _pooled_conv_patches(x_pad, kh=8, kw=8, cs=4, pk=2, ps=2)
    out = conv_gemm(patches, q["w1"], q["b1"])
    B = x_nhwc.shape[0]
    return out.reshape(B, OHp, OWp, q["w1"].shape[1])


def conv2_relu(x_nhwc, q):
    """conv2 (4x4, stride 2, pad 1) + bias + ReLU at conv resolution (B, 5*5*128);
    its 2x2 stride-1 max-pool is fused into the head kernel."""
    x_pad = jnp.pad(x_nhwc, ((0, 0), (1, 1), (1, 1), (0, 0)))
    patches, OH, OW = _conv_patches(x_pad, kh=4, kw=4, cs=2)
    out = conv_gemm(patches, q["w2"], q["b2"])
    B = x_nhwc.shape[0]
    return out.reshape(B, OH * OW * q["w2"].shape[1])


# ---------------------------------------------------------------------------
# Parameters (deterministic, PyTorch-default-style uniform init) + packing
# ---------------------------------------------------------------------------
def init_critic_params(key, c):
    def uinit(k, shape, fan_in):
        bound = 1.0 / (fan_in ** 0.5)
        return jax.random.uniform(k, shape, jnp.float32, -bound, bound)

    ks = jax.random.split(key, 12)
    p = {}
    p["w1"], p["b1"] = uinit(ks[0], (64, c, 8, 8), c * 64), uinit(ks[1], (64,), c * 64)
    p["w2"], p["b2"] = uinit(ks[2], (128, 64, 4, 4), 64 * 16), uinit(ks[3], (128,), 64 * 16)
    p["w3"], p["b3"] = uinit(ks[4], (128, 128, 2, 2), 128 * 4), uinit(ks[5], (128,), 128 * 4)
    p["fw1"], p["fb1"] = uinit(ks[6], (768, 512), 512), uinit(ks[7], (768,), 512)
    p["fw2"], p["fb2"] = uinit(ks[8], (32, 768), 768), uinit(ks[9], (32,), 768)
    p["fw3"], p["fb3"] = uinit(ks[10], (1, 32), 32), uinit(ks[11], (1,), 32)
    return p


def pack_params(p):
    """One-time packing into kernel-ready layouts (bf16 weights, f32 (1,N) biases)."""
    bf16, f32 = jnp.bfloat16, jnp.float32

    def conv_pack(w):    # OIHW -> (kh*kw*Cin, Cout), rows ordered (kh, kw, cin)
        o, i, kh, kw = w.shape
        return jnp.transpose(w, (2, 3, 1, 0)).reshape(kh * kw * i, o).astype(bf16)

    q = {}
    q["w1"], q["b1"] = conv_pack(p["w1"]), p["b1"].reshape(1, -1).astype(f32)
    q["w2"], q["b2"] = conv_pack(p["w2"]), p["b2"].reshape(1, -1).astype(f32)
    q["cw3"], q["cb3"] = conv_pack(p["w3"]), p["b3"].reshape(1, -1).astype(f32)
    # fc1: pre-permute K so the kernel consumes the (oh, ow, c)-ordered conv3
    # output directly (PyTorch flattens NCHW with k_torch = c*4 + oh*2 + ow).
    w1 = p["fw1"].reshape(768, 128, 2, 2)                          # (n, c, oh, ow)
    q["fw1"] = jnp.transpose(w1, (2, 3, 1, 0)).reshape(512, 768).astype(bf16)
    q["fb1"] = p["fb1"].reshape(1, -1).astype(f32)
    q["fw2"], q["fb2"] = p["fw2"].T.astype(bf16), p["fb2"].reshape(1, -1).astype(f32)
    q["fw3"] = p["fw3"].astype(f32)                                # (1, 32) row, VPU fc3
    q["fb3"] = p["fb3"].reshape(1, 1).astype(f32)
    return q


# ---------------------------------------------------------------------------
# Critic forward (matches the PyTorch module; input must be (B, c, 80, 80))
# ---------------------------------------------------------------------------
def critic_forward(q, s_nchw):
    # NCHW f32 -> NHWC bf16; with the im2col gather in XLA this transpose+cast
    # fuses into the patch-building fusion (no standalone HBM round trip).
    x = jnp.transpose(s_nchw.astype(jnp.bfloat16), (0, 2, 3, 1))
    x = conv1_relu_pool(x, q)           # (B, 10, 10, 64)   conv1+ReLU+pool1
    x = conv2_relu(x, q)                # (B, 5*5*128)      conv2+ReLU (pool2 in head)
    return head_forward(x, q)           # (B, 1) f32        pool2+conv3+fc1+fc2+fc3


if __name__ == "__main__":
    key = jax.random.PRNGKey(0)
    pkey, xkey = jax.random.split(key)
    batch, c = 2, 4
    params = init_critic_params(pkey, c)
    packed = pack_params(params)
    # spatial 80x80 is required by the conv/pool stack to reach the 128*2*2 flatten
    s = jax.random.normal(xkey, (batch, c, 80, 80), jnp.float32)
    out = jax.block_until_ready(jax.jit(critic_forward)(packed, s))
    assert out.shape == (batch, 1) and out.dtype == jnp.float32
    print("KERNEL_OK")
</pallas_src>

<mosaic_0001>
module attributes {stable_mosaic.version = 11 : i64} {
  func.func @_conv_gemm_pool_kernel(%arg0: i32, %arg1: memref<4x208x256xbf16, #tpu.memory_space<vmem>>, %arg2: memref<256x64xbf16, #tpu.memory_space<vmem>>, %arg3: memref<1x64xf32, #tpu.memory_space<vmem>>, %arg4: memref<208x64xbf16, #tpu.memory_space<vmem>>) attributes {dimension_semantics = [#tpu.dimension_semantics<parallel>], iteration_bounds = array<i64: 1>, scalar_prefetch = 0 : i64, scratch_operands = 0 : i64, tpu.core_type = #tpu.core_type<tc>, window_params = [{transform_indices = @transform_0, window_bounds = array<i64: 4, 208, 256>}, {pipeline_mode = #tpu.pipeline_mode<synchronous>, transform_indices = @transform_1, window_bounds = array<i64: 256, 64>}, {pipeline_mode = #tpu.pipeline_mode<synchronous>, transform_indices = @transform_2, window_bounds = array<i64: 1, 64>}, {transform_indices = @transform_3, window_bounds = array<i64: 208, 64>}]} {
    %c0 = arith.constant 0 : index
    %c0_0 = arith.constant 0 : index
    %0 = vector.load %arg2[%c0, %c0_0] : memref<256x64xbf16, #tpu.memory_space<vmem>>, vector<256x64xbf16>
    %c0_1 = arith.constant 0 : index
    %c0_2 = arith.constant 0 : index
    %c0_3 = arith.constant 0 : index
    %1 = vector.load %arg1[%c0_1, %c0_2, %c0_3] : memref<4x208x256xbf16, #tpu.memory_space<vmem>>, vector<4x208x256xbf16>
    %2 = vector.shape_cast %1 : vector<4x208x256xbf16> to vector<832x256xbf16>
    %cst = arith.constant dense<0.000000e+00> : vector<832x64xf32>
    %3 = tpu.matmul %2, %0, %cst {dimension_numbers = #tpu.dot_dimension_numbers<[1], [0], [0], [1], [0, 0, 1, 1], [], []>} : vector<832x256xbf16>, vector<256x64xbf16>, vector<832x64xf32> -> vector<832x64xf32>
    %4 = vector.extract_strided_slice %3 {offsets = [0, 0], sizes = [208, 64], strides = [1, 1]} : vector<832x64xf32> to vector<208x64xf32>
    %5 = vector.extract_strided_slice %3 {offsets = [208, 0], sizes = [208, 64], strides = [1, 1]} : vector<832x64xf32> to vector<208x64xf32>
    %6 = arith.maximumf %4, %5 : vector<208x64xf32>
    %7 = vector.extract_strided_slice %3 {offsets = [416, 0], sizes = [208, 64], strides = [1, 1]} : vector<832x64xf32> to vector<208x64xf32>
    %8 = arith.maximumf %6, %7 : vector<208x64xf32>
    %9 = vector.extract_strided_slice %3 {offsets = [624, 0], sizes = [208, 64], strides = [1, 1]} : vector<832x64xf32> to vector<208x64xf32>
    %10 = arith.maximumf %8, %9 : vector<208x64xf32>
    %c0_4 = arith.constant 0 : index
    %c0_5 = arith.constant 0 : index
    %11 = vector.load %arg3[%c0_4, %c0_5] : memref<1x64xf32, #tpu.memory_space<vmem>>, vector<1x64xf32>
    %12 = vector.broadcast %11 : vector<1x64xf32> to vector<208x64xf32>
    %13 = arith.addf %10, %12 : vector<208x64xf32>
    %cst_6 = arith.constant 0.000000e+00 : f32
    %14 = vector.broadcast %cst_6 : f32 to vector<208x64xf32>
    %15 = arith.maximumf %13, %14 : vector<208x64xf32>
    %16 = arith.truncf %15 : vector<208x64xf32> to vector<208x64xbf16>
    %c0_7 = arith.constant 0 : index
    %c0_8 = arith.constant 0 : index
    %17 = vector.load %arg4[%c0_7, %c0_8] : memref<208x64xbf16, #tpu.memory_space<vmem>>, vector<208x64xbf16>
    tpu.vector_store %arg4[%c0_7, %c0_8], %16 {strides = array<i32>} : memref<208x64xbf16, #tpu.memory_space<vmem>>, vector<208x64xbf16>,
    return
  }
  func.func @transform_0(%arg0: i32) -> (i32, i32, i32) {
    %c0_i32 = arith.constant 0 : i32
    %c0_i32_0 = arith.constant 0 : i32
    %c0_i32_1 = arith.constant 0 : i32
    return %c0_i32, %arg0, %c0_i32_0 : i32, i32, i32
  }
  func.func @transform_1(%arg0: i32) -> (i32, i32) {
    %c0_i32 = arith.constant 0 : i32
    %c0_i32_0 = arith.constant 0 : i32
    %c0_i32_1 = arith.constant 0 : i32
    return %c0_i32, %c0_i32_0 : i32, i32
  }
  func.func @transform_2(%arg0: i32) -> (i32, i32) {
    %c0_i32 = arith.constant 0 : i32
    %c0_i32_0 = arith.constant 0 : i32
    %c0_i32_1 = arith.constant 0 : i32
    return %c0_i32, %c0_i32_0 : i32, i32
  }
  func.func @transform_3(%arg0: i32) -> (i32, i32) {
    %c0_i32 = arith.constant 0 : i32
    %c0_i32_0 = arith.constant 0 : i32
    return %arg0, %c0_i32 : i32, i32
  }
}

module attributes {stable_mosaic.version = 11 : i64} {
  func.func @_conv_gemm_pool_kernel(%arg0: i32, %arg1: memref<1x64x1024xbf16, #tpu.memory_space<vmem>>, %arg2: memref<1024x128xbf16, #tpu.memory_space<vmem>>, %arg3: memref<1x128xf32, #tpu.memory_space<vmem>>, %arg4: memref<64x128xbf16, #tpu.memory_space<vmem>>) attributes {dimension_semantics = [#tpu.dimension_semantics<parallel>], iteration_bounds = array<i64: 1>, scalar_prefetch = 0 : i64, scratch_operands = 0 : i64, tpu.core_type = #tpu.core_type<tc>, window_params = [{transform_indices = @transform_0, window_bounds = array<i64: 1, 64, 1024>}, {pipeline_mode = #tpu.pipeline_mode<synchronous>, transform_indices = @transform_1, window_bounds = array<i64: 1024, 128>}, {pipeline_mode = #tpu.pipeline_mode<synchronous>, transform_indices = @transform_2, window_bounds = array<i64: 1, 128>}, {transform_indices = @transform_3, window_bounds = array<i64: 64, 128>}]} {
    %c0 = arith.constant 0 : index
    %c0_0 = arith.constant 0 : index
    %0 = vector.load %arg2[%c0, %c0_0] : memref<1024x128xbf16, #tpu.memory_space<vmem>>, vector<1024x128xbf16>
    %c0_1 = arith.constant 0 : index
    %c0_2 = arith.constant 0 : index
    %c0_3 = arith.constant 0 : index
    %1 = vector.load %arg1[%c0_1, %c0_2, %c0_3] : memref<1x64x1024xbf16, #tpu.memory_space<vmem>>, vector<1x64x1024xbf16>
    %2 = vector.shape_cast %1 : vector<1x64x1024xbf16> to vector<64x1024xbf16>
    %cst = arith.constant dense<0.000000e+00> : vector<64x128xf32>
    %3 = tpu.matmul %2, %0, %cst {dimension_numbers = #tpu.dot_dimension_numbers<[1], [0], [0], [1], [0, 0, 1, 1], [], []>} : vector<64x1024xbf16>, vector<1024x128xbf16>, vector<64x128xf32> -> vector<64x128xf32>
    %c0_4 = arith.constant 0 : index
    %c0_5 = arith.constant 0 : index
    %4 = vector.load %arg3[%c0_4, %c0_5] : memref<1x128xf32, #tpu.memory_space<vmem>>, vector<1x128xf32>
    %5 = vector.broadcast %4 : vector<1x128xf32> to vector<64x128xf32>
    %6 = arith.addf %3, %5 : vector<64x128xf32>
    %cst_6 = arith.constant 0.000000e+00 : f32
    %7 = vector.broadcast %cst_6 : f32 to vector<64x128xf32>
    %8 = arith.maximumf %6, %7 : vector<64x128xf32>
    %9 = arith.truncf %8 : vector<64x128xf32> to vector<64x128xbf16>
    %c0_7 = arith.constant 0 : index
    %c0_8 = arith.constant 0 : index
    %10 = vector.load %arg4[%c0_7, %c0_8] : memref<64x128xbf16, #tpu.memory_space<vmem>>, vector<64x128xbf16>
    tpu.vector_store %arg4[%c0_7, %c0_8], %9 {strides = array<i32>} : memref<64x128xbf16, #tpu.memory_space<vmem>>, vector<64x128xbf16>,
    return
  }
  func.func @transform_0(%arg0: i32) -> (i32, i32, i32) {
    %c0_i32 = arith.constant 0 : i32
    %c0_i32_0 = arith.constant 0 : i32
    %c0_i32_1 = arith.constant 0 : i32
    return %c0_i32, %arg0, %c0_i32_0 : i32, i32, i32
  }
  func.func @transform_1(%arg0: i32) -> (i32, i32) {
    %c0_i32 = arith.constant 0 : i32
    %c0_i32_0 = arith.constant 0 : i32
    %c0_i32_1 = arith.constant 0 : i32
    return %c0_i32, %c0_i32_0 : i32, i32
  }
  func.func @transform_2(%arg0: i32) -> (i32, i32) {
    %c0_i32 = arith.constant 0 : i32
    %c0_i32_0 = arith.constant 0 : i32
    %c0_i32_1 = arith.constant 0 : i32
    return %c0_i32, %c0_i32_0 : i32, i32
  }
  func.func @transform_3(%arg0: i32) -> (i32, i32) {
    %c0_i32 = arith.constant 0 : i32
    %c0_i32_0 = arith.constant 0 : i32
    return %arg0, %c0_i32 : i32, i32
  }
}

module attributes {stable_mosaic.version = 11 : i64} {
  func.func @_head_kernel(%arg0: i32, %arg1: memref<2x3200xbf16, #tpu.memory_space<vmem>>, %arg2: memref<512x128xbf16, #tpu.memory_space<vmem>>, %arg3: memref<1x128xf32, #tpu.memory_space<vmem>>, %arg4: memref<512x768xbf16, #tpu.memory_space<vmem>>, %arg5: memref<1x768xf32, #tpu.memory_space<vmem>>, %arg6: memref<768x32xbf16, #tpu.memory_space<vmem>>, %arg7: memref<1x32xf32, #tpu.memory_space<vmem>>, %arg8: memref<1x32xf32, #tpu.memory_space<vmem>>, %arg9: memref<1x1xf32, #tpu.memory_space<vmem>>, %arg10: memref<2x1xf32, #tpu.memory_space<vmem>>) attributes {dimension_semantics = [#tpu.dimension_semantics<parallel>], iteration_bounds = array<i64: 1>, scalar_prefetch = 0 : i64, scratch_operands = 0 : i64, tpu.core_type = #tpu.core_type<tc>, window_params = [{transform_indices = @transform_0, window_bounds = array<i64: 2, 3200>}, {pipeline_mode = #tpu.pipeline_mode<synchronous>, transform_indices = @transform_1, window_bounds = array<i64: 512, 128>}, {pipeline_mode = #tpu.pipeline_mode<synchronous>, transform_indices = @transform_2, window_bounds = array<i64: 1, 128>}, {pipeline_mode = #tpu.pipeline_mode<synchronous>, transform_indices = @transform_3, window_bounds = array<i64: 512, 768>}, {pipeline_mode = #tpu.pipeline_mode<synchronous>, transform_indices = @transform_4, window_bounds = array<i64: 1, 768>}, {pipeline_mode = #tpu.pipeline_mode<synchronous>, transform_indices = @transform_5, window_bounds = array<i64: 768, 32>}, {pipeline_mode = #tpu.pipeline_mode<synchronous>, transform_indices = @transform_6, window_bounds = array<i64: 1, 32>}, {pipeline_mode = #tpu.pipeline_mode<synchronous>, transform_indices = @transform_7, window_bounds = array<i64: 1, 32>}, {pipeline_mode = #tpu.pipeline_mode<synchronous>, transform_indices = @transform_8, window_bounds = array<i64: 1, 1>}, {transform_indices = @transform_9, window_bounds = array<i64: 2, 1>}]} {
    %c0 = arith.constant 0 : index
    %c0_0 = arith.constant 0 : index
    %0 = vector.load %arg1[%c0, %c0_0] : memref<2x3200xbf16, #tpu.memory_space<vmem>>, vector<2x3200xbf16>
    %1 = vector.extract_strided_slice %0 {offsets = [0, 0], sizes = [2, 128], strides = [1, 1]} : vector<2x3200xbf16> to vector<2x128xbf16>
    %2 = vector.extract_strided_slice %0 {offsets = [0, 128], sizes = [2, 128], strides = [1, 1]} : vector<2x3200xbf16> to vector<2x128xbf16>
    %3 = arith.maximumf %1, %2 : vector<2x128xbf16>
    %4 = vector.extract_strided_slice %0 {offsets = [0, 640], sizes = [2, 128], strides = [1, 1]} : vector<2x3200xbf16> to vector<2x128xbf16>
    %5 = vector.extract_strided_slice %0 {offsets = [0, 768], sizes = [2, 128], strides = [1, 1]} : vector<2x3200xbf16> to vector<2x128xbf16>
    %6 = arith.maximumf %4, %5 : vector<2x128xbf16>
    %7 = arith.maximumf %3, %6 : vector<2x128xbf16>
    %8 = vector.extract_strided_slice %0 {offsets = [0, 128], sizes = [2, 128], strides = [1, 1]} : vector<2x3200xbf16> to vector<2x128xbf16>
    %9 = vector.extract_strided_slice %0 {offsets = [0, 256], sizes = [2, 128], strides = [1, 1]} : vector<2x3200xbf16> to vector<2x128xbf16>
    %10 = arith.maximumf %8, %9 : vector<2x128xbf16>
    %11 = vector.extract_strided_slice %0 {offsets = [0, 768], sizes = [2, 128], strides = [1, 1]} : vector<2x3200xbf16> to vector<2x128xbf16>
    %12 = vector.extract_strided_slice %0 {offsets = [0, 896], sizes = [2, 128], strides = [1, 1]} : vector<2x3200xbf16> to vector<2x128xbf16>
    %13 = arith.maximumf %11, %12 : vector<2x128xbf16>
    %14 = arith.maximumf %10, %13 : vector<2x128xbf16>
    %15 = vector.extract_strided_slice %0 {offsets = [0, 256], sizes = [2, 128], strides = [1, 1]} : vector<2x3200xbf16> to vector<2x128xbf16>
    %16 = vector.extract_strided_slice %0 {offsets = [0, 384], sizes = [2, 128], strides = [1, 1]} : vector<2x3200xbf16> to vector<2x128xbf16>
    %17 = arith.maximumf %15, %16 : vector<2x128xbf16>
    %18 = vector.extract_strided_slice %0 {offsets = [0, 896], sizes = [2, 128], strides = [1, 1]} : vector<2x3200xbf16> to vector<2x128xbf16>
    %19 = vector.extract_strided_slice %0 {offsets = [0, 1024], sizes = [2, 128], strides = [1, 1]} : vector<2x3200xbf16> to vector<2x128xbf16>
    %20 = arith.maximumf %18, %19 : vector<2x128xbf16>
    %21 = arith.maximumf %17, %20 : vector<2x128xbf16>
    %22 = vector.extract_strided_slice %0 {offsets = [0, 384], sizes = [2, 128], strides = [1, 1]} : vector<2x3200xbf16> to vector<2x128xbf16>
    %23 = vector.extract_strided_slice %0 {offsets = [0, 512], sizes = [2, 128], strides = [1, 1]} : vector<2x3200xbf16> to vector<2x128xbf16>
    %24 = arith.maximumf %22, %23 : vector<2x128xbf16>
    %25 = vector.extract_strided_slice %0 {offsets = [0, 1024], sizes = [2, 128], strides = [1, 1]} : vector<2x3200xbf16> to vector<2x128xbf16>
    %26 = vector.extract_strided_slice %0 {offsets = [0, 1152], sizes = [2, 128], strides = [1, 1]} : vector<2x3200xbf16> to vector<2x128xbf16>
    %27 = arith.maximumf %25, %26 : vector<2x128xbf16>
    %28 = arith.maximumf %24, %27 : vector<2x128xbf16>
    %29 = vector.extract_strided_slice %0 {offsets = [0, 640], sizes = [2, 128], strides = [1, 1]} : vector<2x3200xbf16> to vector<2x128xbf16>
    %30 = vector.extract_strided_slice %0 {offsets = [0, 768], sizes = [2, 128], strides = [1, 1]} : vector<2x3200xbf16> to vector<2x128xbf16>
    %31 = arith.maximumf %29, %30 : vector<2x128xbf16>
    %32 = vector.extract_strided_slice %0 {offsets = [0, 1280], sizes = [2, 128], strides = [1, 1]} : vector<2x3200xbf16> to vector<2x128xbf16>
    %33 = vector.extract_strided_slice %0 {offsets = [0, 1408], sizes = [2, 128], strides = [1, 1]} : vector<2x3200xbf16> to vector<2x128xbf16>
    %34 = arith.maximumf %32, %33 : vector<2x128xbf16>
    %35 = arith.maximumf %31, %34 : vector<2x128xbf16>
    %36 = vector.extract_strided_slice %0 {offsets = [0, 768], sizes = [2, 128], strides = [1, 1]} : vector<2x3200xbf16> to vector<2x128xbf16>
    %37 = vector.extract_strided_slice %0 {offsets = [0, 896], sizes = [2, 128], strides = [1, 1]} : vector<2x3200xbf16> to vector<2x128xbf16>
    %38 = arith.maximumf %36, %37 : vector<2x128xbf16>
    %39 = vector.extract_strided_slice %0 {offsets = [0, 1408], sizes = [2, 128], strides = [1, 1]} : vector<2x3200xbf16> to vector<2x128xbf16>
    %40 = vector.extract_strided_slice %0 {offsets = [0, 1536], sizes = [2, 128], strides = [1, 1]} : vector<2x3200xbf16> to vector<2x128xbf16>
    %41 = arith.maximumf %39, %40 : vector<2x128xbf16>
    %42 = arith.maximumf %38, %41 : vector<2x128xbf16>
    %43 = vector.extract_strided_slice %0 {offsets = [0, 896], sizes = [2, 128], strides = [1, 1]} : vector<2x3200xbf16> to vector<2x128xbf16>
    %44 = vector.extract_strided_slice %0 {offsets = [0, 1024], sizes = [2, 128], strides = [1, 1]} : vector<2x3200xbf16> to vector<2x128xbf16>
    %45 = arith.maximumf %43, %44 : vector<2x128xbf16>
    %46 = vector.extract_strided_slice %0 {offsets = [0, 1536], sizes = [2, 128], strides = [1, 1]} : vector<2x3200xbf16> to vector<2x128xbf16>
    %47 = vector.extract_strided_slice %0 {offsets = [0, 1664], sizes = [2, 128], strides = [1, 1]} : vector<2x3200xbf16> to vector<2x128xbf16>
    %48 = arith.maximumf %46, %47 : vector<2x128xbf16>
    %49 = arith.maximumf %45, %48 : vector<2x128xbf16>
    %50 = vector.extract_strided_slice %0 {offsets = [0, 1024], sizes = [2, 128], strides = [1, 1]} : vector<2x3200xbf16> to vector<2x128xbf16>
    %51 = vector.extract_strided_slice %0 {offsets = [0, 1152], sizes = [2, 128], strides = [1, 1]} : vector<2x3200xbf16> to vector<2x128xbf16>
    %52 = arith.maximumf %50, %51 : vector<2x128xbf16>
    %53 = vector.extract_strided_slice %0 {offsets = [0, 1664], sizes = [2, 128], strides = [1, 1]} : vector<2x3200xbf16> to vector<2x128xbf16>
    %54 = vector.extract_strided_slice %0 {offsets = [0, 1792], sizes = [2, 128], strides = [1, 1]} : vector<2x3200xbf16> to vector<2x128xbf16>
    %55 = arith.maximumf %53, %54 : vector<2x128xbf16>
    %56 = arith.maximumf %52, %55 : vector<2x128xbf16>
    %57 = vector.extract_strided_slice %0 {offsets = [0, 1280], sizes = [2, 128], strides = [1, 1]} : vector<2x3200xbf16> to vector<2x128xbf16>
    %58 = vector.extract_strided_slice %0 {offsets = [0, 1408], sizes = [2, 128], strides = [1, 1]} : vector<2x3200xbf16> to vector<2x128xbf16>
    %59 = arith.maximumf %57, %58 : vector<2x128xbf16>
    %60 = vector.extract_strided_slice %0 {offsets = [0, 1920], sizes = [2, 128], strides = [1, 1]} : vector<2x3200xbf16> to vector<2x128xbf16>
    %61 = vector.extract_strided_slice %0 {offsets = [0, 2048], sizes = [2, 128], strides = [1, 1]} : vector<2x3200xbf16> to vector<2x128xbf16>
    %62 = arith.maximumf %60, %61 : vector<2x128xbf16>
    %63 = arith.maximumf %59, %62 : vector<2x128xbf16>
    %64 = vector.extract_strided_slice %0 {offsets = [0, 1408], sizes = [2, 128], strides = [1, 1]} : vector<2x3200xbf16> to vector<2x128xbf16>
    %65 = vector.extract_strided_slice %0 {offsets = [0, 1536], sizes = [2, 128], strides = [1, 1]} : vector<2x3200xbf16> to vector<2x128xbf16>
    %66 = arith.maximumf %64, %65 : vector<2x128xbf16>
    %67 = vector.extract_strided_slice %0 {offsets = [0, 2048], sizes = [2, 128], strides = [1, 1]} : vector<2x3200xbf16> to vector<2x128xbf16>
    %68 = vector.extract_strided_slice %0 {offsets = [0, 2176], sizes = [2, 128], strides = [1, 1]} : vector<2x3200xbf16> to vector<2x128xbf16>
    %69 = arith.maximumf %67, %68 : vector<2x128xbf16>
    %70 = arith.maximumf %66, %69 : vector<2x128xbf16>
    %71 = vector.extract_strided_slice %0 {offsets = [0, 1536], sizes = [2, 128], strides = [1, 1]} : vector<2x3200xbf16> to vector<2x128xbf16>
    %72 = vector.extract_strided_slice %0 {offsets = [0, 1664], sizes = [2, 128], strides = [1, 1]} : vector<2x3200xbf16> to vector<2x128xbf16>
    %73 = arith.maximumf %71, %72 : vector<2x128xbf16>
    %74 = vector.extract_strided_slice %0 {offsets = [0, 2176], sizes = [2, 128], strides = [1, 1]} : vector<2x3200xbf16> to vector<2x128xbf16>
    %75 = vector.extract_strided_slice %0 {offsets = [0, 2304], sizes = [2, 128], strides = [1, 1]} : vector<2x3200xbf16> to vector<2x128xbf16>
    %76 = arith.maximumf %74, %75 : vector<2x128xbf16>
    %77 = arith.maximumf %73, %76 : vector<2x128xbf16>
    %78 = vector.extract_strided_slice %0 {offsets = [0, 1664], sizes = [2, 128], strides = [1, 1]} : vector<2x3200xbf16> to vector<2x128xbf16>
    %79 = vector.extract_strided_slice %0 {offsets = [0, 1792], sizes = [2, 128], strides = [1, 1]} : vector<2x3200xbf16> to vector<2x128xbf16>
    %80 = arith.maximumf %78, %79 : vector<2x128xbf16>
    %81 = vector.extract_strided_slice %0 {offsets = [0, 2304], sizes = [2, 128], strides = [1, 1]} : vector<2x3200xbf16> to vector<2x128xbf16>
    %82 = vector.extract_strided_slice %0 {offsets = [0, 2432], sizes = [2, 128], strides = [1, 1]} : vector<2x3200xbf16> to vector<2x128xbf16>
    %83 = arith.maximumf %81, %82 : vector<2x128xbf16>
    %84 = arith.maximumf %80, %83 : vector<2x128xbf16>
    %85 = vector.extract_strided_slice %0 {offsets = [0, 1920], sizes = [2, 128], strides = [1, 1]} : vector<2x3200xbf16> to vector<2x128xbf16>
    %86 = vector.extract_strided_slice %0 {offsets = [0, 2048], sizes = [2, 128], strides = [1, 1]} : vector<2x3200xbf16> to vector<2x128xbf16>
    %87 = arith.maximumf %85, %86 : vector<2x128xbf16>
    %88 = vector.extract_strided_slice %0 {offsets = [0, 2560], sizes = [2, 128], strides = [1, 1]} : vector<2x3200xbf16> to vector<2x128xbf16>
    %89 = vector.extract_strided_slice %0 {offsets = [0, 2688], sizes = [2, 128], strides = [1, 1]} : vector<2x3200xbf16> to vector<2x128xbf16>
    %90 = arith.maximumf %88, %89 : vector<2x128xbf16>
    %91 = arith.maximumf %87, %90 : vector<2x128xbf16>
    %92 = vector.extract_strided_slice %0 {offsets = [0, 2048], sizes = [2, 128], strides = [1, 1]} : vector<2x3200xbf16> to vector<2x128xbf16>
    %93 = vector.extract_strided_slice %0 {offsets = [0, 2176], sizes = [2, 128], strides = [1, 1]} : vector<2x3200xbf16> to vector<2x128xbf16>
    %94 = arith.maximumf %92, %93 : vector<2x128xbf16>
    %95 = vector.extract_strided_slice %0 {offsets = [0, 2688], sizes = [2, 128], strides = [1, 1]} : vector<2x3200xbf16> to vector<2x128xbf16>
    %96 = vector.extract_strided_slice %0 {offsets = [0, 2816], sizes = [2, 128], strides = [1, 1]} : vector<2x3200xbf16> to vector<2x128xbf16>
    %97 = arith.maximumf %95, %96 : vector<2x128xbf16>
    %98 = arith.maximumf %94, %97 : vector<2x128xbf16>
    %99 = vector.extract_strided_slice %0 {offsets = [0, 2176], sizes = [2, 128], strides = [1, 1]} : vector<2x3200xbf16> to vector<2x128xbf16>
    %100 = vector.extract_strided_slice %0 {offsets = [0, 2304], sizes = [2, 128], strides = [1, 1]} : vector<2x3200xbf16> to vector<2x128xbf16>
    %101 = arith.maximumf %99, %100 : vector<2x128xbf16>
    %102 = vector.extract_strided_slice %0 {offsets = [0, 2816], sizes = [2, 128], strides = [1, 1]} : vector<2x3200xbf16> to vector<2x128xbf16>
    %103 = vector.extract_strided_slice %0 {offsets = [0, 2944], sizes = [2, 128], strides = [1, 1]} : vector<2x3200xbf16> to vector<2x128xbf16>
    %104 = arith.maximumf %102, %103 : vector<2x128xbf16>
    %105 = arith.maximumf %101, %104 : vector<2x128xbf16>
    %106 = vector.extract_strided_slice %0 {offsets = [0, 2304], sizes = [2, 128], strides = [1, 1]} : vector<2x3200xbf16> to vector<2x128xbf16>
    %107 = vector.extract_strided_slice %0 {offsets = [0, 2432], sizes = [2, 128], strides = [1, 1]} : vector<2x3200xbf16> to vector<2x128xbf16>
    %108 = arith.maximumf %106, %107 : vector<2x128xbf16>
    %109 = vector.extract_strided_slice %0 {offsets = [0, 2944], sizes = [2, 128], strides = [1, 1]} : vector<2x3200xbf16> to vector<2x128xbf16>
    %110 = vector.extract_strided_slice %0 {offsets = [0, 3072], sizes = [2, 128], strides = [1, 1]} : vector<2x3200xbf16> to vector<2x128xbf16>
    %111 = arith.maximumf %109, %110 : vector<2x128xbf16>
    %112 = arith.maximumf %108, %111 : vector<2x128xbf16>
    %c0_1 = arith.constant 0 : index
    %c0_2 = arith.constant 0 : index
    %113 = vector.load %arg2[%c0_1, %c0_2] : memref<512x128xbf16, #tpu.memory_space<vmem>>, vector<512x128xbf16>
    %c0_3 = arith.constant 0 : index
    %c0_4 = arith.constant 0 : index
    %114 = vector.load %arg3[%c0_3, %c0_4] : memref<1x128xf32, #tpu.memory_space<vmem>>, vector<1x128xf32>
    %115 = tpu.concatenate %7, %14, %35, %42 in 1 : vector<2x128xbf16>, vector<2x128xbf16>, vector<2x128xbf16>, vector<2x128xbf16> -> vector<2x512xbf16>
    %cst = arith.constant dense<0.000000e+00> : vector<2x128xf32>
    %116 = tpu.matmul %115, %113, %cst {dimension_numbers = #tpu.dot_dimension_numbers<[1], [0], [0], [1], [0, 0, 1, 1], [], []>} : vector<2x512xbf16>, vector<512x128xbf16>, vector<2x128xf32> -> vector<2x128xf32>
    %117 = vector.broadcast %114 : vector<1x128xf32> to vector<2x128xf32>
    %118 = arith.addf %116, %117 : vector<2x128xf32>
    %cst_5 = arith.constant 0.000000e+00 : f32
    %119 = vector.broadcast %cst_5 : f32 to vector<2x128xf32>
    %120 = arith.maximumf %118, %119 : vector<2x128xf32>
    %121 = arith.truncf %120 : vector<2x128xf32> to vector<2x128xbf16>
    %122 = tpu.concatenate %21, %28, %49, %56 in 1 : vector<2x128xbf16>, vector<2x128xbf16>, vector<2x128xbf16>, vector<2x128xbf16> -> vector<2x512xbf16>
    %cst_6 = arith.constant dense<0.000000e+00> : vector<2x128xf32>
    %123 = tpu.matmul %122, %113, %cst_6 {dimension_numbers = #tpu.dot_dimension_numbers<[1], [0], [0], [1], [0, 0, 1, 1], [], []>} : vector<2x512xbf16>, vector<512x128xbf16>, vector<2x128xf32> -> vector<2x128xf32>
    %124 = vector.broadcast %114 : vector<1x128xf32> to vector<2x128xf32>
    %125 = arith.addf %123, %124 : vector<2x128xf32>
    %cst_7 = arith.constant 0.000000e+00 : f32
    %126 = vector.broadcast %cst_7 : f32 to vector<2x128xf32>
    %127 = arith.maximumf %125, %126 : vector<2x128xf32>
    %128 = arith.truncf %127 : vector<2x128xf32> to vector<2x128xbf16>
    %129 = tpu.concatenate %63, %70, %91, %98 in 1 : vector<2x128xbf16>, vector<2x128xbf16>, vector<2x128xbf16>, vector<2x128xbf16> -> vector<2x512xbf16>
    %cst_8 = arith.constant dense<0.000000e+00> : vector<2x128xf32>
    %130 = tpu.matmul %129, %113, %cst_8 {dimension_numbers = #tpu.dot_dimension_numbers<[1], [0], [0], [1], [0, 0, 1, 1], [], []>} : vector<2x512xbf16>, vector<512x128xbf16>, vector<2x128xf32> -> vector<2x128xf32>
    %131 = vector.broadcast %114 : vector<1x128xf32> to vector<2x128xf32>
    %132 = arith.addf %130, %131 : vector<2x128xf32>
    %cst_9 = arith.constant 0.000000e+00 : f32
    %133 = vector.broadcast %cst_9 : f32 to vector<2x128xf32>
    %134 = arith.maximumf %132, %133 : vector<2x128xf32>
    %135 = arith.truncf %134 : vector<2x128xf32> to vector<2x128xbf16>
    %136 = tpu.concatenate %77, %84, %105, %112 in 1 : vector<2x128xbf16>, vector<2x128xbf16>, vector<2x128xbf16>, vector<2x128xbf16> -> vector<2x512xbf16>
    %cst_10 = arith.constant dense<0.000000e+00> : vector<2x128xf32>
    %137 = tpu.matmul %136, %113, %cst_10 {dimension_numbers = #tpu.dot_dimension_numbers<[1], [0], [0], [1], [0, 0, 1, 1], [], []>} : vector<2x512xbf16>, vector<512x128xbf16>, vector<2x128xf32> -> vector<2x128xf32>
    %138 = vector.broadcast %114 : vector<1x128xf32> to vector<2x128xf32>
    %139 = arith.addf %137, %138 : vector<2x128xf32>
    %cst_11 = arith.constant 0.000000e+00 : f32
    %140 = vector.broadcast %cst_11 : f32 to vector<2x128xf32>
    %141 = arith.maximumf %139, %140 : vector<2x128xf32>
    %142 = arith.truncf %141 : vector<2x128xf32> to vector<2x128xbf16>
    %143 = tpu.concatenate %121, %128, %135, %142 in 1 : vector<2x128xbf16>, vector<2x128xbf16>, vector<2x128xbf16>, vector<2x128xbf16> -> vector<2x512xbf16>
    %c0_12 = arith.constant 0 : index
    %c0_13 = arith.constant 0 : index
    %144 = vector.load %arg4[%c0_12, %c0_13] : memref<512x768xbf16, #tpu.memory_space<vmem>>, vector<512x768xbf16>
    %cst_14 = arith.constant dense<0.000000e+00> : vector<2x768xf32>
    %145 = tpu.matmul %143, %144, %cst_14 {dimension_numbers = #tpu.dot_dimension_numbers<[1], [0], [0], [1], [0, 0, 1, 1], [], []>} : vector<2x512xbf16>, vector<512x768xbf16>, vector<2x768xf32> -> vector<2x768xf32>
    %c0_15 = arith.constant 0 : index
    %c0_16 = arith.constant 0 : index
    %146 = vector.load %arg5[%c0_15, %c0_16] : memref<1x768xf32, #tpu.memory_space<vmem>>, vector<1x768xf32>
    %147 = vector.broadcast %146 : vector<1x768xf32> to vector<2x768xf32>
    %148 = arith.addf %145, %147 : vector<2x768xf32>
    %cst_17 = arith.constant 0.000000e+00 : f32
    %149 = vector.broadcast %cst_17 : f32 to vector<2x768xf32>
    %150 = arith.maximumf %148, %149 : vector<2x768xf32>
    %151 = arith.truncf %150 : vector<2x768xf32> to vector<2x768xbf16>
    %c0_18 = arith.constant 0 : index
    %c0_19 = arith.constant 0 : index
    %152 = vector.load %arg6[%c0_18, %c0_19] : memref<768x32xbf16, #tpu.memory_space<vmem>>, vector<768x32xbf16>
    %cst_20 = arith.constant dense<0.000000e+00> : vector<2x32xf32>
    %153 = tpu.matmul %151, %152, %cst_20 {dimension_numbers = #tpu.dot_dimension_numbers<[1], [0], [0], [1], [0, 0, 1, 1], [], []>} : vector<2x768xbf16>, vector<768x32xbf16>, vector<2x32xf32> -> vector<2x32xf32>
    %c0_21 = arith.constant 0 : index
    %c0_22 = arith.constant 0 : index
    %154 = vector.load %arg7[%c0_21, %c0_22] : memref<1x32xf32, #tpu.memory_space<vmem>>, vector<1x32xf32>
    %155 = vector.broadcast %154 : vector<1x32xf32> to vector<2x32xf32>
    %156 = arith.addf %153, %155 : vector<2x32xf32>
    %cst_23 = arith.constant 0.000000e+00 : f32
    %157 = vector.broadcast %cst_23 : f32 to vector<2x32xf32>
    %158 = arith.maximumf %156, %157 : vector<2x32xf32>
    %c0_24 = arith.constant 0 : index
    %c0_25 = arith.constant 0 : index
    %159 = vector.load %arg8[%c0_24, %c0_25] : memref<1x32xf32, #tpu.memory_space<vmem>>, vector<1x32xf32>
    %160 = vector.broadcast %159 : vector<1x32xf32> to vector<2x32xf32>
    %161 = arith.mulf %158, %160 : vector<2x32xf32>
    %cst_26 = arith.constant dense<0.000000e+00> : vector<2xf32>
    %162 = vector.multi_reduction <add>, %161, %cst_26 [1] : vector<2x32xf32> to vector<2xf32>
    %163 = vector.shape_cast %162 : vector<2xf32> to vector<2x1xf32>
    %c0_27 = arith.constant 0 : index
    %c0_28 = arith.constant 0 : index
    %164 = vector.load %arg9[%c0_27, %c0_28] : memref<1x1xf32, #tpu.memory_space<vmem>>, vector<1x1xf32>
    %165 = vector.broadcast %164 : vector<1x1xf32> to vector<2x1xf32>
    %166 = arith.addf %163, %165 : vector<2x1xf32>
    %c0_29 = arith.constant 0 : index
    %c0_30 = arith.constant 0 : index
    %167 = vector.load %arg10[%c0_29, %c0_30] : memref<2x1xf32, #tpu.memory_space<vmem>>, vector<2x1xf32>
    tpu.vector_store %arg10[%c0_29, %c0_30], %166 {strides = array<i32>} : memref<2x1xf32, #tpu.memory_space<vmem>>, vector<2x1xf32>,
    return
  }
  func.func @transform_0(%arg0: i32) -> (i32, i32) {
    %c0_i32 = arith.constant 0 : i32
    %c0_i32_0 = arith.constant 0 : i32
    return %arg0, %c0_i32 : i32, i32
  }
  func.func @transform_1(%arg0: i32) -> (i32, i32) {
    %c0_i32 = arith.constant 0 : i32
    %c0_i32_0 = arith.constant 0 : i32
    %c0_i32_1 = arith.constant 0 : i32
    return %c0_i32, %c0_i32_0 : i32, i32
  }
  func.func @transform_2(%arg0: i32) -> (i32, i32) {
    %c0_i32 = arith.constant 0 : i32
    %c0_i32_0 = arith.constant 0 : i32
    %c0_i32_1 = arith.constant 0 : i32
    return %c0_i32, %c0_i32_0 : i32, i32
  }
  func.func @transform_3(%arg0: i32) -> (i32, i32) {
    %c0_i32 = arith.constant 0 : i32
    %c0_i32_0 = arith.constant 0 : i32
    %c0_i32_1 = arith.constant 0 : i32
    return %c0_i32, %c0_i32_0 : i32, i32
  }
  func.func @transform_4(%arg0: i32) -> (i32, i32) {
    %c0_i32 = arith.constant 0 : i32
    %c0_i32_0 = arith.constant 0 : i32
    %c0_i32_1 = arith.constant 0 : i32
    return %c0_i32, %c0_i32_0 : i32, i32
  }
  func.func @transform_5(%arg0: i32) -> (i32, i32) {
    %c0_i32 = arith.constant 0 : i32
    %c0_i32_0 = arith.constant 0 : i32
    %c0_i32_1 = arith.constant 0 : i32
    return %c0_i32, %c0_i32_0 : i32, i32
  }
  func.func @transform_6(%arg0: i32) -> (i32, i32) {
    %c0_i32 = arith.constant 0 : i32
    %c0_i32_0 = arith.constant 0 : i32
    %c0_i32_1 = arith.constant 0 : i32
    return %c0_i32, %c0_i32_0 : i32, i32
  }
  func.func @transform_7(%arg0: i32) -> (i32, i32) {
    %c0_i32 = arith.constant 0 : i32
    %c0_i32_0 = arith.constant 0 : i32
    %c0_i32_1 = arith.constant 0 : i32
    return %c0_i32, %c0_i32_0 : i32, i32
  }
  func.func @transform_8(%arg0: i32) -> (i32, i32) {
    %c0_i32 = arith.constant 0 : i32
    %c0_i32_0 = arith.constant 0 : i32
    %c0_i32_1 = arith.constant 0 : i32
    return %c0_i32, %c0_i32_0 : i32, i32
  }
  func.func @transform_9(%arg0: i32) -> (i32, i32) {
    %c0_i32 = arith.constant 0 : i32
    %c0_i32_0 = arith.constant 0 : i32
    return %arg0, %c0_i32 : i32, i32
  }
}

</mosaic_0001>

<llo_original>
// kernel: critic_forward.3
$region0: #{critic_forward.3}
  #allocation0 [shape = 'u32[]', space=smem, size = 0x4, offset = 0x4, fixed_abs, tag = 'smem constant byte address 0x4 - core index']
  #allocation1 [shape = 'u32[144,128]{1,0:T(1,128)}', space=vmem, size = 0x12000, scoped, tag = 'internal scratch']
  %s0 = inlined_call_operand.vmem [shape: bf16[4,208,256], index: 0, kind: input, shape index: {}]
  %s1 = inlined_call_operand.vmem [shape: bf16[256,64], index: 1, kind: input, shape index: {}]
  %s2 = inlined_call_operand.vmem [shape: f32[1,64], index: 2, kind: input, shape index: {}]
  %s3 = inlined_call_operand.vmem [shape: bf16[208,64], index: 3, kind: output, shape index: {}]
  %s4 = sld [smem:[#allocation0]]
  $region22: #{critic_forward.3} parent=0
    _
  %s6 = ssub.s32 1, %s4
  %s7 = scalar_select 0, %s6, %s4
  // Predicated region
  $region2: #{critic_forward.3} parent=0 // pred_check
    _
  $region3: #{critic_forward.3} parent=0 // pred_check_branch
    %9 = sbr.rel (0) target = $region5
  $region4: #{critic_forward.3} parent=0 // pred_region
    _
  $region5: #{critic_forward.3} parent=0 // pred_fallthru
    _
  // Predicated region
  $region6: #{critic_forward.3} parent=0 // pred_check
    _
  $region7: #{critic_forward.3} parent=0 // pred_check_branch
    %11 = sbr.rel (0) target = $region9
  $region8: #{critic_forward.3} parent=0 // pred_region
    _
  $region9: #{critic_forward.3} parent=0 // pred_fallthru
    _
  // Predicated region
  $region10: #{critic_forward.3} parent=0 // pred_check
    _
  $region11: #{critic_forward.3} parent=0 // pred_check_branch
    %13 = sbr.rel (0) target = $region13
  $region12: #{critic_forward.3} parent=0 // pred_region
    _
  $region13: #{critic_forward.3} parent=0 // pred_fallthru
    _
  %v15 = vld [vmem:[%s1] sm:$0xf]
  %v16 = vld [vmem:[%s1 + $0x4] sm:$0xf]
  %v17 = vld [vmem:[%s1 + $0x8] sm:$0xf]
  %v18 = vld [vmem:[%s1 + $0xc] sm:$0xf]
  %v19 = vld [vmem:[%s1 + $0x10] sm:$0xf]
  %v20 = vld [vmem:[%s1 + $0x14] sm:$0xf]
  %v21 = vld [vmem:[%s1 + $0x18] sm:$0xf]
  %v22 = vld [vmem:[%s1 + $0x1c] sm:$0xf]
  %v23 = vld [vmem:[%s1 + $0x20] sm:$0xf]
  %v24 = vld [vmem:[%s1 + $0x24] sm:$0xf]
  %v25 = vld [vmem:[%s1 + $0x28] sm:$0xf]
  %v26 = vld [vmem:[%s1 + $0x2c] sm:$0xf]
  %v27 = vld [vmem:[%s1 + $0x30] sm:$0xf]
  %v28 = vld [vmem:[%s1 + $0x34] sm:$0xf]
  %v29 = vld [vmem:[%s1 + $0x38] sm:$0xf]
  %v30 = vld [vmem:[%s1 + $0x3c] sm:$0xf]
  %v31 = vld [vmem:[%s1 + $0x40] sm:$0xf]
  %v32 = vld [vmem:[%s1 + $0x44] sm:$0xf]
  %v33 = vld [vmem:[%s1 + $0x48] sm:$0xf]
  %v34 = vld [vmem:[%s1 + $0x4c] sm:$0xf]
  %v35 = vld [vmem:[%s1 + $0x50] sm:$0xf]
  %v36 = vld [vmem:[%s1 + $0x54] sm:$0xf]
  %v37 = vld [vmem:[%s1 + $0x58] sm:$0xf]
  %v38 = vld [vmem:[%s1 + $0x5c] sm:$0xf]
  %v39 = vld [vmem:[%s1 + $0x60] sm:$0xf]
  %v40 = vld [vmem:[%s1 + $0x64] sm:$0xf]
  %v41 = vld [vmem:[%s1 + $0x68] sm:$0xf]
  %v42 = vld [vmem:[%s1 + $0x6c] sm:$0xf]
  %v43 = vld [vmem:[%s1 + $0x70] sm:$0xf]
  %v44 = vld [vmem:[%s1 + $0x74] sm:$0xf]
  %v45 = vld [vmem:[%s1 + $0x78] sm:$0xf]
  %v46 = vld [vmem:[%s1 + $0x7c] sm:$0xf]
  %v47 = vld [vmem:[%s0] sm:$0xff]
  %v48 = vld [vmem:[%s0 + $0x8] sm:$0xff]
  %v49 = vld [vmem:[%s0 + $0x10] sm:$0xff]
  %v50 = vld [vmem:[%s0 + $0x18] sm:$0xff]
  %v51 = vld [vmem:[%s0 + $0x20] sm:$0xff]
  %v52 = vld [vmem:[%s0 + $0x28] sm:$0xff]
  %v53 = vld [vmem:[%s0 + $0x30] sm:$0xff]
  %v54 = vld [vmem:[%s0 + $0x38] sm:$0xff]
  %v55 = vld [vmem:[%s0 + $0x40] sm:$0xff]
  %v56 = vld [vmem:[%s0 + $0x48] sm:$0xff]
  %v57 = vld [vmem:[%s0 + $0x50] sm:$0xff]
  %v58 = vld [vmem:[%s0 + $0x58] sm:$0xff]
  %v59 = vld [vmem:[%s0 + $0x60] sm:$0xff]
  %v60 = vld [vmem:[%s0 + $0x68] sm:$0xff]
  %v61 = vld [vmem:[%s0 + $0x70] sm:$0xff]
  %v62 = vld [vmem:[%s0 + $0x78] sm:$0xff]
  %v63 = vld [vmem:[%s0 + $0x80] sm:$0xff]
  %v64 = vld [vmem:[%s0 + $0x88] sm:$0xff]
  %v65 = vld [vmem:[%s0 + $0x90] sm:$0xff]
  %v66 = vld [vmem:[%s0 + $0x98] sm:$0xff]
  %v67 = vld [vmem:[%s0 + $0xa0] sm:$0xff]
  %v68 = vld [vmem:[%s0 + $0xa8] sm:$0xff]
  %v69 = vld [vmem:[%s0 + $0xb0] sm:$0xff]
  %v70 = vld [vmem:[%s0 + $0xb8] sm:$0xff]
  %v71 = vld [vmem:[%s0 + $0xc0] sm:$0xff]
  %v72 = vld [vmem:[%s0 + $0xc8] sm:$0xff]
  %v73 = vld [vmem:[%s0 + $0xd0] sm:$0xff]
  %v74 = vld [vmem:[%s0 + $0xd8] sm:$0xff]
  %v75 = vld [vmem:[%s0 + $0xe0] sm:$0xff]
  %v76 = vld [vmem:[%s0 + $0xe8] sm:$0xff]
  %v77 = vld [vmem:[%s0 + $0xf0] sm:$0xff]
  %v78 = vld [vmem:[%s0 + $0xf8] sm:$0xff]
  %v79 = vld [vmem:[%s0 + $0x100] sm:$0xff]
  %v80 = vld [vmem:[%s0 + $0x108] sm:$0xff]
  %v81 = vld [vmem:[%s0 + $0x110] sm:$0xff]
  %v82 = vld [vmem:[%s0 + $0x118] sm:$0xff]
  %v83 = vld [vmem:[%s0 + $0x120] sm:$0xff]
  %v84 = vld [vmem:[%s0 + $0x128] sm:$0xff]
  %v85 = vld [vmem:[%s0 + $0x130] sm:$0xff]
  %v86 = vld [vmem:[%s0 + $0x138] sm:$0xff]
  %v87 = vld [vmem:[%s0 + $0x140] sm:$0xff]
  %v88 = vld [vmem:[%s0 + $0x148] sm:$0xff]
  %v89 = vld [vmem:[%s0 + $0x150] sm:$0xff]
  %v90 = vld [vmem:[%s0 + $0x158] sm:$0xff]
  %v91 = vld [vmem:[%s0 + $0x160] sm:$0xff]
  %v92 = vld [vmem:[%s0 + $0x168] sm:$0xff]
  %v93 = vld [vmem:[%s0 + $0x170] sm:$0xff]
  %v94 = vld [vmem:[%s0 + $0x178] sm:$0xff]
  %v95 = vld [vmem:[%s0 + $0x180] sm:$0xff]
  %v96 = vld [vmem:[%s0 + $0x188] sm:$0xff]
  %v97 = vld [vmem:[%s0 + $0x190] sm:$0xff]
  %v98 = vld [vmem:[%s0 + $0x198] sm:$0xff]
  %v99 = vld [vmem:[%s0 + $0x1a0] sm:$0xff]
  %v100 = vld [vmem:[%s0 + $0x1a8] sm:$0xff]
  %v101 = vld [vmem:[%s0 + $0x1b0] sm:$0xff]
  %v102 = vld [vmem:[%s0 + $0x1b8] sm:$0xff]
  %v103 = vld [vmem:[%s0 + $0x1c0] sm:$0xff]
  %v104 = vld [vmem:[%s0 + $0x1c8] sm:$0xff]
  %v105 = vld [vmem:[%s0 + $0x1d0] sm:$0xff]
  %v106 = vld [vmem:[%s0 + $0x1d8] sm:$0xff]
  %v107 = vld [vmem:[%s0 + $0x1e0] sm:$0xff]
  %v108 = vld [vmem:[%s0 + $0x1e8] sm:$0xff]
  %v109 = vld [vmem:[%s0 + $0x1f0] sm:$0xff]
  %v110 = vld [vmem:[%s0 + $0x1f8] sm:$0xff]
  %v111 = vld [vmem:[%s0 + $0x200] sm:$0xff]
  %v112 = vld [vmem:[%s0 + $0x208] sm:$0xff]
  %v113 = vld [vmem:[%s0 + $0x210] sm:$0xff]
  %v114 = vld [vmem:[%s0 + $0x218] sm:$0xff]
  %v115 = vld [vmem:[%s0 + $0x220] sm:$0xff]
  %v116 = vld [vmem:[%s0 + $0x228] sm:$0xff]
  %v117 = vld [vmem:[%s0 + $0x230] sm:$0xff]
  %v118 = vld [vmem:[%s0 + $0x238] sm:$0xff]
  %v119 = vld [vmem:[%s0 + $0x240] sm:$0xff]
  %v120 = vld [vmem:[%s0 + $0x248] sm:$0xff]
  %v121 = vld [vmem:[%s0 + $0x250] sm:$0xff]
  %v122 = vld [vmem:[%s0 + $0x258] sm:$0xff]
  %v123 = vld [vmem:[%s0 + $0x260] sm:$0xff]
  %v124 = vld [vmem:[%s0 + $0x268] sm:$0xff]
  %v125 = vld [vmem:[%s0 + $0x270] sm:$0xff]
  %v126 = vld [vmem:[%s0 + $0x278] sm:$0xff]
  %v127 = vld [vmem:[%s0 + $0x280] sm:$0xff]
  %v128 = vld [vmem:[%s0 + $0x288] sm:$0xff]
  %v129 = vld [vmem:[%s0 + $0x290] sm:$0xff]
  %v130 = vld [vmem:[%s0 + $0x298] sm:$0xff]
  %v131 = vld [vmem:[%s0 + $0x2a0] sm:$0xff]
  %v132 = vld [vmem:[%s0 + $0x2a8] sm:$0xff]
  %v133 = vld [vmem:[%s0 + $0x2b0] sm:$0xff]
  %v134 = vld [vmem:[%s0 + $0x2b8] sm:$0xff]
  %v135 = vld [vmem:[%s0 + $0x2c0] sm:$0xff]
  %v136 = vld [vmem:[%s0 + $0x2c8] sm:$0xff]
  %v137 = vld [vmem:[%s0 + $0x2d0] sm:$0xff]
  %v138 = vld [vmem:[%s0 + $0x2d8] sm:$0xff]
  %v139 = vld [vmem:[%s0 + $0x2e0] sm:$0xff]
  %v140 = vld [vmem:[%s0 + $0x2e8] sm:$0xff]
  %v141 = vld [vmem:[%s0 + $0x2f0] sm:$0xff]
  %v142 = vld [vmem:[%s0 + $0x2f8] sm:$0xff]
  %v143 = vld [vmem:[%s0 + $0x300] sm:$0xff]
  %v144 = vld [vmem:[%s0 + $0x308] sm:$0xff]
  %v145 = vld [vmem:[%s0 + $0x310] sm:$0xff]
  %v146 = vld [vmem:[%s0 + $0x318] sm:$0xff]
  %v147 = vld [vmem:[%s0 + $0x320] sm:$0xff]
  %v148 = vld [vmem:[%s0 + $0x328] sm:$0xff]
  %v149 = vld [vmem:[%s0 + $0x330] sm:$0xff]
  %v150 = vld [vmem:[%s0 + $0x338] sm:$0xff]
  %v255 = vunpack.c.l.b16 %v47
  %v256 = vunpack.c.h.b16 %v47
  %v257 = vunpack.c.l.b16 %v48
  %v258 = vunpack.c.h.b16 %v48
  %v259 = vunpack.c.l.b16 %v49
  %v260 = vunpack.c.h.b16 %v49
  %v261 = vunpack.c.l.b16 %v50
  %v262 = vunpack.c.h.b16 %v50
  %v263 = vunpack.c.l.b16 %v51
  %v264 = vunpack.c.h.b16 %v51
  %v265 = vunpack.c.l.b16 %v52
  %v266 = vunpack.c.h.b16 %v52
  %v267 = vunpack.c.l.b16 %v53
  %v268 = vunpack.c.h.b16 %v53
  %v269 = vunpack.c.l.b16 %v54
  %v270 = vunpack.c.h.b16 %v54
  %v271 = vunpack.c.l.b16 %v55
  %v272 = vunpack.c.h.b16 %v55
  %v273 = vunpack.c.l.b16 %v56
  %v274 = vunpack.c.h.b16 %v56
  %v275 = vunpack.c.l.b16 %v57
  %v276 = vunpack.c.h.b16 %v57
  %v277 = vunpack.c.l.b16 %v58
  %v278 = vunpack.c.h.b16 %v58
  %v279 = vunpack.c.l.b16 %v59
  %v280 = vunpack.c.h.b16 %v59
  %v281 = vunpack.c.l.b16 %v60
  %v282 = vunpack.c.h.b16 %v60
  %v283 = vunpack.c.l.b16 %v61
  %v284 = vunpack.c.h.b16 %v61
  %v285 = vunpack.c.l.b16 %v62
  %v286 = vunpack.c.h.b16 %v62
  %v287 = vunpack.c.l.b16 %v63
  %v288 = vunpack.c.h.b16 %v63
  %v289 = vunpack.c.l.b16 %v64
  %v290 = vunpack.c.h.b16 %v64
  %v291 = vunpack.c.l.b16 %v65
  %v292 = vunpack.c.h.b16 %v65
  %v293 = vunpack.c.l.b16 %v66
  %v294 = vunpack.c.h.b16 %v66
  %v295 = vunpack.c.l.b16 %v67
  %v296 = vunpack.c.h.b16 %v67
  %v297 = vunpack.c.l.b16 %v68
  %v298 = vunpack.c.h.b16 %v68
  %v299 = vunpack.c.l.b16 %v69
  %v300 = vunpack.c.h.b16 %v69
  %v301 = vunpack.c.l.b16 %v70
  %v302 = vunpack.c.h.b16 %v70
  %v303 = vunpack.c.l.b16 %v71
  %v304 = vunpack.c.h.b16 %v71
  %v305 = vunpack.c.l.b16 %v72
  %v306 = vunpack.c.h.b16 %v72
  %v307 = vunpack.c.l.b16 %v73
  %v308 = vunpack.c.h.b16 %v73
  %v309 = vunpack.c.l.b16 %v74
  %v310 = vunpack.c.h.b16 %v74
  %v311 = vunpack.c.l.b16 %v75
  %v312 = vunpack.c.h.b16 %v75
  %v313 = vunpack.c.l.b16 %v76
  %v314 = vunpack.c.h.b16 %v76
  %v315 = vunpack.c.l.b16 %v77
  %v316 = vunpack.c.h.b16 %v77
  %v317 = vunpack.c.l.b16 %v78
  %v318 = vunpack.c.h.b16 %v78
  %v319 = vunpack.c.l.b16 %v79
  %v320 = vunpack.c.h.b16 %v79
  %v321 = vunpack.c.l.b16 %v80
  %v322 = vunpack.c.h.b16 %v80
  %v323 = vunpack.c.l.b16 %v81
  %v324 = vunpack.c.h.b16 %v81
  %v325 = vunpack.c.l.b16 %v82
  %v326 = vunpack.c.h.b16 %v82
  %v327 = vunpack.c.l.b16 %v83
  %v328 = vunpack.c.h.b16 %v83
  %v329 = vunpack.c.l.b16 %v84
  %v330 = vunpack.c.h.b16 %v84
  %v331 = vunpack.c.l.b16 %v85
  %v332 = vunpack.c.h.b16 %v85
  %v333 = vunpack.c.l.b16 %v86
  %v334 = vunpack.c.h.b16 %v86
  %v335 = vunpack.c.l.b16 %v87
  %v336 = vunpack.c.h.b16 %v87
  %v337 = vunpack.c.l.b16 %v88
  %v338 = vunpack.c.h.b16 %v88
  %v339 = vunpack.c.l.b16 %v89
  %v340 = vunpack.c.h.b16 %v89
  %v341 = vunpack.c.l.b16 %v90
  %v342 = vunpack.c.h.b16 %v90
  %v343 = vunpack.c.l.b16 %v91
  %v344 = vunpack.c.h.b16 %v91
  %v345 = vunpack.c.l.b16 %v92
  %v346 = vunpack.c.h.b16 %v92
  %v347 = vunpack.c.l.b16 %v93
  %v348 = vunpack.c.h.b16 %v93
  %v349 = vunpack.c.l.b16 %v94
  %v350 = vunpack.c.h.b16 %v94
  %v351 = vunpack.c.l.b16 %v95
  %v352 = vunpack.c.h.b16 %v95
  %v353 = vunpack.c.l.b16 %v96
  %v354 = vunpack.c.h.b16 %v96
  %v355 = vunpack.c.l.b16 %v97
  %v356 = vunpack.c.h.b16 %v97
  %v357 = vunpack.c.l.b16 %v98
  %v358 = vunpack.c.h.b16 %v98
  %v359 = vunpack.c.l.b16 %v99
  %v360 = vunpack.c.h.b16 %v99
  %v361 = vunpack.c.l.b16 %v100
  %v362 = vunpack.c.h.b16 %v100
  %v363 = vunpack.c.l.b16 %v101
  %v364 = vunpack.c.h.b16 %v101
  %v365 = vunpack.c.l.b16 %v102
  %v366 = vunpack.c.h.b16 %v102
  %v367 = vunpack.c.l.b16 %v103
  %v368 = vunpack.c.h.b16 %v103
  %v369 = vunpack.c.l.b16 %v104
  %v370 = vunpack.c.h.b16 %v104
  %v371 = vunpack.c.l.b16 %v105
  %v372 = vunpack.c.h.b16 %v105
  %v373 = vunpack.c.l.b16 %v106
  %v374 = vunpack.c.h.b16 %v106
  %v375 = vunpack.c.l.b16 %v107
  %v376 = vunpack.c.h.b16 %v107
  %v377 = vunpack.c.l.b16 %v108
  %v378 = vunpack.c.h.b16 %v108
  %v379 = vunpack.c.l.b16 %v109
  %v380 = vunpack.c.h.b16 %v109
  %v381 = vunpack.c.l.b16 %v110
  %v382 = vunpack.c.h.b16 %v110
  %v383 = vunpack.c.l.b16 %v111
  %v384 = vunpack.c.h.b16 %v111
  %v385 = vunpack.c.l.b16 %v112
  %v386 = vunpack.c.h.b16 %v112
  %v387 = vunpack.c.l.b16 %v113
  %v388 = vunpack.c.h.b16 %v113
  %v389 = vunpack.c.l.b16 %v114
  %v390 = vunpack.c.h.b16 %v114
  %v391 = vunpack.c.l.b16 %v115
  %v392 = vunpack.c.h.b16 %v115
  %v393 = vunpack.c.l.b16 %v116
  %v394 = vunpack.c.h.b16 %v116
  %v395 = vunpack.c.l.b16 %v117
  %v396 = vunpack.c.h.b16 %v117
  %v397 = vunpack.c.l.b16 %v118
  %v398 = vunpack.c.h.b16 %v118
  %v399 = vunpack.c.l.b16 %v119
  %v400 = vunpack.c.h.b16 %v119
  %v401 = vunpack.c.l.b16 %v120
  %v402 = vunpack.c.h.b16 %v120
  %v403 = vunpack.c.l.b16 %v121
  %v404 = vunpack.c.h.b16 %v121
  %v405 = vunpack.c.l.b16 %v122
  %v406 = vunpack.c.h.b16 %v122
  %v407 = vunpack.c.l.b16 %v123
  %v408 = vunpack.c.h.b16 %v123
  %v409 = vunpack.c.l.b16 %v124
  %v410 = vunpack.c.h.b16 %v124
  %v411 = vunpack.c.l.b16 %v125
  %v412 = vunpack.c.h.b16 %v125
  %v413 = vunpack.c.l.b16 %v126
  %v414 = vunpack.c.h.b16 %v126
  %v415 = vunpack.c.l.b16 %v127
  %v416 = vunpack.c.h.b16 %v127
  %v417 = vunpack.c.l.b16 %v128
  %v418 = vunpack.c.h.b16 %v128
  %v419 = vunpack.c.l.b16 %v129
  %v420 = vunpack.c.h.b16 %v129
  %v421 = vunpack.c.l.b16 %v130
  %v422 = vunpack.c.h.b16 %v130
  %v423 = vunpack.c.l.b16 %v131
  %v424 = vunpack.c.h.b16 %v131
  %v425 = vunpack.c.l.b16 %v132
  %v426 = vunpack.c.h.b16 %v132
  %v427 = vunpack.c.l.b16 %v133
  %v428 = vunpack.c.h.b16 %v133
  %v429 = vunpack.c.l.b16 %v134
  %v430 = vunpack.c.h.b16 %v134
  %v431 = vunpack.c.l.b16 %v135
  %v432 = vunpack.c.h.b16 %v135
  %v433 = vunpack.c.l.b16 %v136
  %v434 = vunpack.c.h.b16 %v136
  %v435 = vunpack.c.l.b16 %v137
  %v436 = vunpack.c.h.b16 %v137
  %v437 = vunpack.c.l.b16 %v138
  %v438 = vunpack.c.h.b16 %v138
  %v439 = vunpack.c.l.b16 %v139
  %v440 = vunpack.c.h.b16 %v139
  %v441 = vunpack.c.l.b16 %v140
  %v442 = vunpack.c.h.b16 %v140
  %v443 = vunpack.c.l.b16 %v141
  %v444 = vunpack.c.h.b16 %v141
  %v445 = vunpack.c.l.b16 %v142
  %v446 = vunpack.c.h.b16 %v142
  %v447 = vunpack.c.l.b16 %v143
  %v448 = vunpack.c.h.b16 %v143
  %v449 = vunpack.c.l.b16 %v144
  %v450 = vunpack.c.h.b16 %v144
  %v451 = vunpack.c.l.b16 %v145
  %v452 = vunpack.c.h.b16 %v145
  %v453 = vunpack.c.l.b16 %v146
  %v454 = vunpack.c.h.b16 %v146
  %v455 = vunpack.c.l.b16 %v147
  %v456 = vunpack.c.h.b16 %v147
  %v457 = vunpack.c.l.b16 %v148
  %v458 = vunpack.c.h.b16 %v148
  %v459 = vunpack.c.l.b16 %v149
  %v460 = vunpack.c.h.b16 %v149
  %v461 = vunpack.c.l.b16 %v150
  %v462 = vunpack.c.h.b16 %v150
  %v463 = vpack.c.b16 %v257, %v255
  %v464 = vpack.c.b16 %v258, %v256
  %v465 = vpack.c.b16 %v261, %v259
  %v466 = vpack.c.b16 %v262, %v260
  %v467 = vpack.c.b16 %v265, %v263
  %v468 = vpack.c.b16 %v266, %v264
  %v469 = vpack.c.b16 %v269, %v267
  %v470 = vpack.c.b16 %v270, %v268
  %v471 = vpack.c.b16 %v273, %v271
  %v472 = vpack.c.b16 %v274, %v272
  %v473 = vpack.c.b16 %v277, %v275
  %v474 = vpack.c.b16 %v278, %v276
  %v475 = vpack.c.b16 %v281, %v279
  %v476 = vpack.c.b16 %v282, %v280
  %v477 = vpack.c.b16 %v285, %v283
  %v478 = vpack.c.b16 %v286, %v284
  %v479 = vpack.c.b16 %v289, %v287
  %v480 = vpack.c.b16 %v290, %v288
  %v481 = vpack.c.b16 %v293, %v291
  %v482 = vpack.c.b16 %v294, %v292
  %v483 = vpack.c.b16 %v297, %v295
  %v484 = vpack.c.b16 %v298, %v296
  %v485 = vpack.c.b16 %v301, %v299
  %v486 = vpack.c.b16 %v302, %v300
  %v487 = vpack.c.b16 %v305, %v303
  %v488 = vpack.c.b16 %v306, %v304
  %v489 = vpack.c.b16 %v309, %v307
  %v490 = vpack.c.b16 %v310, %v308
  %v491 = vpack.c.b16 %v313, %v311
  %v492 = vpack.c.b16 %v314, %v312
  %v493 = vpack.c.b16 %v317, %v315
  %v494 = vpack.c.b16 %v318, %v316
  %v495 = vpack.c.b16 %v321, %v319
  %v496 = vpack.c.b16 %v322, %v320
  %v497 = vpack.c.b16 %v325, %v323
  %v498 = vpack.c.b16 %v326, %v324
  %v499 = vpack.c.b16 %v329, %v327
  %v500 = vpack.c.b16 %v330, %v328
  %v501 = vpack.c.b16 %v333, %v331
  %v502 = vpack.c.b16 %v334, %v332
  %v503 = vpack.c.b16 %v337, %v335
  %v504 = vpack.c.b16 %v338, %v336
  %v505 = vpack.c.b16 %v341, %v339
  %v506 = vpack.c.b16 %v342, %v340
  %v507 = vpack.c.b16 %v345, %v343
  %v508 = vpack.c.b16 %v346, %v344
  %v509 = vpack.c.b16 %v349, %v347
  %v510 = vpack.c.b16 %v350, %v348
  %v511 = vpack.c.b16 %v353, %v351
  %v512 = vpack.c.b16 %v354, %v352
  %v513 = vpack.c.b16 %v357, %v355
  %v514 = vpack.c.b16 %v358, %v356
  %v515 = vpack.c.b16 %v361, %v359
  %v516 = vpack.c.b16 %v362, %v360
  %v517 = vpack.c.b16 %v365, %v363
  %v518 = vpack.c.b16 %v366, %v364
  %v519 = vpack.c.b16 %v369, %v367
  %v520 = vpack.c.b16 %v370, %v368
  %v521 = vpack.c.b16 %v373, %v371
  %v522 = vpack.c.b16 %v374, %v372
  %v523 = vpack.c.b16 %v377, %v375
  %v524 = vpack.c.b16 %v378, %v376
  %v525 = vpack.c.b16 %v381, %v379
  %v526 = vpack.c.b16 %v382, %v380
  %v527 = vpack.c.b16 %v385, %v383
  %v528 = vpack.c.b16 %v386, %v384
  %v529 = vpack.c.b16 %v389, %v387
  %v530 = vpack.c.b16 %v390, %v388
  %v531 = vpack.c.b16 %v393, %v391
  %v532 = vpack.c.b16 %v394, %v392
  %v533 = vpack.c.b16 %v397, %v395
  %v534 = vpack.c.b16 %v398, %v396
  %v535 = vpack.c.b16 %v401, %v399
  %v536 = vpack.c.b16 %v402, %v400
  %v537 = vpack.c.b16 %v405, %v403
  %v538 = vpack.c.b16 %v406, %v404
  %v539 = vpack.c.b16 %v409, %v407
  %v540 = vpack.c.b16 %v410, %v408
  %v541 = vpack.c.b16 %v413, %v411
  %v542 = vpack.c.b16 %v414, %v412
  %v543 = vpack.c.b16 %v417, %v415
  %v544 = vpack.c.b16 %v418, %v416
  %v545 = vpack.c.b16 %v421, %v419
  %v546 = vpack.c.b16 %v422, %v420
  %v547 = vpack.c.b16 %v425, %v423
  %v548 = vpack.c.b16 %v426, %v424
  %v549 = vpack.c.b16 %v429, %v427
  %v550 = vpack.c.b16 %v430, %v428
  %v551 = vpack.c.b16 %v433, %v431
  %v552 = vpack.c.b16 %v434, %v432
  %v553 = vpack.c.b16 %v437, %v435
  %v554 = vpack.c.b16 %v438, %v436
  %v555 = vpack.c.b16 %v441, %v439
  %v556 = vpack.c.b16 %v442, %v440
  %v557 = vpack.c.b16 %v445, %v443
  %v558 = vpack.c.b16 %v446, %v444
  %v559 = vpack.c.b16 %v449, %v447
  %v560 = vpack.c.b16 %v450, %v448
  %v561 = vpack.c.b16 %v453, %v451
  %v562 = vpack.c.b16 %v454, %v452
  %v563 = vpack.c.b16 %v457, %v455
  %v564 = vpack.c.b16 %v458, %v456
  %v565 = vpack.c.b16 %v461, %v459
  %v566 = vpack.c.b16 %v462, %v460
  %v703 = vunpack.c.l.b16 %v15
  %v704 = vunpack.c.l.b16 %v16
  %v705 = vunpack.c.l.b16 %v17
  %v706 = vunpack.c.l.b16 %v18
  %v707 = vunpack.c.l.b16 %v19
  %v708 = vunpack.c.l.b16 %v20
  %v709 = vunpack.c.l.b16 %v21
  %v710 = vunpack.c.l.b16 %v22
  %v711 = vunpack.c.l.b16 %v23
  %v712 = vunpack.c.l.b16 %v24
  %v713 = vunpack.c.l.b16 %v25
  %v714 = vunpack.c.l.b16 %v26
  %v715 = vunpack.c.l.b16 %v27
  %v716 = vunpack.c.l.b16 %v28
  %v717 = vunpack.c.l.b16 %v29
  %v718 = vunpack.c.l.b16 %v30
  %v719 = vunpack.c.l.b16 %v31
  %v720 = vunpack.c.l.b16 %v32
  %v721 = vunpack.c.l.b16 %v33
  %v722 = vunpack.c.l.b16 %v34
  %v723 = vunpack.c.l.b16 %v35
  %v724 = vunpack.c.l.b16 %v36
  %v725 = vunpack.c.l.b16 %v37
  %v726 = vunpack.c.l.b16 %v38
  %v727 = vunpack.c.l.b16 %v39
  %v728 = vunpack.c.l.b16 %v40
  %v729 = vunpack.c.l.b16 %v41
  %v730 = vunpack.c.l.b16 %v42
  %v731 = vunpack.c.l.b16 %v43
  %v732 = vunpack.c.l.b16 %v44
  %v733 = vunpack.c.l.b16 %v45
  %v734 = vunpack.c.l.b16 %v46
  %v735 = vpack.c.b16 %v704, %v703
  %v736 = vpack.c.b16 %v706, %v705
  %v737 = vpack.c.b16 %v708, %v707
  %v738 = vpack.c.b16 %v710, %v709
  %v739 = vpack.c.b16 %v712, %v711
  %v740 = vpack.c.b16 %v714, %v713
  %v741 = vpack.c.b16 %v716, %v715
  %v742 = vpack.c.b16 %v718, %v717
  %v743 = vpack.c.b16 %v720, %v719
  %v744 = vpack.c.b16 %v722, %v721
  %v745 = vpack.c.b16 %v724, %v723
  %v746 = vpack.c.b16 %v726, %v725
  %v747 = vpack.c.b16 %v728, %v727
  %v748 = vpack.c.b16 %v730, %v729
  %v749 = vpack.c.b16 %v732, %v731
  %v750 = vpack.c.b16 %v734, %v733
  %767 = vmatprep.subr.bf16.mxu0 0
  %768 = vmatpush1.bf16.msra.mxu0 %v735
  %769 = vmatprep.subr.bf16.mxu0 0
  %770 = vmatpush1.bf16.msra.mxu0 %v736
  %771 = vmatprep.subr.bf16.mxu0 0
  %772 = vmatpush1.bf16.msra.mxu0 %v737
  %773 = vmatprep.subr.bf16.mxu0 0
  %774 = vmatpush1.bf16.msra.mxu0 %v738
  %775 = vmatprep.subr.bf16.mxu0 0
  %776 = vmatpush1.bf16.msra.mxu0 %v739
  %777 = vmatprep.subr.bf16.mxu0 0
  %778 = vmatpush1.bf16.msra.mxu0 %v740
  %779 = vmatprep.subr.bf16.mxu0 0
  %780 = vmatpush1.bf16.msra.mxu0 %v741
  %781 = vmatprep.subr.bf16.mxu0 0
  %782 = vmatpush1.bf16.msra.mxu0 %v742
  %783 = vmatprep.subr.bf16.mxu0 0
  %784 = vmatpush1.bf16.msra.mxu0 %v743
  %785 = vmatprep.subr.bf16.mxu0 0
  %786 = vmatpush1.bf16.msra.mxu0 %v744
  %787 = vmatprep.subr.bf16.mxu0 0
  %788 = vmatpush1.bf16.msra.mxu0 %v745
  %789 = vmatprep.subr.bf16.mxu0 0
  %790 = vmatpush1.bf16.msra.mxu0 %v746
  %791 = vmatprep.subr.bf16.mxu0 0
  %792 = vmatpush1.bf16.msra.mxu0 %v747
  %793 = vmatprep.subr.bf16.mxu0 0
  %794 = vmatpush1.bf16.msra.mxu0 %v748
  %795 = vmatprep.subr.bf16.mxu0 0
  %796 = vmatpush1.bf16.msra.mxu0 %v749
  %797 = vmatprep.subr.bf16.mxu0 0
  %798 = vmatpush1.bf16.msra.mxu0 %v750
  %799 = vmatprep.mubr.bf16.mxu0 %v464
  %800 = vmatmul.mubr.bf16.gmra.mrb[0].mxu0 %v463
  %v801 = vpop.f32.mrb[0].mxu0
  %v802 = vadd.f32 0.0, %v801
  %v803 = vpop.f32.mrb[0].mxu0
  %v804 = vpop.f32.mrb[0].mxu0
  %v805 = vadd.f32 0.0, %v804
  %v806 = vpop.f32.mrb[0].mxu0
  %807 = vmatprep.mubr.bf16.mxu0 %v466
  %808 = vmatmul.mubr.bf16.gmra.mrb[0].mxu0 %v465
  %v809 = vpop.f32.mrb[0].mxu0
  %v810 = vadd.f32 0.0, %v809
  %v811 = vpop.f32.mrb[0].mxu0
  %v812 = vpop.f32.mrb[0].mxu0
  %v813 = vadd.f32 0.0, %v812
  %v814 = vpop.f32.mrb[0].mxu0
  %815 = vmatprep.mubr.bf16.mxu0 %v468
  %816 = vmatmul.mubr.bf16.gmra.mrb[0].mxu0 %v467
  %v817 = vpop.f32.mrb[0].mxu0
  %v818 = vadd.f32 0.0, %v817
  %v819 = vpop.f32.mrb[0].mxu0
  %v820 = vpop.f32.mrb[0].mxu0
  %v821 = vadd.f32 0.0, %v820
  %v822 = vpop.f32.mrb[0].mxu0
  %823 = vmatprep.mubr.bf16.mxu0 %v470
  %824 = vmatmul.mubr.bf16.gmra.mrb[0].mxu0 %v469
  %v825 = vpop.f32.mrb[0].mxu0
  %v826 = vadd.f32 0.0, %v825
  %v827 = vpop.f32.mrb[0].mxu0
  %v828 = vpop.f32.mrb[0].mxu0
  %v829 = vadd.f32 0.0, %v828
  %v830 = vpop.f32.mrb[0].mxu0
  %831 = vmatprep.mubr.bf16.mxu0 %v472
  %832 = vmatmul.mubr.bf16.gmra.mrb[0].mxu0 %v471
  %v833 = vpop.f32.mrb[0].mxu0
  %v834 = vadd.f32 0.0, %v833
  %v835 = vpop.f32.mrb[0].mxu0
  %v836 = vpop.f32.mrb[0].mxu0
  %v837 = vadd.f32 0.0, %v836
  %v838 = vpop.f32.mrb[0].mxu0
  %839 = vmatprep.mubr.bf16.mxu0 %v474
  %840 = vmatmul.mubr.bf16.gmra.mrb[0].mxu0 %v473
  %v841 = vpop.f32.mrb[0].mxu0
  %v842 = vadd.f32 0.0, %v841
  %v843 = vpop.f32.mrb[0].mxu0
  %v844 = vpop.f32.mrb[0].mxu0
  %v845 = vadd.f32 0.0, %v844
  %v846 = vpop.f32.mrb[0].mxu0
  %847 = vmatprep.mubr.bf16.mxu0 %v476
  %848 = vmatmul.mubr.bf16.gmra.mrb[0].mxu0 %v475
  %v849 = vpop.f32.mrb[0].mxu0
  %v850 = vadd.f32 0.0, %v849
  %v851 = vpop.f32.mrb[0].mxu0
  %v852 = vpop.f32.mrb[0].mxu0
  %v853 = vadd.f32 0.0, %v852
  %v854 = vpop.f32.mrb[0].mxu0
  %855 = vmatprep.mubr.bf16.mxu0 %v478
  %856 = vmatmul.mubr.bf16.gmra.mrb[0].mxu0 %v477
  %v857 = vpop.f32.mrb[0].mxu0
  %v858 = vadd.f32 0.0, %v857
  %v859 = vpop.f32.mrb[0].mxu0
  %v860 = vpop.f32.mrb[0].mxu0
  %v861 = vadd.f32 0.0, %v860
  %v862 = vpop.f32.mrb[0].mxu0
  %863 = vmatprep.mubr.bf16.mxu0 %v480
  %864 = vmatmul.mubr.bf16.gmra.mrb[0].mxu0 %v479
  %v865 = vpop.f32.mrb[0].mxu0
  %v866 = vadd.f32 0.0, %v865
  %v867 = vpop.f32.mrb[0].mxu0
  %v868 = vpop.f32.mrb[0].mxu0
  %v869 = vadd.f32 0.0, %v868
  %v870 = vpop.f32.mrb[0].mxu0
  %871 = vmatprep.mubr.bf16.mxu0 %v482
  %872 = vmatmul.mubr.bf16.gmra.mrb[0].mxu0 %v481
  %v873 = vpop.f32.mrb[0].mxu0
  %v874 = vadd.f32 0.0, %v873
  %v875 = vpop.f32.mrb[0].mxu0
  %v876 = vpop.f32.mrb[0].mxu0
  %v877 = vadd.f32 0.0, %v876
  %v878 = vpop.f32.mrb[0].mxu0
  %879 = vmatprep.mubr.bf16.mxu0 %v484
  %880 = vmatmul.mubr.bf16.gmra.mrb[0].mxu0 %v483
  %v881 = vpop.f32.mrb[0].mxu0
  %v882 = vadd.f32 0.0, %v881
  %v883 = vpop.f32.mrb[0].mxu0
  %v884 = vpop.f32.mrb[0].mxu0
  %v885 = vadd.f32 0.0, %v884
  %v886 = vpop.f32.mrb[0].mxu0
  %887 = vmatprep.mubr.bf16.mxu0 %v486
  %888 = vmatmul.mubr.bf16.gmra.mrb[0].mxu0 %v485
  %v889 = vpop.f32.mrb[0].mxu0
  %v890 = vadd.f32 0.0, %v889
  %v891 = vpop.f32.mrb[0].mxu0
  %v892 = vpop.f32.mrb[0].mxu0
  %v893 = vadd.f32 0.0, %v892
  %v894 = vpop.f32.mrb[0].mxu0
  %895 = vmatprep.mubr.bf16.mxu0 %v488
  %896 = vmatmul.mubr.bf16.gmra.mrb[0].mxu0 %v487
  %v897 = vpop.f32.mrb[0].mxu0
  %v898 = vadd.f32 0.0, %v897
  %v899 = vpop.f32.mrb[0].mxu0
  %v900 = vpop.f32.mrb[0].mxu0
  %v901 = vadd.f32 0.0, %v900
  %v902 = vpop.f32.mrb[0].mxu0
  %903 = vmatprep.mubr.bf16.mxu0 %v490
  %904 = vmatmul.mubr.bf16.gmra.mrb[0].mxu0 %v489
  %v905 = vpop.f32.mrb[0].mxu0
  %v906 = vadd.f32 0.0, %v905
  %v907 = vpop.f32.mrb[0].mxu0
  %v908 = vpop.f32.mrb[0].mxu0
  %v909 = vadd.f32 0.0, %v908
  %v910 = vpop.f32.mrb[0].mxu0
  %911 = vmatprep.mubr.bf16.mxu0 %v492
  %912 = vmatmul.mubr.bf16.gmra.mrb[0].mxu0 %v491
  %v913 = vpop.f32.mrb[0].mxu0
  %v914 = vadd.f32 0.0, %v913
  %v915 = vpop.f32.mrb[0].mxu0
  %v916 = vpop.f32.mrb[0].mxu0
  %v917 = vadd.f32 0.0, %v916
  %v918 = vpop.f32.mrb[0].mxu0
  %919 = vmatprep.mubr.bf16.mxu0 %v494
  %920 = vmatmul.mubr.bf16.gmra.mrb[0].mxu0 %v493
  %v921 = vpop.f32.mrb[0].mxu0
  %v922 = vadd.f32 0.0, %v921
  %v923 = vpop.f32.mrb[0].mxu0
  %v924 = vpop.f32.mrb[0].mxu0
  %v925 = vadd.f32 0.0, %v924
  %v926 = vpop.f32.mrb[0].mxu0
  %927 = vmatprep.mubr.bf16.mxu0 %v496
  %928 = vmatmul.mubr.bf16.gmra.mrb[0].mxu0 %v495
  %v929 = vpop.f32.mrb[0].mxu0
  %v930 = vadd.f32 0.0, %v929
  %v931 = vpop.f32.mrb[0].mxu0
  %v932 = vpop.f32.mrb[0].mxu0
  %v933 = vadd.f32 0.0, %v932
  %v934 = vpop.f32.mrb[0].mxu0
  %935 = vmatprep.mubr.bf16.mxu0 %v498
  %936 = vmatmul.mubr.bf16.gmra.mrb[0].mxu0 %v497
  %v937 = vpop.f32.mrb[0].mxu0
  %v938 = vadd.f32 0.0, %v937
  %v939 = vpop.f32.mrb[0].mxu0
  %v940 = vpop.f32.mrb[0].mxu0
  %v941 = vadd.f32 0.0, %v940
  %v942 = vpop.f32.mrb[0].mxu0
  %943 = vmatprep.mubr.bf16.mxu0 %v500
  %944 = vmatmul.mubr.bf16.gmra.mrb[0].mxu0 %v499
  %v945 = vpop.f32.mrb[0].mxu0
  %v946 = vadd.f32 0.0, %v945
  %v947 = vpop.f32.mrb[0].mxu0
  %v948 = vpop.f32.mrb[0].mxu0
  %v949 = vadd.f32 0.0, %v948
  %v950 = vpop.f32.mrb[0].mxu0
  %951 = vmatprep.mubr.bf16.mxu0 %v502
  %952 = vmatmul.mubr.bf16.gmra.mrb[0].mxu0 %v501
  %v953 = vpop.f32.mrb[0].mxu0
  %v954 = vadd.f32 0.0, %v953
  %v955 = vpop.f32.mrb[0].mxu0
  %v956 = vpop.f32.mrb[0].mxu0
  %v957 = vadd.f32 0.0, %v956
  %v958 = vpop.f32.mrb[0].mxu0
  %959 = vmatprep.mubr.bf16.mxu0 %v504
  %960 = vmatmul.mubr.bf16.gmra.mrb[0].mxu0 %v503
  %v961 = vpop.f32.mrb[0].mxu0
  %v962 = vadd.f32 0.0, %v961
  %v963 = vpop.f32.mrb[0].mxu0
  %v964 = vpop.f32.mrb[0].mxu0
  %v965 = vadd.f32 0.0, %v964
  %v966 = vpop.f32.mrb[0].mxu0
  %967 = vmatprep.mubr.bf16.mxu0 %v506
  %968 = vmatmul.mubr.bf16.gmra.mrb[0].mxu0 %v505
  %v969 = vpop.f32.mrb[0].mxu0
  %v970 = vadd.f32 0.0, %v969
  %v971 = vpop.f32.mrb[0].mxu0
  %v972 = vpop.f32.mrb[0].mxu0
  %v973 = vadd.f32 0.0, %v972
  %v974 = vpop.f32.mrb[0].mxu0
  %975 = vmatprep.mubr.bf16.mxu0 %v508
  %976 = vmatmul.mubr.bf16.gmra.mrb[0].mxu0 %v507
  %v977 = vpop.f32.mrb[0].mxu0
  %v978 = vadd.f32 0.0, %v977
  %v979 = vpop.f32.mrb[0].mxu0
  %v980 = vpop.f32.mrb[0].mxu0
  %v981 = vadd.f32 0.0, %v980
  %v982 = vpop.f32.mrb[0].mxu0
  %983 = vmatprep.mubr.bf16.mxu0 %v510
  %984 = vmatmul.mubr.bf16.gmra.mrb[0].mxu0 %v509
  %v985 = vpop.f32.mrb[0].mxu0
  %v986 = vadd.f32 0.0, %v985
  %v987 = vpop.f32.mrb[0].mxu0
  %v988 = vpop.f32.mrb[0].mxu0
  %v989 = vadd.f32 0.0, %v988
  %v990 = vpop.f32.mrb[0].mxu0
  %991 = vmatprep.mubr.bf16.mxu0 %v512
  %992 = vmatmul.mubr.bf16.gmra.mrb[0].mxu0 %v511
  %v993 = vpop.f32.mrb[0].mxu0
  %v994 = vadd.f32 0.0, %v993
  %v995 = vpop.f32.mrb[0].mxu0
  %v996 = vpop.f32.mrb[0].mxu0
  %v997 = vadd.f32 0.0, %v996
  %v998 = vpop.f32.mrb[0].mxu0
  %999 = vmatprep.mubr.bf16.mxu0 %v514
  %1000 = vmatmul.mubr.bf16.gmra.mrb[0].mxu0 %v513
  %v1001 = vpop.f32.mrb[0].mxu0
  %v1002 = vadd.f32 0.0, %v1001
  %v1003 = vpop.f32.mrb[0].mxu0
  %v1004 = vpop.f32.mrb[0].mxu0
  %v1005 = vadd.f32 0.0, %v1004
  %v1006 = vpop.f32.mrb[0].mxu0
  %1007 = vmatprep.mubr.bf16.mxu0 %v516
  %1008 = vmatmul.mubr.bf16.gmra.mrb[0].mxu0 %v515
  %v1009 = vpop.f32.mrb[0].mxu0
  %v1010 = vadd.f32 0.0, %v1009
  %v1011 = vpop.f32.mrb[0].mxu0
  %v1012 = vpop.f32.mrb[0].mxu0
  %v1013 = vadd.f32 0.0, %v1012
  %v1014 = vpop.f32.mrb[0].mxu0
  %1015 = vmatprep.mubr.bf16.mxu0 %v518
  %1016 = vmatmul.mubr.bf16.gmra.mrb[0].mxu0 %v517
  %v1017 = vpop.f32.mrb[0].mxu0
  %v1018 = vadd.f32 0.0, %v1017
  %v1019 = vpop.f32.mrb[0].mxu0
  %v1020 = vpop.f32.mrb[0].mxu0
  %v1021 = vadd.f32 0.0, %v1020
  %v1022 = vpop.f32.mrb[0].mxu0
  %1023 = vmatprep.mubr.bf16.mxu0 %v520
  %1024 = vmatmul.mubr.bf16.gmra.mrb[0].mxu0 %v519
  %v1025 = vpop.f32.mrb[0].mxu0
  %v1026 = vadd.f32 0.0, %v1025
  %v1027 = vpop.f32.mrb[0].mxu0
  %v1028 = vpop.f32.mrb[0].mxu0
  %v1029 = vadd.f32 0.0, %v1028
  %v1030 = vpop.f32.mrb[0].mxu0
  %1031 = vmatprep.mubr.bf16.mxu0 %v522
  %1032 = vmatmul.mubr.bf16.gmra.mrb[0].mxu0 %v521
  %v1033 = vpop.f32.mrb[0].mxu0
  %v1034 = vadd.f32 0.0, %v1033
  %v1035 = vpop.f32.mrb[0].mxu0
  %v1036 = vpop.f32.mrb[0].mxu0
  %v1037 = vadd.f32 0.0, %v1036
  %v1038 = vpop.f32.mrb[0].mxu0
  %1039 = vmatprep.mubr.bf16.mxu0 %v524
  %1040 = vmatmul.mubr.bf16.gmra.mrb[0].mxu0 %v523
  %v1041 = vpop.f32.mrb[0].mxu0
  %v1042 = vadd.f32 0.0, %v1041
  %v1043 = vpop.f32.mrb[0].mxu0
  %v1044 = vpop.f32.mrb[0].mxu0
  %v1045 = vadd.f32 0.0, %v1044
  %v1046 = vpop.f32.mrb[0].mxu0
  %1047 = vmatprep.mubr.bf16.mxu0 %v526
  %1048 = vmatmul.mubr.bf16.gmra.mrb[0].mxu0 %v525
  %v1049 = vpop.f32.mrb[0].mxu0
  %v1050 = vadd.f32 0.0, %v1049
  %v1051 = vpop.f32.mrb[0].mxu0
  %v1052 = vpop.f32.mrb[0].mxu0
  %v1053 = vadd.f32 0.0, %v1052
  %v1054 = vpop.f32.mrb[0].mxu0
  %1055 = vmatprep.mubr.bf16.mxu0 %v528
  %1056 = vmatmul.mubr.bf16.gmra.mrb[0].mxu0 %v527
  %v1057 = vpop.f32.mrb[0].mxu0
  %v1058 = vadd.f32 0.0, %v1057
  %v1059 = vpop.f32.mrb[0].mxu0
  %v1060 = vpop.f32.mrb[0].mxu0
  %v1061 = vadd.f32 0.0, %v1060
  %v1062 = vpop.f32.mrb[0].mxu0
  %1063 = vmatprep.mubr.bf16.mxu0 %v530
  %1064 = vmatmul.mubr.bf16.gmra.mrb[0].mxu0 %v529
  %v1065 = vpop.f32.mrb[0].mxu0
  %v1066 = vadd.f32 0.0, %v1065
  %v1067 = vpop.f32.mrb[0].mxu0
  %v1068 = vpop.f32.mrb[0].mxu0
  %v1069 = vadd.f32 0.0, %v1068
  %v1070 = vpop.f32.mrb[0].mxu0
  %1071 = vmatprep.mubr.bf16.mxu0 %v532
  %1072 = vmatmul.mubr.bf16.gmra.mrb[0].mxu0 %v531
  %v1073 = vpop.f32.mrb[0].mxu0
  %v1074 = vadd.f32 0.0, %v1073
  %v1075 = vpop.f32.mrb[0].mxu0
  %v1076 = vpop.f32.mrb[0].mxu0
  %v1077 = vadd.f32 0.0, %v1076
  %v1078 = vpop.f32.mrb[0].mxu0
  %1079 = vmatprep.mubr.bf16.mxu0 %v534
  %1080 = vmatmul.mubr.bf16.gmra.mrb[0].mxu0 %v533
  %v1081 = vpop.f32.mrb[0].mxu0
  %v1082 = vadd.f32 0.0, %v1081
  %v1083 = vpop.f32.mrb[0].mxu0
  %v1084 = vpop.f32.mrb[0].mxu0
  %v1085 = vadd.f32 0.0, %v1084
  %v1086 = vpop.f32.mrb[0].mxu0
  %1087 = vmatprep.mubr.bf16.mxu0 %v536
  %1088 = vmatmul.mubr.bf16.gmra.mrb[0].mxu0 %v535
  %v1089 = vpop.f32.mrb[0].mxu0
  %v1090 = vadd.f32 0.0, %v1089
  %v1091 = vpop.f32.mrb[0].mxu0
  %v1092 = vpop.f32.mrb[0].mxu0
  %v1093 = vadd.f32 0.0, %v1092
  %v1094 = vpop.f32.mrb[0].mxu0
  %1095 = vmatprep.mubr.bf16.mxu0 %v538
  %1096 = vmatmul.mubr.bf16.gmra.mrb[0].mxu0 %v537
  %v1097 = vpop.f32.mrb[0].mxu0
  %v1098 = vadd.f32 0.0, %v1097
  %v1099 = vpop.f32.mrb[0].mxu0
  %v1100 = vpop.f32.mrb[0].mxu0
  %v1101 = vadd.f32 0.0, %v1100
  %v1102 = vpop.f32.mrb[0].mxu0
  %1103 = vmatprep.mubr.bf16.mxu0 %v540
  %1104 = vmatmul.mubr.bf16.gmra.mrb[0].mxu0 %v539
  %v1105 = vpop.f32.mrb[0].mxu0
  %v1106 = vadd.f32 0.0, %v1105
  %v1107 = vpop.f32.mrb[0].mxu0
  %v1108 = vpop.f32.mrb[0].mxu0
  %v1109 = vadd.f32 0.0, %v1108
  %v1110 = vpop.f32.mrb[0].mxu0
  %1111 = vmatprep.mubr.bf16.mxu0 %v542
  %1112 = vmatmul.mubr.bf16.gmra.mrb[0].mxu0 %v541
  %v1113 = vpop.f32.mrb[0].mxu0
  %v1114 = vadd.f32 0.0, %v1113
  %v1115 = vpop.f32.mrb[0].mxu0
  %v1116 = vpop.f32.mrb[0].mxu0
  %v1117 = vadd.f32 0.0, %v1116
  %v1118 = vpop.f32.mrb[0].mxu0
  %1119 = vmatprep.mubr.bf16.mxu0 %v544
  %1120 = vmatmul.mubr.bf16.gmra.mrb[0].mxu0 %v543
  %v1121 = vpop.f32.mrb[0].mxu0
  %v1122 = vadd.f32 0.0, %v1121
  %v1123 = vpop.f32.mrb[0].mxu0
  %v1124 = vpop.f32.mrb[0].mxu0
  %v1125 = vadd.f32 0.0, %v1124
  %v1126 = vpop.f32.mrb[0].mxu0
  %1127 = vmatprep.mubr.bf16.mxu0 %v546
  %1128 = vmatmul.mubr.bf16.gmra.mrb[0].mxu0 %v545
  %v1129 = vpop.f32.mrb[0].mxu0
  %v1130 = vadd.f32 0.0, %v1129
  %v1131 = vpop.f32.mrb[0].mxu0
  %v1132 = vpop.f32.mrb[0].mxu0
  %v1133 = vadd.f32 0.0, %v1132
  %v1134 = vpop.f32.mrb[0].mxu0
  %1135 = vmatprep.mubr.bf16.mxu0 %v548
  %1136 = vmatmul.mubr.bf16.gmra.mrb[0].mxu0 %v547
  %v1137 = vpop.f32.mrb[0].mxu0
  %v1138 = vadd.f32 0.0, %v1137
  %v1139 = vpop.f32.mrb[0].mxu0
  %v1140 = vpop.f32.mrb[0].mxu0
  %v1141 = vadd.f32 0.0, %v1140
  %v1142 = vpop.f32.mrb[0].mxu0
  %1143 = vmatprep.mubr.bf16.mxu0 %v550
  %1144 = vmatmul.mubr.bf16.gmra.mrb[0].mxu0 %v549
  %v1145 = vpop.f32.mrb[0].mxu0
  %v1146 = vadd.f32 0.0, %v1145
  %v1147 = vpop.f32.mrb[0].mxu0
  %v1148 = vpop.f32.mrb[0].mxu0
  %v1149 = vadd.f32 0.0, %v1148
  %v1150 = vpop.f32.mrb[0].mxu0
  %1151 = vmatprep.mubr.bf16.mxu0 %v552
  %1152 = vmatmul.mubr.bf16.gmra.mrb[0].mxu0 %v551
  %v1153 = vpop.f32.mrb[0].mxu0
  %v1154 = vadd.f32 0.0, %v1153
  %v1155 = vpop.f32.mrb[0].mxu0
  %v1156 = vpop.f32.mrb[0].mxu0
  %v1157 = vadd.f32 0.0, %v1156
  %v1158 = vpop.f32.mrb[0].mxu0
  %1159 = vmatprep.mubr.bf16.mxu0 %v554
  %1160 = vmatmul.mubr.bf16.gmra.mrb[0].mxu0 %v553
  %v1161 = vpop.f32.mrb[0].mxu0
  %v1162 = vadd.f32 0.0, %v1161
  %v1163 = vpop.f32.mrb[0].mxu0
  %v1164 = vpop.f32.mrb[0].mxu0
  %v1165 = vadd.f32 0.0, %v1164
  %v1166 = vpop.f32.mrb[0].mxu0
  %1167 = vmatprep.mubr.bf16.mxu0 %v556
  %1168 = vmatmul.mubr.bf16.gmra.mrb[0].mxu0 %v555
  %v1169 = vpop.f32.mrb[0].mxu0
  %v1170 = vadd.f32 0.0, %v1169
  %v1171 = vpop.f32.mrb[0].mxu0
  %v1172 = vpop.f32.mrb[0].mxu0
  %v1173 = vadd.f32 0.0, %v1172
  %v1174 = vpop.f32.mrb[0].mxu0
  %1175 = vmatprep.mubr.bf16.mxu0 %v558
  %1176 = vmatmul.mubr.bf16.gmra.mrb[0].mxu0 %v557
  %v1177 = vpop.f32.mrb[0].mxu0
  %v1178 = vadd.f32 0.0, %v1177
  %v1179 = vpop.f32.mrb[0].mxu0
  %v1180 = vpop.f32.mrb[0].mxu0
  %v1181 = vadd.f32 0.0, %v1180
  %v1182 = vpop.f32.mrb[0].mxu0
  %1183 = vmatprep.mubr.bf16.mxu0 %v560
  %1184 = vmatmul.mubr.bf16.gmra.mrb[0].mxu0 %v559
  %v1185 = vpop.f32.mrb[0].mxu0
  %v1186 = vadd.f32 0.0, %v1185
  %v1187 = vpop.f32.mrb[0].mxu0
  %v1188 = vpop.f32.mrb[0].mxu0
  %v1189 = vadd.f32 0.0, %v1188
  %v1190 = vpop.f32.mrb[0].mxu0
  %1191 = vmatprep.mubr.bf16.mxu0 %v562
  %1192 = vmatmul.mubr.bf16.gmra.mrb[0].mxu0 %v561
  %v1193 = vpop.f32.mrb[0].mxu0
  %v1194 = vadd.f32 0.0, %v1193
  %v1195 = vpop.f32.mrb[0].mxu0
  %v1196 = vpop.f32.mrb[0].mxu0
  %v1197 = vadd.f32 0.0, %v1196
  %v1198 = vpop.f32.mrb[0].mxu0
  %1199 = vmatprep.mubr.bf16.mxu0 %v564
  %1200 = vmatmul.mubr.bf16.gmra.mrb[0].mxu0 %v563
  %v1201 = vpop.f32.mrb[0].mxu0
  %v1202 = vadd.f32 0.0, %v1201
  %v1203 = vpop.f32.mrb[0].mxu0
  %v1204 = vpop.f32.mrb[0].mxu0
  %v1205 = vadd.f32 0.0, %v1204
  %v1206 = vpop.f32.mrb[0].mxu0
  %1207 = vmatprep.mubr.bf16.mxu0 %v566
  %1208 = vmatmul.mubr.bf16.gmra.mrb[0].mxu0 %v565
  %v1209 = vpop.f32.mrb[0].mxu0
  %v1210 = vadd.f32 0.0, %v1209
  %v1211 = vpop.f32.mrb[0].mxu0
  %v1212 = vpop.f32.mrb[0].mxu0
  %v1213 = vadd.f32 0.0, %v1212
  %v1214 = vpop.f32.mrb[0].mxu0
  %1215 = vdwg.mxu0
  %v1216 = vmax.f32 %v802, %v906
  %v1217 = vmax.f32 %v805, %v909
  %v1218 = vmax.f32 %v810, %v914
  %v1219 = vmax.f32 %v813, %v917
  %v1220 = vmax.f32 %v818, %v922
  %v1221 = vmax.f32 %v821, %v925
  %v1222 = vmax.f32 %v826, %v930
  %v1223 = vmax.f32 %v829, %v933
  %v1224 = vmax.f32 %v834, %v938
  %v1225 = vmax.f32 %v837, %v941
  %v1226 = vmax.f32 %v842, %v946
  %v1227 = vmax.f32 %v845, %v949
  %v1228 = vmax.f32 %v850, %v954
  %v1229 = vmax.f32 %v853, %v957
  %v1230 = vmax.f32 %v858, %v962
  %v1231 = vmax.f32 %v861, %v965
  %v1232 = vmax.f32 %v866, %v970
  %v1233 = vmax.f32 %v869, %v973
  %v1234 = vmax.f32 %v874, %v978
  %v1235 = vmax.f32 %v877, %v981
  %v1236 = vmax.f32 %v882, %v986
  %v1237 = vmax.f32 %v885, %v989
  %v1238 = vmax.f32 %v890, %v994
  %v1239 = vmax.f32 %v893, %v997
  %v1240 = vmax.f32 %v898, %v1002
  %v1241 = vmax.f32 %v901, %v1005
  %v1242 = vmax.f32 %v1216, %v1010
  %v1243 = vmax.f32 %v1217, %v1013
  %v1244 = vmax.f32 %v1218, %v1018
  %v1245 = vmax.f32 %v1219, %v1021
  %v1246 = vmax.f32 %v1220, %v1026
  %v1247 = vmax.f32 %v1221, %v1029
  %v1248 = vmax.f32 %v1222, %v1034
  %v1249 = vmax.f32 %v1223, %v1037
  %v1250 = vmax.f32 %v1224, %v1042
  %v1251 = vmax.f32 %v1225, %v1045
  %v1252 = vmax.f32 %v1226, %v1050
  %v1253 = vmax.f32 %v1227, %v1053
  %v1254 = vmax.f32 %v1228, %v1058
  %v1255 = vmax.f32 %v1229, %v1061
  %v1256 = vmax.f32 %v1230, %v1066
  %v1257 = vmax.f32 %v1231, %v1069
  %v1258 = vmax.f32 %v1232, %v1074
  %v1259 = vmax.f32 %v1233, %v1077
  %v1260 = vmax.f32 %v1234, %v1082
  %v1261 = vmax.f32 %v1235, %v1085
  %v1262 = vmax.f32 %v1236, %v1090
  %v1263 = vmax.f32 %v1237, %v1093
  %v1264 = vmax.f32 %v1238, %v1098
  %v1265 = vmax.f32 %v1239, %v1101
  %v1266 = vmax.f32 %v1240, %v1106
  %v1267 = vmax.f32 %v1241, %v1109
  %v1268 = vmax.f32 %v1242, %v1114
  %v1269 = vmax.f32 %v1243, %v1117
  %v1270 = vmax.f32 %v1244, %v1122
  %v1271 = vmax.f32 %v1245, %v1125
  %v1272 = vmax.f32 %v1246, %v1130
  %v1273 = vmax.f32 %v1247, %v1133
  %v1274 = vmax.f32 %v1248, %v1138
  %v1275 = vmax.f32 %v1249, %v1141
  %v1276 = vmax.f32 %v1250, %v1146
  %v1277 = vmax.f32 %v1251, %v1149
  %v1278 = vmax.f32 %v1252, %v1154
  %v1279 = vmax.f32 %v1253, %v1157
  %v1280 = vmax.f32 %v1254, %v1162
  %v1281 = vmax.f32 %v1255, %v1165
  %v1282 = vmax.f32 %v1256, %v1170
  %v1283 = vmax.f32 %v1257, %v1173
  %v1284 = vmax.f32 %v1258, %v1178
  %v1285 = vmax.f32 %v1259, %v1181
  %v1286 = vmax.f32 %v1260, %v1186
  %v1287 = vmax.f32 %v1261, %v1189
  %v1288 = vmax.f32 %v1262, %v1194
  %v1289 = vmax.f32 %v1263, %v1197
  %v1290 = vmax.f32 %v1264, %v1202
  %v1291 = vmax.f32 %v1265, %v1205
  %v1292 = vmax.f32 %v1266, %v1210
  %v1293 = vmax.f32 %v1267, %v1213
  %v1294 = vld [vmem:[%s2] sm:$0x1]
  %v1296 = vlaneseq
  %v1297 = vshrl.u32 %v1296, 7
  %v1298 = vsub.s32 0, %v1297
  %v1299 = vrot.slane %v1294, %v1298
  %v1301 = vadd.f32 %v1268, %v1299
  %v1302 = vadd.f32 %v1269, %v1299
  %v1303 = vadd.f32 %v1270, %v1299
  %v1304 = vadd.f32 %v1271, %v1299
  %v1305 = vadd.f32 %v1272, %v1299
  %v1306 = vadd.f32 %v1273, %v1299
  %v1307 = vadd.f32 %v1274, %v1299
  %v1308 = vadd.f32 %v1275, %v1299
  %v1309 = vadd.f32 %v1276, %v1299
  %v1310 = vadd.f32 %v1277, %v1299
  %v1311 = vadd.f32 %v1278, %v1299
  %v1312 = vadd.f32 %v1279, %v1299
  %v1313 = vadd.f32 %v1280, %v1299
  %v1314 = vadd.f32 %v1281, %v1299
  %v1315 = vadd.f32 %v1282, %v1299
  %v1316 = vadd.f32 %v1283, %v1299
  %v1317 = vadd.f32 %v1284, %v1299
  %v1318 = vadd.f32 %v1285, %v1299
  %v1319 = vadd.f32 %v1286, %v1299
  %v1320 = vadd.f32 %v1287, %v1299
  %v1321 = vadd.f32 %v1288, %v1299
  %v1322 = vadd.f32 %v1289, %v1299
  %v1323 = vadd.f32 %v1290, %v1299
  %v1324 = vadd.f32 %v1291, %v1299
  %v1325 = vadd.f32 %v1292, %v1299
  %v1326 = vadd.f32 %v1293, %v1299
  %v1327 = vmax.f32 %v1301, 0.0
  %v1328 = vmax.f32 %v1302, 0.0
  %v1329 = vmax.f32 %v1303, 0.0
  %v1330 = vmax.f32 %v1304, 0.0
  %v1331 = vmax.f32 %v1305, 0.0
  %v1332 = vmax.f32 %v1306, 0.0
  %v1333 = vmax.f32 %v1307, 0.0
  %v1334 = vmax.f32 %v1308, 0.0
  %v1335 = vmax.f32 %v1309, 0.0
  %v1336 = vmax.f32 %v1310, 0.0
  %v1337 = vmax.f32 %v1311, 0.0
  %v1338 = vmax.f32 %v1312, 0.0
  %v1339 = vmax.f32 %v1313, 0.0
  %v1340 = vmax.f32 %v1314, 0.0
  %v1341 = vmax.f32 %v1315, 0.0
  %v1342 = vmax.f32 %v1316, 0.0
  %v1343 = vmax.f32 %v1317, 0.0
  %v1344 = vmax.f32 %v1318, 0.0
  %v1345 = vmax.f32 %v1319, 0.0
  %v1346 = vmax.f32 %v1320, 0.0
  %v1347 = vmax.f32 %v1321, 0.0
  %v1348 = vmax.f32 %v1322, 0.0
  %v1349 = vmax.f32 %v1323, 0.0
  %v1350 = vmax.f32 %v1324, 0.0
  %v1351 = vmax.f32 %v1325, 0.0
  %v1352 = vmax.f32 %v1326, 0.0
  %v1353 = vpack.c.bf16 %v1328, %v1327
  %v1354 = vpack.c.bf16 %v1330, %v1329
  %v1355 = vpack.c.bf16 %v1332, %v1331
  %v1356 = vpack.c.bf16 %v1334, %v1333
  %v1357 = vpack.c.bf16 %v1336, %v1335
  %v1358 = vpack.c.bf16 %v1338, %v1337
  %v1359 = vpack.c.bf16 %v1340, %v1339
  %v1360 = vpack.c.bf16 %v1342, %v1341
  %v1361 = vpack.c.bf16 %v1344, %v1343
  %v1362 = vpack.c.bf16 %v1346, %v1345
  %v1363 = vpack.c.bf16 %v1348, %v1347
  %v1364 = vpack.c.bf16 %v1350, %v1349
  %v1365 = vpack.c.bf16 %v1352, %v1351
  %v1379 = vunpack.c.l.b16 %v1353
  %v1380 = vunpack.c.h.b16 %v1353
  %v1381 = vunpack.c.l.b16 %v1354
  %v1382 = vunpack.c.h.b16 %v1354
  %v1383 = vunpack.c.l.b16 %v1355
  %v1384 = vunpack.c.h.b16 %v1355
  %v1385 = vunpack.c.l.b16 %v1356
  %v1386 = vunpack.c.h.b16 %v1356
  %v1387 = vunpack.c.l.b16 %v1357
  %v1388 = vunpack.c.h.b16 %v1357
  %v1389 = vunpack.c.l.b16 %v1358
  %v1390 = vunpack.c.h.b16 %v1358
  %v1391 = vunpack.c.l.b16 %v1359
  %v1392 = vunpack.c.h.b16 %v1359
  %v1393 = vunpack.c.l.b16 %v1360
  %v1394 = vunpack.c.h.b16 %v1360
  %v1395 = vunpack.c.l.b16 %v1361
  %v1396 = vunpack.c.h.b16 %v1361
  %v1397 = vunpack.c.l.b16 %v1362
  %v1398 = vunpack.c.h.b16 %v1362
  %v1399 = vunpack.c.l.b16 %v1363
  %v1400 = vunpack.c.h.b16 %v1363
  %v1401 = vunpack.c.l.b16 %v1364
  %v1402 = vunpack.c.h.b16 %v1364
  %v1403 = vunpack.c.l.b16 %v1365
  %v1404 = vunpack.c.h.b16 %v1365
  %v1405 = vpack.c.b16 %v1379, %v1379
  %v1406 = vpack.c.b16 %v1380, %v1380
  %v1407 = vpack.c.b16 %v1381, %v1381
  %v1408 = vpack.c.b16 %v1382, %v1382
  %v1409 = vpack.c.b16 %v1383, %v1383
  %v1410 = vpack.c.b16 %v1384, %v1384
  %v1411 = vpack.c.b16 %v1385, %v1385
  %v1412 = vpack.c.b16 %v1386, %v1386
  %v1413 = vpack.c.b16 %v1387, %v1387
  %v1414 = vpack.c.b16 %v1388, %v1388
  %v1415 = vpack.c.b16 %v1389, %v1389
  %v1416 = vpack.c.b16 %v1390, %v1390
  %v1417 = vpack.c.b16 %v1391, %v1391
  %v1418 = vpack.c.b16 %v1392, %v1392
  %v1419 = vpack.c.b16 %v1393, %v1393
  %v1420 = vpack.c.b16 %v1394, %v1394
  %v1421 = vpack.c.b16 %v1395, %v1395
  %v1422 = vpack.c.b16 %v1396, %v1396
  %v1423 = vpack.c.b16 %v1397, %v1397
  %v1424 = vpack.c.b16 %v1398, %v1398
  %v1425 = vpack.c.b16 %v1399, %v1399
  %v1426 = vpack.c.b16 %v1400, %v1400
  %v1427 = vpack.c.b16 %v1401, %v1401
  %v1428 = vpack.c.b16 %v1402, %v1402
  %v1429 = vpack.c.b16 %v1403, %v1403
  %v1430 = vpack.c.b16 %v1404, %v1404
  %vm1457 = vcmask 519168
  %1458 = vst.msk [vmem:[%s3] sm:$0xf] %vm1457, %v1405
  %1459 = vst.msk [vmem:[%s3 + $0x4] sm:$0xf] %vm1457, %v1406
  %1460 = vst.msk [vmem:[%s3 + $0x8] sm:$0xf] %vm1457, %v1407
  %1461 = vst.msk [vmem:[%s3 + $0xc] sm:$0xf] %vm1457, %v1408
  %1462 = vst.msk [vmem:[%s3 + $0x10] sm:$0xf] %vm1457, %v1409
  %1463 = vst.msk [vmem:[%s3 + $0x14] sm:$0xf] %vm1457, %v1410
  %1464 = vst.msk [vmem:[%s3 + $0x18] sm:$0xf] %vm1457, %v1411
  %1465 = vst.msk [vmem:[%s3 + $0x1c] sm:$0xf] %vm1457, %v1412
  %1466 = vst.msk [vmem:[%s3 + $0x20] sm:$0xf] %vm1457, %v1413
  %1467 = vst.msk [vmem:[%s3 + $0x24] sm:$0xf] %vm1457, %v1414
  %1468 = vst.msk [vmem:[%s3 + $0x28] sm:$0xf] %vm1457, %v1415
  %1469 = vst.msk [vmem:[%s3 + $0x2c] sm:$0xf] %vm1457, %v1416
  %1470 = vst.msk [vmem:[%s3 + $0x30] sm:$0xf] %vm1457, %v1417
  %1471 = vst.msk [vmem:[%s3 + $0x34] sm:$0xf] %vm1457, %v1418
  %1472 = vst.msk [vmem:[%s3 + $0x38] sm:$0xf] %vm1457, %v1419
  %1473 = vst.msk [vmem:[%s3 + $0x3c] sm:$0xf] %vm1457, %v1420
  %1474 = vst.msk [vmem:[%s3 + $0x40] sm:$0xf] %vm1457, %v1421
  %1475 = vst.msk [vmem:[%s3 + $0x44] sm:$0xf] %vm1457, %v1422
  %1476 = vst.msk [vmem:[%s3 + $0x48] sm:$0xf] %vm1457, %v1423
  %1477 = vst.msk [vmem:[%s3 + $0x4c] sm:$0xf] %vm1457, %v1424
  %1478 = vst.msk [vmem:[%s3 + $0x50] sm:$0xf] %vm1457, %v1425
  %1479 = vst.msk [vmem:[%s3 + $0x54] sm:$0xf] %vm1457, %v1426
  %1480 = vst.msk [vmem:[%s3 + $0x58] sm:$0xf] %vm1457, %v1427
  %1481 = vst.msk [vmem:[%s3 + $0x5c] sm:$0xf] %vm1457, %v1428
  %1482 = vst.msk [vmem:[%s3 + $0x60] sm:$0xf] %vm1457, %v1429
  %1483 = vst.msk [vmem:[%s3 + $0x64] sm:$0xf] %vm1457, %v1430
  // Predicated region
  $region14: #{critic_forward.3} parent=0 // pred_check
    _
  $region15: #{critic_forward.3} parent=0 // pred_check_branch
    %1485 = sbr.rel (0) target = $region17
  $region16: #{critic_forward.3} parent=0 // pred_region
    _
  $region17: #{critic_forward.3} parent=0 // pred_fallthru
    _
  // Predicated region
  $region18: #{critic_forward.3} parent=0 // pred_check
    _
  $region19: #{critic_forward.3} parent=0 // pred_check_branch
    %1487 = sbr.rel (0) target = $region21
  $region20: #{critic_forward.3} parent=0 // pred_region
    _
  $region21: #{critic_forward.3} parent=0 // pred_fallthru
    _

// kernel: critic_forward.4
$region0: #{critic_forward.4}
  #allocation0 [shape = 'u32[]', space=smem, size = 0x4, offset = 0x4, fixed_abs, tag = 'smem constant byte address 0x4 - core index']
  #allocation1 [shape = 'u32[144,128]{1,0:T(1,128)}', space=vmem, size = 0x12000, scoped, tag = 'internal scratch']
  %s0 = inlined_call_operand.vmem [shape: bf16[1,64,1024], index: 0, kind: input, shape index: {}]
  %s1 = inlined_call_operand.vmem [shape: bf16[1024,128], index: 1, kind: input, shape index: {}]
  %s2 = inlined_call_operand.vmem [shape: f32[1,128], index: 2, kind: input, shape index: {}]
  %s3 = inlined_call_operand.vmem [shape: bf16[64,128], index: 3, kind: output, shape index: {}]
  %s4 = sld [smem:[#allocation0]]
  $region22: #{critic_forward.4} parent=0
    _
  %s6 = ssub.s32 1, %s4
  %s7 = scalar_select 0, %s6, %s4
  // Predicated region
  $region2: #{critic_forward.4} parent=0 // pred_check
    _
  $region3: #{critic_forward.4} parent=0 // pred_check_branch
    %9 = sbr.rel (0) target = $region5
  $region4: #{critic_forward.4} parent=0 // pred_region
    _
  $region5: #{critic_forward.4} parent=0 // pred_fallthru
    _
  // Predicated region
  $region6: #{critic_forward.4} parent=0 // pred_check
    _
  $region7: #{critic_forward.4} parent=0 // pred_check_branch
    %11 = sbr.rel (0) target = $region9
  $region8: #{critic_forward.4} parent=0 // pred_region
    _
  $region9: #{critic_forward.4} parent=0 // pred_fallthru
    _
  // Predicated region
  $region10: #{critic_forward.4} parent=0 // pred_check
    _
  $region11: #{critic_forward.4} parent=0 // pred_check_branch
    %13 = sbr.rel (0) target = $region13
  $region12: #{critic_forward.4} parent=0 // pred_region
    _
  $region13: #{critic_forward.4} parent=0 // pred_fallthru
    _
  %v15 = vld [vmem:[%s1] sm:$0xf]
  %v16 = vld [vmem:[%s1 + $0x4] sm:$0xf]
  %v17 = vld [vmem:[%s1 + $0x8] sm:$0xf]
  %v18 = vld [vmem:[%s1 + $0xc] sm:$0xf]
  %v19 = vld [vmem:[%s1 + $0x10] sm:$0xf]
  %v20 = vld [vmem:[%s1 + $0x14] sm:$0xf]
  %v21 = vld [vmem:[%s1 + $0x18] sm:$0xf]
  %v22 = vld [vmem:[%s1 + $0x1c] sm:$0xf]
  %v23 = vld [vmem:[%s1 + $0x20] sm:$0xf]
  %v24 = vld [vmem:[%s1 + $0x24] sm:$0xf]
  %v25 = vld [vmem:[%s1 + $0x28] sm:$0xf]
  %v26 = vld [vmem:[%s1 + $0x2c] sm:$0xf]
  %v27 = vld [vmem:[%s1 + $0x30] sm:$0xf]
  %v28 = vld [vmem:[%s1 + $0x34] sm:$0xf]
  %v29 = vld [vmem:[%s1 + $0x38] sm:$0xf]
  %v30 = vld [vmem:[%s1 + $0x3c] sm:$0xf]
  %v31 = vld [vmem:[%s1 + $0x40] sm:$0xf]
  %v32 = vld [vmem:[%s1 + $0x44] sm:$0xf]
  %v33 = vld [vmem:[%s1 + $0x48] sm:$0xf]
  %v34 = vld [vmem:[%s1 + $0x4c] sm:$0xf]
  %v35 = vld [vmem:[%s1 + $0x50] sm:$0xf]
  %v36 = vld [vmem:[%s1 + $0x54] sm:$0xf]
  %v37 = vld [vmem:[%s1 + $0x58] sm:$0xf]
  %v38 = vld [vmem:[%s1 + $0x5c] sm:$0xf]
  %v39 = vld [vmem:[%s1 + $0x60] sm:$0xf]
  %v40 = vld [vmem:[%s1 + $0x64] sm:$0xf]
  %v41 = vld [vmem:[%s1 + $0x68] sm:$0xf]
  %v42 = vld [vmem:[%s1 + $0x6c] sm:$0xf]
  %v43 = vld [vmem:[%s1 + $0x70] sm:$0xf]
  %v44 = vld [vmem:[%s1 + $0x74] sm:$0xf]
  %v45 = vld [vmem:[%s1 + $0x78] sm:$0xf]
  %v46 = vld [vmem:[%s1 + $0x7c] sm:$0xf]
  %v47 = vld [vmem:[%s1 + $0x80] sm:$0xf]
  %v48 = vld [vmem:[%s1 + $0x84] sm:$0xf]
  %v49 = vld [vmem:[%s1 + $0x88] sm:$0xf]
  %v50 = vld [vmem:[%s1 + $0x8c] sm:$0xf]
  %v51 = vld [vmem:[%s1 + $0x90] sm:$0xf]
  %v52 = vld [vmem:[%s1 + $0x94] sm:$0xf]
  %v53 = vld [vmem:[%s1 + $0x98] sm:$0xf]
  %v54 = vld [vmem:[%s1 + $0x9c] sm:$0xf]
  %v55 = vld [vmem:[%s1 + $0xa0] sm:$0xf]
  %v56 = vld [vmem:[%s1 + $0xa4] sm:$0xf]
  %v57 = vld [vmem:[%s1 + $0xa8] sm:$0xf]
  %v58 = vld [vmem:[%s1 + $0xac] sm:$0xf]
  %v59 = vld [vmem:[%s1 + $0xb0] sm:$0xf]
  %v60 = vld [vmem:[%s1 + $0xb4] sm:$0xf]
  %v61 = vld [vmem:[%s1 + $0xb8] sm:$0xf]
  %v62 = vld [vmem:[%s1 + $0xbc] sm:$0xf]
  %v63 = vld [vmem:[%s1 + $0xc0] sm:$0xf]
  %v64 = vld [vmem:[%s1 + $0xc4] sm:$0xf]
  %v65 = vld [vmem:[%s1 + $0xc8] sm:$0xf]
  %v66 = vld [vmem:[%s1 + $0xcc] sm:$0xf]
  %v67 = vld [vmem:[%s1 + $0xd0] sm:$0xf]
  %v68 = vld [vmem:[%s1 + $0xd4] sm:$0xf]
  %v69 = vld [vmem:[%s1 + $0xd8] sm:$0xf]
  %v70 = vld [vmem:[%s1 + $0xdc] sm:$0xf]
  %v71 = vld [vmem:[%s1 + $0xe0] sm:$0xf]
  %v72 = vld [vmem:[%s1 + $0xe4] sm:$0xf]
  %v73 = vld [vmem:[%s1 + $0xe8] sm:$0xf]
  %v74 = vld [vmem:[%s1 + $0xec] sm:$0xf]
  %v75 = vld [vmem:[%s1 + $0xf0] sm:$0xf]
  %v76 = vld [vmem:[%s1 + $0xf4] sm:$0xf]
  %v77 = vld [vmem:[%s1 + $0xf8] sm:$0xf]
  %v78 = vld [vmem:[%s1 + $0xfc] sm:$0xf]
  %v79 = vld [vmem:[%s1 + $0x100] sm:$0xf]
  %v80 = vld [vmem:[%s1 + $0x104] sm:$0xf]
  %v81 = vld [vmem:[%s1 + $0x108] sm:$0xf]
  %v82 = vld [vmem:[%s1 + $0x10c] sm:$0xf]
  %v83 = vld [vmem:[%s1 + $0x110] sm:$0xf]
  %v84 = vld [vmem:[%s1 + $0x114] sm:$0xf]
  %v85 = vld [vmem:[%s1 + $0x118] sm:$0xf]
  %v86 = vld [vmem:[%s1 + $0x11c] sm:$0xf]
  %v87 = vld [vmem:[%s1 + $0x120] sm:$0xf]
  %v88 = vld [vmem:[%s1 + $0x124] sm:$0xf]
  %v89 = vld [vmem:[%s1 + $0x128] sm:$0xf]
  %v90 = vld [vmem:[%s1 + $0x12c] sm:$0xf]
  %v91 = vld [vmem:[%s1 + $0x130] sm:$0xf]
  %v92 = vld [vmem:[%s1 + $0x134] sm:$0xf]
  %v93 = vld [vmem:[%s1 + $0x138] sm:$0xf]
  %v94 = vld [vmem:[%s1 + $0x13c] sm:$0xf]
  %v95 = vld [vmem:[%s1 + $0x140] sm:$0xf]
  %v96 = vld [vmem:[%s1 + $0x144] sm:$0xf]
  %v97 = vld [vmem:[%s1 + $0x148] sm:$0xf]
  %v98 = vld [vmem:[%s1 + $0x14c] sm:$0xf]
  %v99 = vld [vmem:[%s1 + $0x150] sm:$0xf]
  %v100 = vld [vmem:[%s1 + $0x154] sm:$0xf]
  %v101 = vld [vmem:[%s1 + $0x158] sm:$0xf]
  %v102 = vld [vmem:[%s1 + $0x15c] sm:$0xf]
  %v103 = vld [vmem:[%s1 + $0x160] sm:$0xf]
  %v104 = vld [vmem:[%s1 + $0x164] sm:$0xf]
  %v105 = vld [vmem:[%s1 + $0x168] sm:$0xf]
  %v106 = vld [vmem:[%s1 + $0x16c] sm:$0xf]
  %v107 = vld [vmem:[%s1 + $0x170] sm:$0xf]
  %v108 = vld [vmem:[%s1 + $0x174] sm:$0xf]
  %v109 = vld [vmem:[%s1 + $0x178] sm:$0xf]
  %v110 = vld [vmem:[%s1 + $0x17c] sm:$0xf]
  %v111 = vld [vmem:[%s1 + $0x180] sm:$0xf]
  %v112 = vld [vmem:[%s1 + $0x184] sm:$0xf]
  %v113 = vld [vmem:[%s1 + $0x188] sm:$0xf]
  %v114 = vld [vmem:[%s1 + $0x18c] sm:$0xf]
  %v115 = vld [vmem:[%s1 + $0x190] sm:$0xf]
  %v116 = vld [vmem:[%s1 + $0x194] sm:$0xf]
  %v117 = vld [vmem:[%s1 + $0x198] sm:$0xf]
  %v118 = vld [vmem:[%s1 + $0x19c] sm:$0xf]
  %v119 = vld [vmem:[%s1 + $0x1a0] sm:$0xf]
  %v120 = vld [vmem:[%s1 + $0x1a4] sm:$0xf]
  %v121 = vld [vmem:[%s1 + $0x1a8] sm:$0xf]
  %v122 = vld [vmem:[%s1 + $0x1ac] sm:$0xf]
  %v123 = vld [vmem:[%s1 + $0x1b0] sm:$0xf]
  %v124 = vld [vmem:[%s1 + $0x1b4] sm:$0xf]
  %v125 = vld [vmem:[%s1 + $0x1b8] sm:$0xf]
  %v126 = vld [vmem:[%s1 + $0x1bc] sm:$0xf]
  %v127 = vld [vmem:[%s1 + $0x1c0] sm:$0xf]
  %v128 = vld [vmem:[%s1 + $0x1c4] sm:$0xf]
  %v129 = vld [vmem:[%s1 + $0x1c8] sm:$0xf]
  %v130 = vld [vmem:[%s1 + $0x1cc] sm:$0xf]
  %v131 = vld [vmem:[%s1 + $0x1d0] sm:$0xf]
  %v132 = vld [vmem:[%s1 + $0x1d4] sm:$0xf]
  %v133 = vld [vmem:[%s1 + $0x1d8] sm:$0xf]
  %v134 = vld [vmem:[%s1 + $0x1dc] sm:$0xf]
  %v135 = vld [vmem:[%s1 + $0x1e0] sm:$0xf]
  %v136 = vld [vmem:[%s1 + $0x1e4] sm:$0xf]
  %v137 = vld [vmem:[%s1 + $0x1e8] sm:$0xf]
  %v138 = vld [vmem:[%s1 + $0x1ec] sm:$0xf]
  %v139 = vld [vmem:[%s1 + $0x1f0] sm:$0xf]
  %v140 = vld [vmem:[%s1 + $0x1f4] sm:$0xf]
  %v141 = vld [vmem:[%s1 + $0x1f8] sm:$0xf]
  %v142 = vld [vmem:[%s1 + $0x1fc] sm:$0xf]
  %v143 = vld [vmem:[%s0] sm:$0xff]
  %v144 = vld [vmem:[%s0 + $0x8] sm:$0xff]
  %v145 = vld [vmem:[%s0 + $0x10] sm:$0xff]
  %v146 = vld [vmem:[%s0 + $0x18] sm:$0xff]
  %v147 = vld [vmem:[%s0 + $0x20] sm:$0xff]
  %v148 = vld [vmem:[%s0 + $0x28] sm:$0xff]
  %v149 = vld [vmem:[%s0 + $0x30] sm:$0xff]
  %v150 = vld [vmem:[%s0 + $0x38] sm:$0xff]
  %v151 = vld [vmem:[%s0 + $0x40] sm:$0xff]
  %v152 = vld [vmem:[%s0 + $0x48] sm:$0xff]
  %v153 = vld [vmem:[%s0 + $0x50] sm:$0xff]
  %v154 = vld [vmem:[%s0 + $0x58] sm:$0xff]
  %v155 = vld [vmem:[%s0 + $0x60] sm:$0xff]
  %v156 = vld [vmem:[%s0 + $0x68] sm:$0xff]
  %v157 = vld [vmem:[%s0 + $0x70] sm:$0xff]
  %v158 = vld [vmem:[%s0 + $0x78] sm:$0xff]
  %v159 = vld [vmem:[%s0 + $0x80] sm:$0xff]
  %v160 = vld [vmem:[%s0 + $0x88] sm:$0xff]
  %v161 = vld [vmem:[%s0 + $0x90] sm:$0xff]
  %v162 = vld [vmem:[%s0 + $0x98] sm:$0xff]
  %v163 = vld [vmem:[%s0 + $0xa0] sm:$0xff]
  %v164 = vld [vmem:[%s0 + $0xa8] sm:$0xff]
  %v165 = vld [vmem:[%s0 + $0xb0] sm:$0xff]
  %v166 = vld [vmem:[%s0 + $0xb8] sm:$0xff]
  %v167 = vld [vmem:[%s0 + $0xc0] sm:$0xff]
  %v168 = vld [vmem:[%s0 + $0xc8] sm:$0xff]
  %v169 = vld [vmem:[%s0 + $0xd0] sm:$0xff]
  %v170 = vld [vmem:[%s0 + $0xd8] sm:$0xff]
  %v171 = vld [vmem:[%s0 + $0xe0] sm:$0xff]
  %v172 = vld [vmem:[%s0 + $0xe8] sm:$0xff]
  %v173 = vld [vmem:[%s0 + $0xf0] sm:$0xff]
  %v174 = vld [vmem:[%s0 + $0xf8] sm:$0xff]
  %v175 = vld [vmem:[%s2] sm:$0x1]
  %v177 = vlaneseq
  %v178 = vshrl.u32 %v177, 7
  %v179 = vsub.s32 0, %v178
  %v180 = vrot.slane %v175, %v179
  %v214 = vunpack.c.l.b16 %v143
  %v215 = vunpack.c.h.b16 %v143
  %v216 = vunpack.c.l.b16 %v144
  %v217 = vunpack.c.h.b16 %v144
  %v218 = vunpack.c.l.b16 %v145
  %v219 = vunpack.c.h.b16 %v145
  %v220 = vunpack.c.l.b16 %v146
  %v221 = vunpack.c.h.b16 %v146
  %v222 = vunpack.c.l.b16 %v147
  %v223 = vunpack.c.h.b16 %v147
  %v224 = vunpack.c.l.b16 %v148
  %v225 = vunpack.c.h.b16 %v148
  %v226 = vunpack.c.l.b16 %v149
  %v227 = vunpack.c.h.b16 %v149
  %v228 = vunpack.c.l.b16 %v150
  %v229 = vunpack.c.h.b16 %v150
  %v230 = vunpack.c.l.b16 %v151
  %v231 = vunpack.c.h.b16 %v151
  %v232 = vunpack.c.l.b16 %v152
  %v233 = vunpack.c.h.b16 %v152
  %v234 = vunpack.c.l.b16 %v153
  %v235 = vunpack.c.h.b16 %v153
  %v236 = vunpack.c.l.b16 %v154
  %v237 = vunpack.c.h.b16 %v154
  %v238 = vunpack.c.l.b16 %v155
  %v239 = vunpack.c.h.b16 %v155
  %v240 = vunpack.c.l.b16 %v156
  %v241 = vunpack.c.h.b16 %v156
  %v242 = vunpack.c.l.b16 %v157
  %v243 = vunpack.c.h.b16 %v157
  %v244 = vunpack.c.l.b16 %v158
  %v245 = vunpack.c.h.b16 %v158
  %v246 = vunpack.c.l.b16 %v159
  %v247 = vunpack.c.h.b16 %v159
  %v248 = vunpack.c.l.b16 %v160
  %v249 = vunpack.c.h.b16 %v160
  %v250 = vunpack.c.l.b16 %v161
  %v251 = vunpack.c.h.b16 %v161
  %v252 = vunpack.c.l.b16 %v162
  %v253 = vunpack.c.h.b16 %v162
  %v254 = vunpack.c.l.b16 %v163
  %v255 = vunpack.c.h.b16 %v163
  %v256 = vunpack.c.l.b16 %v164
  %v257 = vunpack.c.h.b16 %v164
  %v258 = vunpack.c.l.b16 %v165
  %v259 = vunpack.c.h.b16 %v165
  %v260 = vunpack.c.l.b16 %v166
  %v261 = vunpack.c.h.b16 %v166
  %v262 = vunpack.c.l.b16 %v167
  %v263 = vunpack.c.h.b16 %v167
  %v264 = vunpack.c.l.b16 %v168
  %v265 = vunpack.c.h.b16 %v168
  %v266 = vunpack.c.l.b16 %v169
  %v267 = vunpack.c.h.b16 %v169
  %v268 = vunpack.c.l.b16 %v170
  %v269 = vunpack.c.h.b16 %v170
  %v270 = vunpack.c.l.b16 %v171
  %v271 = vunpack.c.h.b16 %v171
  %v272 = vunpack.c.l.b16 %v172
  %v273 = vunpack.c.h.b16 %v172
  %v274 = vunpack.c.l.b16 %v173
  %v275 = vunpack.c.h.b16 %v173
  %v276 = vunpack.c.l.b16 %v174
  %v277 = vunpack.c.h.b16 %v174
  %v278 = vpack.c.b16 %v222, %v214
  %v279 = vpack.c.b16 %v223, %v215
  %v280 = vpack.c.b16 %v224, %v216
  %v281 = vpack.c.b16 %v225, %v217
  %v282 = vpack.c.b16 %v226, %v218
  %v283 = vpack.c.b16 %v227, %v219
  %v284 = vpack.c.b16 %v228, %v220
  %v285 = vpack.c.b16 %v229, %v221
  %v286 = vpack.c.b16 %v238, %v230
  %v287 = vpack.c.b16 %v239, %v231
  %v288 = vpack.c.b16 %v240, %v232
  %v289 = vpack.c.b16 %v241, %v233
  %v290 = vpack.c.b16 %v242, %v234
  %v291 = vpack.c.b16 %v243, %v235
  %v292 = vpack.c.b16 %v244, %v236
  %v293 = vpack.c.b16 %v245, %v237
  %v294 = vpack.c.b16 %v254, %v246
  %v295 = vpack.c.b16 %v255, %v247
  %v296 = vpack.c.b16 %v256, %v248
  %v297 = vpack.c.b16 %v257, %v249
  %v298 = vpack.c.b16 %v258, %v250
  %v299 = vpack.c.b16 %v259, %v251
  %v300 = vpack.c.b16 %v260, %v252
  %v301 = vpack.c.b16 %v261, %v253
  %v302 = vpack.c.b16 %v270, %v262
  %v303 = vpack.c.b16 %v271, %v263
  %v304 = vpack.c.b16 %v272, %v264
  %v305 = vpack.c.b16 %v273, %v265
  %v306 = vpack.c.b16 %v274, %v266
  %v307 = vpack.c.b16 %v275, %v267
  %v308 = vpack.c.b16 %v276, %v268
  %v309 = vpack.c.b16 %v277, %v269
  %v470 = vunpack.c.l.b16 %v15
  %v471 = vunpack.c.l.b16 %v16
  %v472 = vunpack.c.l.b16 %v17
  %v473 = vunpack.c.l.b16 %v18
  %v474 = vunpack.c.l.b16 %v19
  %v475 = vunpack.c.l.b16 %v20
  %v476 = vunpack.c.l.b16 %v21
  %v477 = vunpack.c.l.b16 %v22
  %v478 = vunpack.c.l.b16 %v23
  %v479 = vunpack.c.l.b16 %v24
  %v480 = vunpack.c.l.b16 %v25
  %v481 = vunpack.c.l.b16 %v26
  %v482 = vunpack.c.l.b16 %v27
  %v483 = vunpack.c.l.b16 %v28
  %v484 = vunpack.c.l.b16 %v29
  %v485 = vunpack.c.l.b16 %v30
  %v486 = vunpack.c.l.b16 %v31
  %v487 = vunpack.c.l.b16 %v32
  %v488 = vunpack.c.l.b16 %v33
  %v489 = vunpack.c.l.b16 %v34
  %v490 = vunpack.c.l.b16 %v35
  %v491 = vunpack.c.l.b16 %v36
  %v492 = vunpack.c.l.b16 %v37
  %v493 = vunpack.c.l.b16 %v38
  %v494 = vunpack.c.l.b16 %v39
  %v495 = vunpack.c.l.b16 %v40
  %v496 = vunpack.c.l.b16 %v41
  %v497 = vunpack.c.l.b16 %v42
  %v498 = vunpack.c.l.b16 %v43
  %v499 = vunpack.c.l.b16 %v44
  %v500 = vunpack.c.l.b16 %v45
  %v501 = vunpack.c.l.b16 %v46
  %v502 = vunpack.c.l.b16 %v47
  %v503 = vunpack.c.l.b16 %v48
  %v504 = vunpack.c.l.b16 %v49
  %v505 = vunpack.c.l.b16 %v50
  %v506 = vunpack.c.l.b16 %v51
  %v507 = vunpack.c.l.b16 %v52
  %v508 = vunpack.c.l.b16 %v53
  %v509 = vunpack.c.l.b16 %v54
  %v510 = vunpack.c.l.b16 %v55
  %v511 = vunpack.c.l.b16 %v56
  %v512 = vunpack.c.l.b16 %v57
  %v513 = vunpack.c.l.b16 %v58
  %v514 = vunpack.c.l.b16 %v59
  %v515 = vunpack.c.l.b16 %v60
  %v516 = vunpack.c.l.b16 %v61
  %v517 = vunpack.c.l.b16 %v62
  %v518 = vunpack.c.l.b16 %v63
  %v519 = vunpack.c.l.b16 %v64
  %v520 = vunpack.c.l.b16 %v65
  %v521 = vunpack.c.l.b16 %v66
  %v522 = vunpack.c.l.b16 %v67
  %v523 = vunpack.c.l.b16 %v68
  %v524 = vunpack.c.l.b16 %v69
  %v525 = vunpack.c.l.b16 %v70
  %v526 = vunpack.c.l.b16 %v71
  %v527 = vunpack.c.l.b16 %v72
  %v528 = vunpack.c.l.b16 %v73
  %v529 = vunpack.c.l.b16 %v74
  %v530 = vunpack.c.l.b16 %v75
  %v531 = vunpack.c.l.b16 %v76
  %v532 = vunpack.c.l.b16 %v77
  %v533 = vunpack.c.l.b16 %v78
  %v534 = vunpack.c.l.b16 %v79
  %v535 = vunpack.c.l.b16 %v80
  %v536 = vunpack.c.l.b16 %v81
  %v537 = vunpack.c.l.b16 %v82
  %v538 = vunpack.c.l.b16 %v83
  %v539 = vunpack.c.l.b16 %v84
  %v540 = vunpack.c.l.b16 %v85
  %v541 = vunpack.c.l.b16 %v86
  %v542 = vunpack.c.l.b16 %v87
  %v543 = vunpack.c.l.b16 %v88
  %v544 = vunpack.c.l.b16 %v89
  %v545 = vunpack.c.l.b16 %v90
  %v546 = vunpack.c.l.b16 %v91
  %v547 = vunpack.c.l.b16 %v92
  %v548 = vunpack.c.l.b16 %v93
  %v549 = vunpack.c.l.b16 %v94
  %v550 = vunpack.c.l.b16 %v95
  %v551 = vunpack.c.l.b16 %v96
  %v552 = vunpack.c.l.b16 %v97
  %v553 = vunpack.c.l.b16 %v98
  %v554 = vunpack.c.l.b16 %v99
  %v555 = vunpack.c.l.b16 %v100
  %v556 = vunpack.c.l.b16 %v101
  %v557 = vunpack.c.l.b16 %v102
  %v558 = vunpack.c.l.b16 %v103
  %v559 = vunpack.c.l.b16 %v104
  %v560 = vunpack.c.l.b16 %v105
  %v561 = vunpack.c.l.b16 %v106
  %v562 = vunpack.c.l.b16 %v107
  %v563 = vunpack.c.l.b16 %v108
  %v564 = vunpack.c.l.b16 %v109
  %v565 = vunpack.c.l.b16 %v110
  %v566 = vunpack.c.l.b16 %v111
  %v567 = vunpack.c.l.b16 %v112
  %v568 = vunpack.c.l.b16 %v113
  %v569 = vunpack.c.l.b16 %v114
  %v570 = vunpack.c.l.b16 %v115
  %v571 = vunpack.c.l.b16 %v116
  %v572 = vunpack.c.l.b16 %v117
  %v573 = vunpack.c.l.b16 %v118
  %v574 = vunpack.c.l.b16 %v119
  %v575 = vunpack.c.l.b16 %v120
  %v576 = vunpack.c.l.b16 %v121
  %v577 = vunpack.c.l.b16 %v122
  %v578 = vunpack.c.l.b16 %v123
  %v579 = vunpack.c.l.b16 %v124
  %v580 = vunpack.c.l.b16 %v125
  %v581 = vunpack.c.l.b16 %v126
  %v582 = vunpack.c.l.b16 %v127
  %v583 = vunpack.c.l.b16 %v128
  %v584 = vunpack.c.l.b16 %v129
  %v585 = vunpack.c.l.b16 %v130
  %v586 = vunpack.c.l.b16 %v131
  %v587 = vunpack.c.l.b16 %v132
  %v588 = vunpack.c.l.b16 %v133
  %v589 = vunpack.c.l.b16 %v134
  %v590 = vunpack.c.l.b16 %v135
  %v591 = vunpack.c.l.b16 %v136
  %v592 = vunpack.c.l.b16 %v137
  %v593 = vunpack.c.l.b16 %v138
  %v594 = vunpack.c.l.b16 %v139
  %v595 = vunpack.c.l.b16 %v140
  %v596 = vunpack.c.l.b16 %v141
  %v597 = vunpack.c.l.b16 %v142
  %v598 = vpack.c.b16 %v471, %v470
  %v599 = vpack.c.b16 %v473, %v472
  %v600 = vpack.c.b16 %v475, %v474
  %v601 = vpack.c.b16 %v477, %v476
  %v602 = vpack.c.b16 %v479, %v478
  %v603 = vpack.c.b16 %v481, %v480
  %v604 = vpack.c.b16 %v483, %v482
  %v605 = vpack.c.b16 %v485, %v484
  %v606 = vpack.c.b16 %v487, %v486
  %v607 = vpack.c.b16 %v489, %v488
  %v608 = vpack.c.b16 %v491, %v490
  %v609 = vpack.c.b16 %v493, %v492
  %v610 = vpack.c.b16 %v495, %v494
  %v611 = vpack.c.b16 %v497, %v496
  %v612 = vpack.c.b16 %v499, %v498
  %v613 = vpack.c.b16 %v501, %v500
  %v614 = vpack.c.b16 %v503, %v502
  %v615 = vpack.c.b16 %v505, %v504
  %v616 = vpack.c.b16 %v507, %v506
  %v617 = vpack.c.b16 %v509, %v508
  %v618 = vpack.c.b16 %v511, %v510
  %v619 = vpack.c.b16 %v513, %v512
  %v620 = vpack.c.b16 %v515, %v514
  %v621 = vpack.c.b16 %v517, %v516
  %v622 = vpack.c.b16 %v519, %v518
  %v623 = vpack.c.b16 %v521, %v520
  %v624 = vpack.c.b16 %v523, %v522
  %v625 = vpack.c.b16 %v525, %v524
  %v626 = vpack.c.b16 %v527, %v526
  %v627 = vpack.c.b16 %v529, %v528
  %v628 = vpack.c.b16 %v531, %v530
  %v629 = vpack.c.b16 %v533, %v532
  %v630 = vpack.c.b16 %v535, %v534
  %v631 = vpack.c.b16 %v537, %v536
  %v632 = vpack.c.b16 %v539, %v538
  %v633 = vpack.c.b16 %v541, %v540
  %v634 = vpack.c.b16 %v543, %v542
  %v635 = vpack.c.b16 %v545, %v544
  %v636 = vpack.c.b16 %v547, %v546
  %v637 = vpack.c.b16 %v549, %v548
  %v638 = vpack.c.b16 %v551, %v550
  %v639 = vpack.c.b16 %v553, %v552
  %v640 = vpack.c.b16 %v555, %v554
  %v641 = vpack.c.b16 %v557, %v556
  %v642 = vpack.c.b16 %v559, %v558
  %v643 = vpack.c.b16 %v561, %v560
  %v644 = vpack.c.b16 %v563, %v562
  %v645 = vpack.c.b16 %v565, %v564
  %v646 = vpack.c.b16 %v567, %v566
  %v647 = vpack.c.b16 %v569, %v568
  %v648 = vpack.c.b16 %v571, %v570
  %v649 = vpack.c.b16 %v573, %v572
  %v650 = vpack.c.b16 %v575, %v574
  %v651 = vpack.c.b16 %v577, %v576
  %v652 = vpack.c.b16 %v579, %v578
  %v653 = vpack.c.b16 %v581, %v580
  %v654 = vpack.c.b16 %v583, %v582
  %v655 = vpack.c.b16 %v585, %v584
  %v656 = vpack.c.b16 %v587, %v586
  %v657 = vpack.c.b16 %v589, %v588
  %v658 = vpack.c.b16 %v591, %v590
  %v659 = vpack.c.b16 %v593, %v592
  %v660 = vpack.c.b16 %v595, %v594
  %v661 = vpack.c.b16 %v597, %v596
  %726 = vmatprep.subr.bf16.mxu0 0
  %727 = vmatpush1.bf16.msra.mxu0 %v598
  %728 = vmatprep.subr.bf16.mxu0 0
  %729 = vmatpush1.bf16.msra.mxu0 %v599
  %730 = vmatprep.subr.bf16.mxu0 0
  %731 = vmatpush1.bf16.msra.mxu0 %v600
  %732 = vmatprep.subr.bf16.mxu0 0
  %733 = vmatpush1.bf16.msra.mxu0 %v601
  %734 = vmatprep.subr.bf16.mxu0 0
  %735 = vmatpush1.bf16.msra.mxu0 %v602
  %736 = vmatprep.subr.bf16.mxu0 0
  %737 = vmatpush1.bf16.msra.mxu0 %v603
  %738 = vmatprep.subr.bf16.mxu0 0
  %739 = vmatpush1.bf16.msra.mxu0 %v604
  %740 = vmatprep.subr.bf16.mxu0 0
  %741 = vmatpush1.bf16.msra.mxu0 %v605
  %742 = vmatprep.subr.bf16.mxu0 0
  %743 = vmatpush1.bf16.msra.mxu0 %v606
  %744 = vmatprep.subr.bf16.mxu0 0
  %745 = vmatpush1.bf16.msra.mxu0 %v607
  %746 = vmatprep.subr.bf16.mxu0 0
  %747 = vmatpush1.bf16.msra.mxu0 %v608
  %748 = vmatprep.subr.bf16.mxu0 0
  %749 = vmatpush1.bf16.msra.mxu0 %v609
  %750 = vmatprep.subr.bf16.mxu0 0
  %751 = vmatpush1.bf16.msra.mxu0 %v610
  %752 = vmatprep.subr.bf16.mxu0 0
  %753 = vmatpush1.bf16.msra.mxu0 %v611
  %754 = vmatprep.subr.bf16.mxu0 0
  %755 = vmatpush1.bf16.msra.mxu0 %v612
  %756 = vmatprep.subr.bf16.mxu0 0
  %757 = vmatpush1.bf16.msra.mxu0 %v613
  %758 = vmatprep.mubr.bf16.mxu0 %v279
  %759 = vmatmul.mubr.bf16.gmra.mrb[0].mxu0 %v278
  %v760 = vpop.f32.mrb[0].mxu0
  %v761 = vadd.f32 %v180, %v760
  %v762 = vpop.f32.mrb[0].mxu0
  %v763 = vpop.f32.mrb[0].mxu0
  %v764 = vadd.f32 %v180, %v763
  %v765 = vpop.f32.mrb[0].mxu0
  %766 = vmatprep.mubr.bf16.mxu0 %v287
  %767 = vmatmul.mubr.bf16.gmra.mrb[0].mxu0 %v286
  %v768 = vpop.f32.mrb[0].mxu0
  %v769 = vadd.f32 %v180, %v768
  %v770 = vpop.f32.mrb[0].mxu0
  %v771 = vpop.f32.mrb[0].mxu0
  %v772 = vadd.f32 %v180, %v771
  %v773 = vpop.f32.mrb[0].mxu0
  %774 = vmatprep.mubr.bf16.mxu0 %v295
  %775 = vmatmul.mubr.bf16.gmra.mrb[0].mxu0 %v294
  %v776 = vpop.f32.mrb[0].mxu0
  %v777 = vadd.f32 %v180, %v776
  %v778 = vpop.f32.mrb[0].mxu0
  %v779 = vpop.f32.mrb[0].mxu0
  %v780 = vadd.f32 %v180, %v779
  %v781 = vpop.f32.mrb[0].mxu0
  %782 = vmatprep.mubr.bf16.mxu0 %v303
  %783 = vmatmul.mubr.bf16.gmra.mrb[0].mxu0 %v302
  %v784 = vpop.f32.mrb[0].mxu0
  %v785 = vadd.f32 %v180, %v784
  %v786 = vpop.f32.mrb[0].mxu0
  %v787 = vpop.f32.mrb[0].mxu0
  %v788 = vadd.f32 %v180, %v787
  %v789 = vpop.f32.mrb[0].mxu0
  %790 = vdwg.mxu0
  %791 = vmatprep.subr.bf16.mxu0 0
  %792 = vmatpush1.bf16.msra.mxu0 %v614
  %793 = vmatprep.subr.bf16.mxu0 0
  %794 = vmatpush1.bf16.msra.mxu0 %v615
  %795 = vmatprep.subr.bf16.mxu0 0
  %796 = vmatpush1.bf16.msra.mxu0 %v616
  %797 = vmatprep.subr.bf16.mxu0 0
  %798 = vmatpush1.bf16.msra.mxu0 %v617
  %799 = vmatprep.subr.bf16.mxu0 0
  %800 = vmatpush1.bf16.msra.mxu0 %v618
  %801 = vmatprep.subr.bf16.mxu0 0
  %802 = vmatpush1.bf16.msra.mxu0 %v619
  %803 = vmatprep.subr.bf16.mxu0 0
  %804 = vmatpush1.bf16.msra.mxu0 %v620
  %805 = vmatprep.subr.bf16.mxu0 0
  %806 = vmatpush1.bf16.msra.mxu0 %v621
  %807 = vmatprep.subr.bf16.mxu0 0
  %808 = vmatpush1.bf16.msra.mxu0 %v622
  %809 = vmatprep.subr.bf16.mxu0 0
  %810 = vmatpush1.bf16.msra.mxu0 %v623
  %811 = vmatprep.subr.bf16.mxu0 0
  %812 = vmatpush1.bf16.msra.mxu0 %v624
  %813 = vmatprep.subr.bf16.mxu0 0
  %814 = vmatpush1.bf16.msra.mxu0 %v625
  %815 = vmatprep.subr.bf16.mxu0 0
  %816 = vmatpush1.bf16.msra.mxu0 %v626
  %817 = vmatprep.subr.bf16.mxu0 0
  %818 = vmatpush1.bf16.msra.mxu0 %v627
  %819 = vmatprep.subr.bf16.mxu0 0
  %820 = vmatpush1.bf16.msra.mxu0 %v628
  %821 = vmatprep.subr.bf16.mxu0 0
  %822 = vmatpush1.bf16.msra.mxu0 %v629
  %823 = vmatprep.mubr.bf16.mxu0 %v281
  %824 = vmatmul.mubr.bf16.gmra.mrb[0].mxu0 %v280
  %v825 = vpop.f32.mrb[0].mxu0
  %v826 = vadd.f32 %v761, %v825
  %v827 = vpop.f32.mrb[0].mxu0
  %v828 = vpop.f32.mrb[0].mxu0
  %v829 = vadd.f32 %v764, %v828
  %v830 = vpop.f32.mrb[0].mxu0
  %831 = vmatprep.mubr.bf16.mxu0 %v289
  %832 = vmatmul.mubr.bf16.gmra.mrb[0].mxu0 %v288
  %v833 = vpop.f32.mrb[0].mxu0
  %v834 = vadd.f32 %v769, %v833
  %v835 = vpop.f32.mrb[0].mxu0
  %v836 = vpop.f32.mrb[0].mxu0
  %v837 = vadd.f32 %v772, %v836
  %v838 = vpop.f32.mrb[0].mxu0
  %839 = vmatprep.mubr.bf16.mxu0 %v297
  %840 = vmatmul.mubr.bf16.gmra.mrb[0].mxu0 %v296
  %v841 = vpop.f32.mrb[0].mxu0
  %v842 = vadd.f32 %v777, %v841
  %v843 = vpop.f32.mrb[0].mxu0
  %v844 = vpop.f32.mrb[0].mxu0
  %v845 = vadd.f32 %v780, %v844
  %v846 = vpop.f32.mrb[0].mxu0
  %847 = vmatprep.mubr.bf16.mxu0 %v305
  %848 = vmatmul.mubr.bf16.gmra.mrb[0].mxu0 %v304
  %v849 = vpop.f32.mrb[0].mxu0
  %v850 = vadd.f32 %v785, %v849
  %v851 = vpop.f32.mrb[0].mxu0
  %v852 = vpop.f32.mrb[0].mxu0
  %v853 = vadd.f32 %v788, %v852
  %v854 = vpop.f32.mrb[0].mxu0
  %855 = vdwg.mxu0
  %856 = vmatprep.subr.bf16.mxu0 0
  %857 = vmatpush1.bf16.msra.mxu0 %v630
  %858 = vmatprep.subr.bf16.mxu0 0
  %859 = vmatpush1.bf16.msra.mxu0 %v631
  %860 = vmatprep.subr.bf16.mxu0 0
  %861 = vmatpush1.bf16.msra.mxu0 %v632
  %862 = vmatprep.subr.bf16.mxu0 0
  %863 = vmatpush1.bf16.msra.mxu0 %v633
  %864 = vmatprep.subr.bf16.mxu0 0
  %865 = vmatpush1.bf16.msra.mxu0 %v634
  %866 = vmatprep.subr.bf16.mxu0 0
  %867 = vmatpush1.bf16.msra.mxu0 %v635
  %868 = vmatprep.subr.bf16.mxu0 0
  %869 = vmatpush1.bf16.msra.mxu0 %v636
  %870 = vmatprep.subr.bf16.mxu0 0
  %871 = vmatpush1.bf16.msra.mxu0 %v637
  %872 = vmatprep.subr.bf16.mxu0 0
  %873 = vmatpush1.bf16.msra.mxu0 %v638
  %874 = vmatprep.subr.bf16.mxu0 0
  %875 = vmatpush1.bf16.msra.mxu0 %v639
  %876 = vmatprep.subr.bf16.mxu0 0
  %877 = vmatpush1.bf16.msra.mxu0 %v640
  %878 = vmatprep.subr.bf16.mxu0 0
  %879 = vmatpush1.bf16.msra.mxu0 %v641
  %880 = vmatprep.subr.bf16.mxu0 0
  %881 = vmatpush1.bf16.msra.mxu0 %v642
  %882 = vmatprep.subr.bf16.mxu0 0
  %883 = vmatpush1.bf16.msra.mxu0 %v643
  %884 = vmatprep.subr.bf16.mxu0 0
  %885 = vmatpush1.bf16.msra.mxu0 %v644
  %886 = vmatprep.subr.bf16.mxu0 0
  %887 = vmatpush1.bf16.msra.mxu0 %v645
  %888 = vmatprep.mubr.bf16.mxu0 %v283
  %889 = vmatmul.mubr.bf16.gmra.mrb[0].mxu0 %v282
  %v890 = vpop.f32.mrb[0].mxu0
  %v891 = vadd.f32 %v826, %v890
  %v892 = vpop.f32.mrb[0].mxu0
  %v893 = vpop.f32.mrb[0].mxu0
  %v894 = vadd.f32 %v829, %v893
  %v895 = vpop.f32.mrb[0].mxu0
  %896 = vmatprep.mubr.bf16.mxu0 %v291
  %897 = vmatmul.mubr.bf16.gmra.mrb[0].mxu0 %v290
  %v898 = vpop.f32.mrb[0].mxu0
  %v899 = vadd.f32 %v834, %v898
  %v900 = vpop.f32.mrb[0].mxu0
  %v901 = vpop.f32.mrb[0].mxu0
  %v902 = vadd.f32 %v837, %v901
  %v903 = vpop.f32.mrb[0].mxu0
  %904 = vmatprep.mubr.bf16.mxu0 %v299
  %905 = vmatmul.mubr.bf16.gmra.mrb[0].mxu0 %v298
  %v906 = vpop.f32.mrb[0].mxu0
  %v907 = vadd.f32 %v842, %v906
  %v908 = vpop.f32.mrb[0].mxu0
  %v909 = vpop.f32.mrb[0].mxu0
  %v910 = vadd.f32 %v845, %v909
  %v911 = vpop.f32.mrb[0].mxu0
  %912 = vmatprep.mubr.bf16.mxu0 %v307
  %913 = vmatmul.mubr.bf16.gmra.mrb[0].mxu0 %v306
  %v914 = vpop.f32.mrb[0].mxu0
  %v915 = vadd.f32 %v850, %v914
  %v916 = vpop.f32.mrb[0].mxu0
  %v917 = vpop.f32.mrb[0].mxu0
  %v918 = vadd.f32 %v853, %v917
  %v919 = vpop.f32.mrb[0].mxu0
  %920 = vdwg.mxu0
  %921 = vmatprep.subr.bf16.mxu0 0
  %922 = vmatpush1.bf16.msra.mxu0 %v646
  %923 = vmatprep.subr.bf16.mxu0 0
  %924 = vmatpush1.bf16.msra.mxu0 %v647
  %925 = vmatprep.subr.bf16.mxu0 0
  %926 = vmatpush1.bf16.msra.mxu0 %v648
  %927 = vmatprep.subr.bf16.mxu0 0
  %928 = vmatpush1.bf16.msra.mxu0 %v649
  %929 = vmatprep.subr.bf16.mxu0 0
  %930 = vmatpush1.bf16.msra.mxu0 %v650
  %931 = vmatprep.subr.bf16.mxu0 0
  %932 = vmatpush1.bf16.msra.mxu0 %v651
  %933 = vmatprep.subr.bf16.mxu0 0
  %934 = vmatpush1.bf16.msra.mxu0 %v652
  %935 = vmatprep.subr.bf16.mxu0 0
  %936 = vmatpush1.bf16.msra.mxu0 %v653
  %937 = vmatprep.subr.bf16.mxu0 0
  %938 = vmatpush1.bf16.msra.mxu0 %v654
  %939 = vmatprep.subr.bf16.mxu0 0
  %940 = vmatpush1.bf16.msra.mxu0 %v655
  %941 = vmatprep.subr.bf16.mxu0 0
  %942 = vmatpush1.bf16.msra.mxu0 %v656
  %943 = vmatprep.subr.bf16.mxu0 0
  %944 = vmatpush1.bf16.msra.mxu0 %v657
  %945 = vmatprep.subr.bf16.mxu0 0
  %946 = vmatpush1.bf16.msra.mxu0 %v658
  %947 = vmatprep.subr.bf16.mxu0 0
  %948 = vmatpush1.bf16.msra.mxu0 %v659
  %949 = vmatprep.subr.bf16.mxu0 0
  %950 = vmatpush1.bf16.msra.mxu0 %v660
  %951 = vmatprep.subr.bf16.mxu0 0
  %952 = vmatpush1.bf16.msra.mxu0 %v661
  %953 = vmatprep.mubr.bf16.mxu0 %v285
  %954 = vmatmul.mubr.bf16.gmra.mrb[0].mxu0 %v284
  %v955 = vpop.f32.mrb[0].mxu0
  %v956 = vadd.f32 %v891, %v955
  %v957 = vpop.f32.mrb[0].mxu0
  %v958 = vpop.f32.mrb[0].mxu0
  %v959 = vadd.f32 %v894, %v958
  %v960 = vpop.f32.mrb[0].mxu0
  %961 = vmatprep.mubr.bf16.mxu0 %v293
  %962 = vmatmul.mubr.bf16.gmra.mrb[0].mxu0 %v292
  %v963 = vpop.f32.mrb[0].mxu0
  %v964 = vadd.f32 %v899, %v963
  %v965 = vpop.f32.mrb[0].mxu0
  %v966 = vpop.f32.mrb[0].mxu0
  %v967 = vadd.f32 %v902, %v966
  %v968 = vpop.f32.mrb[0].mxu0
  %969 = vmatprep.mubr.bf16.mxu0 %v301
  %970 = vmatmul.mubr.bf16.gmra.mrb[0].mxu0 %v300
  %v971 = vpop.f32.mrb[0].mxu0
  %v972 = vadd.f32 %v907, %v971
  %v973 = vpop.f32.mrb[0].mxu0
  %v974 = vpop.f32.mrb[0].mxu0
  %v975 = vadd.f32 %v910, %v974
  %v976 = vpop.f32.mrb[0].mxu0
  %977 = vmatprep.mubr.bf16.mxu0 %v309
  %978 = vmatmul.mubr.bf16.gmra.mrb[0].mxu0 %v308
  %v979 = vpop.f32.mrb[0].mxu0
  %v980 = vadd.f32 %v915, %v979
  %v981 = vpop.f32.mrb[0].mxu0
  %v982 = vpop.f32.mrb[0].mxu0
  %v983 = vadd.f32 %v918, %v982
  %v984 = vpop.f32.mrb[0].mxu0
  %985 = vdwg.mxu0
  %v986 = vmax.f32 %v956, 0.0
  %v987 = vmax.f32 %v959, 0.0
  %v988 = vmax.f32 %v964, 0.0
  %v989 = vmax.f32 %v967, 0.0
  %v990 = vmax.f32 %v972, 0.0
  %v991 = vmax.f32 %v975, 0.0
  %v992 = vmax.f32 %v980, 0.0
  %v993 = vmax.f32 %v983, 0.0
  %v994 = vpack.c.bf16 %v987, %v986
  %v995 = vpack.c.bf16 %v989, %v988
  %v996 = vpack.c.bf16 %v991, %v990
  %v997 = vpack.c.bf16 %v993, %v992
  %v1002 = vunpack.c.l.b16 %v994
  %v1003 = vunpack.c.h.b16 %v994
  %v1004 = vunpack.c.l.b16 %v995
  %v1005 = vunpack.c.h.b16 %v995
  %v1006 = vunpack.c.l.b16 %v996
  %v1007 = vunpack.c.h.b16 %v996
  %v1008 = vunpack.c.l.b16 %v997
  %v1009 = vunpack.c.h.b16 %v997
  %v1010 = vpack.c.b16 %v1002, %v1002
  %v1011 = vpack.c.b16 %v1003, %v1003
  %v1012 = vpack.c.b16 %v1004, %v1004
  %v1013 = vpack.c.b16 %v1005, %v1005
  %v1014 = vpack.c.b16 %v1006, %v1006
  %v1015 = vpack.c.b16 %v1007, %v1007
  %v1016 = vpack.c.b16 %v1008, %v1008
  %v1017 = vpack.c.b16 %v1009, %v1009
  %1026 = vst [vmem:[%s3] sm:$0xf] %v1010
  %1027 = vst [vmem:[%s3 + $0x4] sm:$0xf] %v1011
  %1028 = vst [vmem:[%s3 + $0x8] sm:$0xf] %v1012
  %1029 = vst [vmem:[%s3 + $0xc] sm:$0xf] %v1013
  %1030 = vst [vmem:[%s3 + $0x10] sm:$0xf] %v1014
  %1031 = vst [vmem:[%s3 + $0x14] sm:$0xf] %v1015
  %1032 = vst [vmem:[%s3 + $0x18] sm:$0xf] %v1016
  %1033 = vst [vmem:[%s3 + $0x1c] sm:$0xf] %v1017
  // Predicated region
  $region14: #{critic_forward.4} parent=0 // pred_check
    _
  $region15: #{critic_forward.4} parent=0 // pred_check_branch
    %1035 = sbr.rel (0) target = $region17
  $region16: #{critic_forward.4} parent=0 // pred_region
    _
  $region17: #{critic_forward.4} parent=0 // pred_fallthru
    _
  // Predicated region
  $region18: #{critic_forward.4} parent=0 // pred_check
    _
  $region19: #{critic_forward.4} parent=0 // pred_check_branch
    %1037 = sbr.rel (0) target = $region21
  $region20: #{critic_forward.4} parent=0 // pred_region
    _
  $region21: #{critic_forward.4} parent=0 // pred_fallthru
    _

// kernel: critic_forward.5
$region0: #{critic_forward.5}
  #allocation0 [shape = 'u32[]', space=smem, size = 0x4, offset = 0x4, fixed_abs, tag = 'smem constant byte address 0x4 - core index']
  #allocation1 [shape = 'u32[144,128]{1,0:T(1,128)}', space=vmem, size = 0x12000, scoped, tag = 'internal scratch']
  #allocation2 [shape = 'f32[1,1]{1,0:T(1,128)S(1)}', space=vmem, size = 0x200, scoped, tag = 'scoped memory for critic_forward.5']
  %s0 = inlined_call_operand.vmem [shape: bf16[2,3200], index: 0, kind: input, shape index: {}]
  %s1 = inlined_call_operand.vmem [shape: bf16[512,128], index: 1, kind: input, shape index: {}]
  %s2 = inlined_call_operand.vmem [shape: f32[1,128], index: 2, kind: input, shape index: {}]
  %s3 = inlined_call_operand.vmem [shape: bf16[512,768], index: 3, kind: input, shape index: {}]
  %s4 = inlined_call_operand.vmem [shape: f32[1,768], index: 4, kind: input, shape index: {}]
  %s5 = inlined_call_operand.vmem [shape: bf16[768,32], index: 5, kind: input, shape index: {}]
  %s6 = inlined_call_operand.vmem [shape: f32[1,32], index: 6, kind: input, shape index: {}]
  %s7 = inlined_call_operand.vmem [shape: f32[1,32], index: 7, kind: input, shape index: {}]
  %s8 = inlined_call_operand.<no memory space> [shape: f32[1,1], index: 8, kind: input, shape index: {}]
  %s9 = inlined_call_operand.vmem [shape: f32[2,1], index: 9, kind: output, shape index: {}]
  %s10 = sld [smem:[#allocation0]]
  $region46: #{critic_forward.5} parent=0
    _
  %s12 = ssub.s32 1, %s10
  %s13 = scalar_select 0, %s12, %s10
  %v14 = vstv %s8
  %15 = vst [vmem:[#allocation2] sm:$0x1] %v14
  // Predicated region
  $region2: #{critic_forward.5} parent=0 // pred_check
    _
  $region3: #{critic_forward.5} parent=0 // pred_check_branch
    %17 = sbr.rel (0) target = $region5
  $region4: #{critic_forward.5} parent=0 // pred_region
    _
  $region5: #{critic_forward.5} parent=0 // pred_fallthru
    _
  // Predicated region
  $region6: #{critic_forward.5} parent=0 // pred_check
    _
  $region7: #{critic_forward.5} parent=0 // pred_check_branch
    %19 = sbr.rel (0) target = $region9
  $region8: #{critic_forward.5} parent=0 // pred_region
    _
  $region9: #{critic_forward.5} parent=0 // pred_fallthru
    _
  // Predicated region
  $region10: #{critic_forward.5} parent=0 // pred_check
    _
  $region11: #{critic_forward.5} parent=0 // pred_check_branch
    %21 = sbr.rel (0) target = $region13
  $region12: #{critic_forward.5} parent=0 // pred_region
    _
  $region13: #{critic_forward.5} parent=0 // pred_fallthru
    _
  // Predicated region
  $region14: #{critic_forward.5} parent=0 // pred_check
    _
  $region15: #{critic_forward.5} parent=0 // pred_check_branch
    %23 = sbr.rel (0) target = $region17
  $region16: #{critic_forward.5} parent=0 // pred_region
    _
  $region17: #{critic_forward.5} parent=0 // pred_fallthru
    _
  // Predicated region
  $region18: #{critic_forward.5} parent=0 // pred_check
    _
  $region19: #{critic_forward.5} parent=0 // pred_check_branch
    %25 = sbr.rel (0) target = $region21
  $region20: #{critic_forward.5} parent=0 // pred_region
    _
  $region21: #{critic_forward.5} parent=0 // pred_fallthru
    _
  // Predicated region
  $region22: #{critic_forward.5} parent=0 // pred_check
    _
  $region23: #{critic_forward.5} parent=0 // pred_check_branch
    %27 = sbr.rel (0) target = $region25
  $region24: #{critic_forward.5} parent=0 // pred_region
    _
  $region25: #{critic_forward.5} parent=0 // pred_fallthru
    _
  // Predicated region
  $region26: #{critic_forward.5} parent=0 // pred_check
    _
  $region27: #{critic_forward.5} parent=0 // pred_check_branch
    %29 = sbr.rel (0) target = $region29
  $region28: #{critic_forward.5} parent=0 // pred_region
    _
  $region29: #{critic_forward.5} parent=0 // pred_fallthru
    _
  // Predicated region
  $region30: #{critic_forward.5} parent=0 // pred_check
    _
  $region31: #{critic_forward.5} parent=0 // pred_check_branch
    %31 = sbr.rel (0) target = $region33
  $region32: #{critic_forward.5} parent=0 // pred_region
    _
  $region33: #{critic_forward.5} parent=0 // pred_fallthru
    _
  // Predicated region
  $region34: #{critic_forward.5} parent=0 // pred_check
    _
  $region35: #{critic_forward.5} parent=0 // pred_check_branch
    %33 = sbr.rel (0) target = $region37
  $region36: #{critic_forward.5} parent=0 // pred_region
    _
  $region37: #{critic_forward.5} parent=0 // pred_fallthru
    _
  %v35 = vld [vmem:[%s0] sm:$0xff]
  %v36 = vld [vmem:[%s0 + $0x8] sm:$0xff]
  %v37 = vld [vmem:[%s0 + $0x10] sm:$0xff]
  %v38 = vld [vmem:[%s0 + $0x18] sm:$0x1]
  %v40 = vrot.slane %v35, 1
  %v42 = vmax.bf16 %v35, %v40
  %v43 = vrot.slane %v35, 5
  %v45 = vrot.slane %v35, 6
  %v47 = vmax.bf16 %v43, %v45
  %v48 = vmax.bf16 %v42, %v47
  %v49 = vrot.slane %v35, 2
  %v51 = vmax.bf16 %v40, %v49
  %v52 = vrot.slane %v35, 7
  %v54 = vmax.bf16 %v45, %v52
  %v55 = vmax.bf16 %v51, %v54
  %v56 = vrot.slane %v35, 3
  %v58 = vmax.bf16 %v49, %v56
  %v59 = vmax.bf16 %v52, %v36
  %v60 = vmax.bf16 %v58, %v59
  %v61 = vrot.slane %v35, 4
  %v63 = vmax.bf16 %v56, %v61
  %v65 = vrot.slane %v36, 1
  %v67 = vmax.bf16 %v36, %v65
  %v68 = vmax.bf16 %v63, %v67
  %v69 = vrot.slane %v36, 2
  %v71 = vrot.slane %v36, 3
  %v73 = vmax.bf16 %v69, %v71
  %v74 = vmax.bf16 %v47, %v73
  %v75 = vrot.slane %v36, 4
  %v77 = vmax.bf16 %v71, %v75
  %v78 = vmax.bf16 %v54, %v77
  %v79 = vrot.slane %v36, 5
  %v81 = vmax.bf16 %v75, %v79
  %v82 = vmax.bf16 %v59, %v81
  %v83 = vrot.slane %v36, 6
  %v85 = vmax.bf16 %v79, %v83
  %v86 = vmax.bf16 %v67, %v85
  %v87 = vrot.slane %v36, 7
  %v89 = vmax.bf16 %v87, %v37
  %v90 = vmax.bf16 %v73, %v89
  %v92 = vrot.slane %v37, 1
  %v94 = vmax.bf16 %v37, %v92
  %v95 = vmax.bf16 %v77, %v94
  %v96 = vrot.slane %v37, 2
  %v98 = vmax.bf16 %v92, %v96
  %v99 = vmax.bf16 %v81, %v98
  %v100 = vrot.slane %v37, 3
  %v102 = vmax.bf16 %v96, %v100
  %v103 = vmax.bf16 %v85, %v102
  %v104 = vrot.slane %v37, 4
  %v106 = vrot.slane %v37, 5
  %v108 = vmax.bf16 %v104, %v106
  %v109 = vmax.bf16 %v89, %v108
  %v110 = vrot.slane %v37, 6
  %v112 = vmax.bf16 %v106, %v110
  %v113 = vmax.bf16 %v94, %v112
  %v114 = vrot.slane %v37, 7
  %v116 = vmax.bf16 %v110, %v114
  %v117 = vmax.bf16 %v98, %v116
  %v118 = vmax.bf16 %v114, %v38
  %v119 = vmax.bf16 %v102, %v118
  %v120 = vld [vmem:[%s1] sm:$0xf]
  %v121 = vld [vmem:[%s1 + $0x4] sm:$0xf]
  %v122 = vld [vmem:[%s1 + $0x8] sm:$0xf]
  %v123 = vld [vmem:[%s1 + $0xc] sm:$0xf]
  %v124 = vld [vmem:[%s1 + $0x10] sm:$0xf]
  %v125 = vld [vmem:[%s1 + $0x14] sm:$0xf]
  %v126 = vld [vmem:[%s1 + $0x18] sm:$0xf]
  %v127 = vld [vmem:[%s1 + $0x1c] sm:$0xf]
  %v128 = vld [vmem:[%s1 + $0x20] sm:$0xf]
  %v129 = vld [vmem:[%s1 + $0x24] sm:$0xf]
  %v130 = vld [vmem:[%s1 + $0x28] sm:$0xf]
  %v131 = vld [vmem:[%s1 + $0x2c] sm:$0xf]
  %v132 = vld [vmem:[%s1 + $0x30] sm:$0xf]
  %v133 = vld [vmem:[%s1 + $0x34] sm:$0xf]
  %v134 = vld [vmem:[%s1 + $0x38] sm:$0xf]
  %v135 = vld [vmem:[%s1 + $0x3c] sm:$0xf]
  %v136 = vld [vmem:[%s1 + $0x40] sm:$0xf]
  %v137 = vld [vmem:[%s1 + $0x44] sm:$0xf]
  %v138 = vld [vmem:[%s1 + $0x48] sm:$0xf]
  %v139 = vld [vmem:[%s1 + $0x4c] sm:$0xf]
  %v140 = vld [vmem:[%s1 + $0x50] sm:$0xf]
  %v141 = vld [vmem:[%s1 + $0x54] sm:$0xf]
  %v142 = vld [vmem:[%s1 + $0x58] sm:$0xf]
  %v143 = vld [vmem:[%s1 + $0x5c] sm:$0xf]
  %v144 = vld [vmem:[%s1 + $0x60] sm:$0xf]
  %v145 = vld [vmem:[%s1 + $0x64] sm:$0xf]
  %v146 = vld [vmem:[%s1 + $0x68] sm:$0xf]
  %v147 = vld [vmem:[%s1 + $0x6c] sm:$0xf]
  %v148 = vld [vmem:[%s1 + $0x70] sm:$0xf]
  %v149 = vld [vmem:[%s1 + $0x74] sm:$0xf]
  %v150 = vld [vmem:[%s1 + $0x78] sm:$0xf]
  %v151 = vld [vmem:[%s1 + $0x7c] sm:$0xf]
  %v152 = vld [vmem:[%s1 + $0x80] sm:$0xf]
  %v153 = vld [vmem:[%s1 + $0x84] sm:$0xf]
  %v154 = vld [vmem:[%s1 + $0x88] sm:$0xf]
  %v155 = vld [vmem:[%s1 + $0x8c] sm:$0xf]
  %v156 = vld [vmem:[%s1 + $0x90] sm:$0xf]
  %v157 = vld [vmem:[%s1 + $0x94] sm:$0xf]
  %v158 = vld [vmem:[%s1 + $0x98] sm:$0xf]
  %v159 = vld [vmem:[%s1 + $0x9c] sm:$0xf]
  %v160 = vld [vmem:[%s1 + $0xa0] sm:$0xf]
  %v161 = vld [vmem:[%s1 + $0xa4] sm:$0xf]
  %v162 = vld [vmem:[%s1 + $0xa8] sm:$0xf]
  %v163 = vld [vmem:[%s1 + $0xac] sm:$0xf]
  %v164 = vld [vmem:[%s1 + $0xb0] sm:$0xf]
  %v165 = vld [vmem:[%s1 + $0xb4] sm:$0xf]
  %v166 = vld [vmem:[%s1 + $0xb8] sm:$0xf]
  %v167 = vld [vmem:[%s1 + $0xbc] sm:$0xf]
  %v168 = vld [vmem:[%s1 + $0xc0] sm:$0xf]
  %v169 = vld [vmem:[%s1 + $0xc4] sm:$0xf]
  %v170 = vld [vmem:[%s1 + $0xc8] sm:$0xf]
  %v171 = vld [vmem:[%s1 + $0xcc] sm:$0xf]
  %v172 = vld [vmem:[%s1 + $0xd0] sm:$0xf]
  %v173 = vld [vmem:[%s1 + $0xd4] sm:$0xf]
  %v174 = vld [vmem:[%s1 + $0xd8] sm:$0xf]
  %v175 = vld [vmem:[%s1 + $0xdc] sm:$0xf]
  %v176 = vld [vmem:[%s1 + $0xe0] sm:$0xf]
  %v177 = vld [vmem:[%s1 + $0xe4] sm:$0xf]
  %v178 = vld [vmem:[%s1 + $0xe8] sm:$0xf]
  %v179 = vld [vmem:[%s1 + $0xec] sm:$0xf]
  %v180 = vld [vmem:[%s1 + $0xf0] sm:$0xf]
  %v181 = vld [vmem:[%s1 + $0xf4] sm:$0xf]
  %v182 = vld [vmem:[%s1 + $0xf8] sm:$0xf]
  %v183 = vld [vmem:[%s1 + $0xfc] sm:$0xf]
  %v184 = vld [vmem:[%s2] sm:$0x1]
  %v186 = vlaneseq
  %v187 = vshrl.u32 %v186, 7
  %v188 = vsub.s32 0, %v187
  %v189 = vrot.slane %v184, %v188
  %v255 = vunpack.c.l.b16 %v120
  %v256 = vunpack.c.l.b16 %v121
  %v257 = vunpack.c.l.b16 %v122
  %v258 = vunpack.c.l.b16 %v123
  %v259 = vunpack.c.l.b16 %v124
  %v260 = vunpack.c.l.b16 %v125
  %v261 = vunpack.c.l.b16 %v126
  %v262 = vunpack.c.l.b16 %v127
  %v263 = vunpack.c.l.b16 %v128
  %v264 = vunpack.c.l.b16 %v129
  %v265 = vunpack.c.l.b16 %v130
  %v266 = vunpack.c.l.b16 %v131
  %v267 = vunpack.c.l.b16 %v132
  %v268 = vunpack.c.l.b16 %v133
  %v269 = vunpack.c.l.b16 %v134
  %v270 = vunpack.c.l.b16 %v135
  %v271 = vunpack.c.l.b16 %v136
  %v272 = vunpack.c.l.b16 %v137
  %v273 = vunpack.c.l.b16 %v138
  %v274 = vunpack.c.l.b16 %v139
  %v275 = vunpack.c.l.b16 %v140
  %v276 = vunpack.c.l.b16 %v141
  %v277 = vunpack.c.l.b16 %v142
  %v278 = vunpack.c.l.b16 %v143
  %v279 = vunpack.c.l.b16 %v144
  %v280 = vunpack.c.l.b16 %v145
  %v281 = vunpack.c.l.b16 %v146
  %v282 = vunpack.c.l.b16 %v147
  %v283 = vunpack.c.l.b16 %v148
  %v284 = vunpack.c.l.b16 %v149
  %v285 = vunpack.c.l.b16 %v150
  %v286 = vunpack.c.l.b16 %v151
  %v287 = vunpack.c.l.b16 %v152
  %v288 = vunpack.c.l.b16 %v153
  %v289 = vunpack.c.l.b16 %v154
  %v290 = vunpack.c.l.b16 %v155
  %v291 = vunpack.c.l.b16 %v156
  %v292 = vunpack.c.l.b16 %v157
  %v293 = vunpack.c.l.b16 %v158
  %v294 = vunpack.c.l.b16 %v159
  %v295 = vunpack.c.l.b16 %v160
  %v296 = vunpack.c.l.b16 %v161
  %v297 = vunpack.c.l.b16 %v162
  %v298 = vunpack.c.l.b16 %v163
  %v299 = vunpack.c.l.b16 %v164
  %v300 = vunpack.c.l.b16 %v165
  %v301 = vunpack.c.l.b16 %v166
  %v302 = vunpack.c.l.b16 %v167
  %v303 = vunpack.c.l.b16 %v168
  %v304 = vunpack.c.l.b16 %v169
  %v305 = vunpack.c.l.b16 %v170
  %v306 = vunpack.c.l.b16 %v171
  %v307 = vunpack.c.l.b16 %v172
  %v308 = vunpack.c.l.b16 %v173
  %v309 = vunpack.c.l.b16 %v174
  %v310 = vunpack.c.l.b16 %v175
  %v311 = vunpack.c.l.b16 %v176
  %v312 = vunpack.c.l.b16 %v177
  %v313 = vunpack.c.l.b16 %v178
  %v314 = vunpack.c.l.b16 %v179
  %v315 = vunpack.c.l.b16 %v180
  %v316 = vunpack.c.l.b16 %v181
  %v317 = vunpack.c.l.b16 %v182
  %v318 = vunpack.c.l.b16 %v183
  %v319 = vpack.c.b16 %v256, %v255
  %v320 = vpack.c.b16 %v258, %v257
  %v321 = vpack.c.b16 %v260, %v259
  %v322 = vpack.c.b16 %v262, %v261
  %v323 = vpack.c.b16 %v264, %v263
  %v324 = vpack.c.b16 %v266, %v265
  %v325 = vpack.c.b16 %v268, %v267
  %v326 = vpack.c.b16 %v270, %v269
  %v327 = vpack.c.b16 %v272, %v271
  %v328 = vpack.c.b16 %v274, %v273
  %v329 = vpack.c.b16 %v276, %v275
  %v330 = vpack.c.b16 %v278, %v277
  %v331 = vpack.c.b16 %v280, %v279
  %v332 = vpack.c.b16 %v282, %v281
  %v333 = vpack.c.b16 %v284, %v283
  %v334 = vpack.c.b16 %v286, %v285
  %v335 = vpack.c.b16 %v288, %v287
  %v336 = vpack.c.b16 %v290, %v289
  %v337 = vpack.c.b16 %v292, %v291
  %v338 = vpack.c.b16 %v294, %v293
  %v339 = vpack.c.b16 %v296, %v295
  %v340 = vpack.c.b16 %v298, %v297
  %v341 = vpack.c.b16 %v300, %v299
  %v342 = vpack.c.b16 %v302, %v301
  %v343 = vpack.c.b16 %v304, %v303
  %v344 = vpack.c.b16 %v306, %v305
  %v345 = vpack.c.b16 %v308, %v307
  %v346 = vpack.c.b16 %v310, %v309
  %v347 = vpack.c.b16 %v312, %v311
  %v348 = vpack.c.b16 %v314, %v313
  %v349 = vpack.c.b16 %v316, %v315
  %v350 = vpack.c.b16 %v318, %v317
  %383 = vmatprep.subr.bf16.mxu0 0
  %384 = vmatpush1.bf16.msra.mxu0 %v319
  %385 = vmatprep.subr.bf16.mxu0 0
  %386 = vmatpush1.bf16.msra.mxu0 %v320
  %387 = vmatprep.subr.bf16.mxu0 0
  %388 = vmatpush1.bf16.msra.mxu0 %v321
  %389 = vmatprep.subr.bf16.mxu0 0
  %390 = vmatpush1.bf16.msra.mxu0 %v322
  %391 = vmatprep.subr.bf16.mxu0 0
  %392 = vmatpush1.bf16.msra.mxu0 %v323
  %393 = vmatprep.subr.bf16.mxu0 0
  %394 = vmatpush1.bf16.msra.mxu0 %v324
  %395 = vmatprep.subr.bf16.mxu0 0
  %396 = vmatpush1.bf16.msra.mxu0 %v325
  %397 = vmatprep.subr.bf16.mxu0 0
  %398 = vmatpush1.bf16.msra.mxu0 %v326
  %399 = vmatprep.subr.bf16.mxu0 0
  %400 = vmatpush1.bf16.msra.mxu0 %v327
  %401 = vmatprep.subr.bf16.mxu0 0
  %402 = vmatpush1.bf16.msra.mxu0 %v328
  %403 = vmatprep.subr.bf16.mxu0 0
  %404 = vmatpush1.bf16.msra.mxu0 %v329
  %405 = vmatprep.subr.bf16.mxu0 0
  %406 = vmatpush1.bf16.msra.mxu0 %v330
  %407 = vmatprep.subr.bf16.mxu0 0
  %408 = vmatpush1.bf16.msra.mxu0 %v331
  %409 = vmatprep.subr.bf16.mxu0 0
  %410 = vmatpush1.bf16.msra.mxu0 %v332
  %411 = vmatprep.subr.bf16.mxu0 0
  %412 = vmatpush1.bf16.msra.mxu0 %v333
  %413 = vmatprep.subr.bf16.mxu0 0
  %414 = vmatpush1.bf16.msra.mxu0 %v334
  %415 = vmatprep.mubr.bf16.mxu0 %v55
  %416 = vmatmul.mubr.bf16.gmra.mrb[0].mxu0 %v48
  %v417 = vpop.f32.mrb[0].mxu0
  %v418 = vadd.f32 %v189, %v417
  %v419 = vpop.f32.mrb[0].mxu0
  %v420 = vpop.f32.mrb[0].mxu0
  %v421 = vpop.f32.mrb[0].mxu0
  %422 = vdwg.mxu0
  %423 = vmatprep.subr.bf16.mxu0 0
  %424 = vmatpush1.bf16.msra.mxu0 %v335
  %425 = vmatprep.subr.bf16.mxu0 0
  %426 = vmatpush1.bf16.msra.mxu0 %v336
  %427 = vmatprep.subr.bf16.mxu0 0
  %428 = vmatpush1.bf16.msra.mxu0 %v337
  %429 = vmatprep.subr.bf16.mxu0 0
  %430 = vmatpush1.bf16.msra.mxu0 %v338
  %431 = vmatprep.subr.bf16.mxu0 0
  %432 = vmatpush1.bf16.msra.mxu0 %v339
  %433 = vmatprep.subr.bf16.mxu0 0
  %434 = vmatpush1.bf16.msra.mxu0 %v340
  %435 = vmatprep.subr.bf16.mxu0 0
  %436 = vmatpush1.bf16.msra.mxu0 %v341
  %437 = vmatprep.subr.bf16.mxu0 0
  %438 = vmatpush1.bf16.msra.mxu0 %v342
  %439 = vmatprep.subr.bf16.mxu0 0
  %440 = vmatpush1.bf16.msra.mxu0 %v343
  %441 = vmatprep.subr.bf16.mxu0 0
  %442 = vmatpush1.bf16.msra.mxu0 %v344
  %443 = vmatprep.subr.bf16.mxu0 0
  %444 = vmatpush1.bf16.msra.mxu0 %v345
  %445 = vmatprep.subr.bf16.mxu0 0
  %446 = vmatpush1.bf16.msra.mxu0 %v346
  %447 = vmatprep.subr.bf16.mxu0 0
  %448 = vmatpush1.bf16.msra.mxu0 %v347
  %449 = vmatprep.subr.bf16.mxu0 0
  %450 = vmatpush1.bf16.msra.mxu0 %v348
  %451 = vmatprep.subr.bf16.mxu0 0
  %452 = vmatpush1.bf16.msra.mxu0 %v349
  %453 = vmatprep.subr.bf16.mxu0 0
  %454 = vmatpush1.bf16.msra.mxu0 %v350
  %455 = vmatprep.mubr.bf16.mxu0 %v78
  %456 = vmatmul.mubr.bf16.gmra.mrb[0].mxu0 %v74
  %v457 = vpop.f32.mrb[0].mxu0
  %v458 = vadd.f32 %v418, %v457
  %v459 = vpop.f32.mrb[0].mxu0
  %v460 = vpop.f32.mrb[0].mxu0
  %v461 = vpop.f32.mrb[0].mxu0
  %462 = vdwg.mxu0
  %v463 = vmax.f32 %v458, 0.0
  %v464 = vpack.c.bf16 %v463, %v463
  %465 = vmatprep.subr.bf16.mxu0 0
  %466 = vmatpush1.bf16.msra.mxu0 %v319
  %467 = vmatprep.subr.bf16.mxu0 0
  %468 = vmatpush1.bf16.msra.mxu0 %v320
  %469 = vmatprep.subr.bf16.mxu0 0
  %470 = vmatpush1.bf16.msra.mxu0 %v321
  %471 = vmatprep.subr.bf16.mxu0 0
  %472 = vmatpush1.bf16.msra.mxu0 %v322
  %473 = vmatprep.subr.bf16.mxu0 0
  %474 = vmatpush1.bf16.msra.mxu0 %v323
  %475 = vmatprep.subr.bf16.mxu0 0
  %476 = vmatpush1.bf16.msra.mxu0 %v324
  %477 = vmatprep.subr.bf16.mxu0 0
  %478 = vmatpush1.bf16.msra.mxu0 %v325
  %479 = vmatprep.subr.bf16.mxu0 0
  %480 = vmatpush1.bf16.msra.mxu0 %v326
  %481 = vmatprep.subr.bf16.mxu0 0
  %482 = vmatpush1.bf16.msra.mxu0 %v327
  %483 = vmatprep.subr.bf16.mxu0 0
  %484 = vmatpush1.bf16.msra.mxu0 %v328
  %485 = vmatprep.subr.bf16.mxu0 0
  %486 = vmatpush1.bf16.msra.mxu0 %v329
  %487 = vmatprep.subr.bf16.mxu0 0
  %488 = vmatpush1.bf16.msra.mxu0 %v330
  %489 = vmatprep.subr.bf16.mxu0 0
  %490 = vmatpush1.bf16.msra.mxu0 %v331
  %491 = vmatprep.subr.bf16.mxu0 0
  %492 = vmatpush1.bf16.msra.mxu0 %v332
  %493 = vmatprep.subr.bf16.mxu0 0
  %494 = vmatpush1.bf16.msra.mxu0 %v333
  %495 = vmatprep.subr.bf16.mxu0 0
  %496 = vmatpush1.bf16.msra.mxu0 %v334
  %497 = vmatprep.mubr.bf16.mxu0 %v68
  %498 = vmatmul.mubr.bf16.gmra.mrb[0].mxu0 %v60
  %v499 = vpop.f32.mrb[0].mxu0
  %v500 = vadd.f32 %v189, %v499
  %v501 = vpop.f32.mrb[0].mxu0
  %v502 = vpop.f32.mrb[0].mxu0
  %v503 = vpop.f32.mrb[0].mxu0
  %504 = vdwg.mxu0
  %505 = vmatprep.subr.bf16.mxu0 0
  %506 = vmatpush1.bf16.msra.mxu0 %v335
  %507 = vmatprep.subr.bf16.mxu0 0
  %508 = vmatpush1.bf16.msra.mxu0 %v336
  %509 = vmatprep.subr.bf16.mxu0 0
  %510 = vmatpush1.bf16.msra.mxu0 %v337
  %511 = vmatprep.subr.bf16.mxu0 0
  %512 = vmatpush1.bf16.msra.mxu0 %v338
  %513 = vmatprep.subr.bf16.mxu0 0
  %514 = vmatpush1.bf16.msra.mxu0 %v339
  %515 = vmatprep.subr.bf16.mxu0 0
  %516 = vmatpush1.bf16.msra.mxu0 %v340
  %517 = vmatprep.subr.bf16.mxu0 0
  %518 = vmatpush1.bf16.msra.mxu0 %v341
  %519 = vmatprep.subr.bf16.mxu0 0
  %520 = vmatpush1.bf16.msra.mxu0 %v342
  %521 = vmatprep.subr.bf16.mxu0 0
  %522 = vmatpush1.bf16.msra.mxu0 %v343
  %523 = vmatprep.subr.bf16.mxu0 0
  %524 = vmatpush1.bf16.msra.mxu0 %v344
  %525 = vmatprep.subr.bf16.mxu0 0
  %526 = vmatpush1.bf16.msra.mxu0 %v345
  %527 = vmatprep.subr.bf16.mxu0 0
  %528 = vmatpush1.bf16.msra.mxu0 %v346
  %529 = vmatprep.subr.bf16.mxu0 0
  %530 = vmatpush1.bf16.msra.mxu0 %v347
  %531 = vmatprep.subr.bf16.mxu0 0
  %532 = vmatpush1.bf16.msra.mxu0 %v348
  %533 = vmatprep.subr.bf16.mxu0 0
  %534 = vmatpush1.bf16.msra.mxu0 %v349
  %535 = vmatprep.subr.bf16.mxu0 0
  %536 = vmatpush1.bf16.msra.mxu0 %v350
  %537 = vmatprep.mubr.bf16.mxu0 %v86
  %538 = vmatmul.mubr.bf16.gmra.mrb[0].mxu0 %v82
  %v539 = vpop.f32.mrb[0].mxu0
  %v540 = vadd.f32 %v500, %v539
  %v541 = vpop.f32.mrb[0].mxu0
  %v542 = vpop.f32.mrb[0].mxu0
  %v543 = vpop.f32.mrb[0].mxu0
  %544 = vdwg.mxu0
  %v545 = vmax.f32 %v540, 0.0
  %v546 = vpack.c.bf16 %v545, %v545
  %547 = vmatprep.subr.bf16.mxu0 0
  %548 = vmatpush1.bf16.msra.mxu0 %v319
  %549 = vmatprep.subr.bf16.mxu0 0
  %550 = vmatpush1.bf16.msra.mxu0 %v320
  %551 = vmatprep.subr.bf16.mxu0 0
  %552 = vmatpush1.bf16.msra.mxu0 %v321
  %553 = vmatprep.subr.bf16.mxu0 0
  %554 = vmatpush1.bf16.msra.mxu0 %v322
  %555 = vmatprep.subr.bf16.mxu0 0
  %556 = vmatpush1.bf16.msra.mxu0 %v323
  %557 = vmatprep.subr.bf16.mxu0 0
  %558 = vmatpush1.bf16.msra.mxu0 %v324
  %559 = vmatprep.subr.bf16.mxu0 0
  %560 = vmatpush1.bf16.msra.mxu0 %v325
  %561 = vmatprep.subr.bf16.mxu0 0
  %562 = vmatpush1.bf16.msra.mxu0 %v326
  %563 = vmatprep.subr.bf16.mxu0 0
  %564 = vmatpush1.bf16.msra.mxu0 %v327
  %565 = vmatprep.subr.bf16.mxu0 0
  %566 = vmatpush1.bf16.msra.mxu0 %v328
  %567 = vmatprep.subr.bf16.mxu0 0
  %568 = vmatpush1.bf16.msra.mxu0 %v329
  %569 = vmatprep.subr.bf16.mxu0 0
  %570 = vmatpush1.bf16.msra.mxu0 %v330
  %571 = vmatprep.subr.bf16.mxu0 0
  %572 = vmatpush1.bf16.msra.mxu0 %v331
  %573 = vmatprep.subr.bf16.mxu0 0
  %574 = vmatpush1.bf16.msra.mxu0 %v332
  %575 = vmatprep.subr.bf16.mxu0 0
  %576 = vmatpush1.bf16.msra.mxu0 %v333
  %577 = vmatprep.subr.bf16.mxu0 0
  %578 = vmatpush1.bf16.msra.mxu0 %v334
  %579 = vmatprep.mubr.bf16.mxu0 %v95
  %580 = vmatmul.mubr.bf16.gmra.mrb[0].mxu0 %v90
  %v581 = vpop.f32.mrb[0].mxu0
  %v582 = vadd.f32 %v189, %v581
  %v583 = vpop.f32.mrb[0].mxu0
  %v584 = vpop.f32.mrb[0].mxu0
  %v585 = vpop.f32.mrb[0].mxu0
  %586 = vdwg.mxu0
  %587 = vmatprep.subr.bf16.mxu0 0
  %588 = vmatpush1.bf16.msra.mxu0 %v335
  %589 = vmatprep.subr.bf16.mxu0 0
  %590 = vmatpush1.bf16.msra.mxu0 %v336
  %591 = vmatprep.subr.bf16.mxu0 0
  %592 = vmatpush1.bf16.msra.mxu0 %v337
  %593 = vmatprep.subr.bf16.mxu0 0
  %594 = vmatpush1.bf16.msra.mxu0 %v338
  %595 = vmatprep.subr.bf16.mxu0 0
  %596 = vmatpush1.bf16.msra.mxu0 %v339
  %597 = vmatprep.subr.bf16.mxu0 0
  %598 = vmatpush1.bf16.msra.mxu0 %v340
  %599 = vmatprep.subr.bf16.mxu0 0
  %600 = vmatpush1.bf16.msra.mxu0 %v341
  %601 = vmatprep.subr.bf16.mxu0 0
  %602 = vmatpush1.bf16.msra.mxu0 %v342
  %603 = vmatprep.subr.bf16.mxu0 0
  %604 = vmatpush1.bf16.msra.mxu0 %v343
  %605 = vmatprep.subr.bf16.mxu0 0
  %606 = vmatpush1.bf16.msra.mxu0 %v344
  %607 = vmatprep.subr.bf16.mxu0 0
  %608 = vmatpush1.bf16.msra.mxu0 %v345
  %609 = vmatprep.subr.bf16.mxu0 0
  %610 = vmatpush1.bf16.msra.mxu0 %v346
  %611 = vmatprep.subr.bf16.mxu0 0
  %612 = vmatpush1.bf16.msra.mxu0 %v347
  %613 = vmatprep.subr.bf16.mxu0 0
  %614 = vmatpush1.bf16.msra.mxu0 %v348
  %615 = vmatprep.subr.bf16.mxu0 0
  %616 = vmatpush1.bf16.msra.mxu0 %v349
  %617 = vmatprep.subr.bf16.mxu0 0
  %618 = vmatpush1.bf16.msra.mxu0 %v350
  %619 = vmatprep.mubr.bf16.mxu0 %v113
  %620 = vmatmul.mubr.bf16.gmra.mrb[0].mxu0 %v109
  %v621 = vpop.f32.mrb[0].mxu0
  %v622 = vadd.f32 %v582, %v621
  %v623 = vpop.f32.mrb[0].mxu0
  %v624 = vpop.f32.mrb[0].mxu0
  %v625 = vpop.f32.mrb[0].mxu0
  %626 = vdwg.mxu0
  %v627 = vmax.f32 %v622, 0.0
  %v628 = vpack.c.bf16 %v627, %v627
  %629 = vmatprep.subr.bf16.mxu0 0
  %630 = vmatpush1.bf16.msra.mxu0 %v319
  %631 = vmatprep.subr.bf16.mxu0 0
  %632 = vmatpush1.bf16.msra.mxu0 %v320
  %633 = vmatprep.subr.bf16.mxu0 0
  %634 = vmatpush1.bf16.msra.mxu0 %v321
  %635 = vmatprep.subr.bf16.mxu0 0
  %636 = vmatpush1.bf16.msra.mxu0 %v322
  %637 = vmatprep.subr.bf16.mxu0 0
  %638 = vmatpush1.bf16.msra.mxu0 %v323
  %639 = vmatprep.subr.bf16.mxu0 0
  %640 = vmatpush1.bf16.msra.mxu0 %v324
  %641 = vmatprep.subr.bf16.mxu0 0
  %642 = vmatpush1.bf16.msra.mxu0 %v325
  %643 = vmatprep.subr.bf16.mxu0 0
  %644 = vmatpush1.bf16.msra.mxu0 %v326
  %645 = vmatprep.subr.bf16.mxu0 0
  %646 = vmatpush1.bf16.msra.mxu0 %v327
  %647 = vmatprep.subr.bf16.mxu0 0
  %648 = vmatpush1.bf16.msra.mxu0 %v328
  %649 = vmatprep.subr.bf16.mxu0 0
  %650 = vmatpush1.bf16.msra.mxu0 %v329
  %651 = vmatprep.subr.bf16.mxu0 0
  %652 = vmatpush1.bf16.msra.mxu0 %v330
  %653 = vmatprep.subr.bf16.mxu0 0
  %654 = vmatpush1.bf16.msra.mxu0 %v331
  %655 = vmatprep.subr.bf16.mxu0 0
  %656 = vmatpush1.bf16.msra.mxu0 %v332
  %657 = vmatprep.subr.bf16.mxu0 0
  %658 = vmatpush1.bf16.msra.mxu0 %v333
  %659 = vmatprep.subr.bf16.mxu0 0
  %660 = vmatpush1.bf16.msra.mxu0 %v334
  %661 = vmatprep.mubr.bf16.mxu0 %v103
  %662 = vmatmul.mubr.bf16.gmra.mrb[0].mxu0 %v99
  %v663 = vpop.f32.mrb[0].mxu0
  %v664 = vadd.f32 %v189, %v663
  %v665 = vpop.f32.mrb[0].mxu0
  %v666 = vpop.f32.mrb[0].mxu0
  %v667 = vpop.f32.mrb[0].mxu0
  %668 = vdwg.mxu0
  %669 = vmatprep.subr.bf16.mxu0 0
  %670 = vmatpush1.bf16.msra.mxu0 %v335
  %671 = vmatprep.subr.bf16.mxu0 0
  %672 = vmatpush1.bf16.msra.mxu0 %v336
  %673 = vmatprep.subr.bf16.mxu0 0
  %674 = vmatpush1.bf16.msra.mxu0 %v337
  %675 = vmatprep.subr.bf16.mxu0 0
  %676 = vmatpush1.bf16.msra.mxu0 %v338
  %677 = vmatprep.subr.bf16.mxu0 0
  %678 = vmatpush1.bf16.msra.mxu0 %v339
  %679 = vmatprep.subr.bf16.mxu0 0
  %680 = vmatpush1.bf16.msra.mxu0 %v340
  %681 = vmatprep.subr.bf16.mxu0 0
  %682 = vmatpush1.bf16.msra.mxu0 %v341
  %683 = vmatprep.subr.bf16.mxu0 0
  %684 = vmatpush1.bf16.msra.mxu0 %v342
  %685 = vmatprep.subr.bf16.mxu0 0
  %686 = vmatpush1.bf16.msra.mxu0 %v343
  %687 = vmatprep.subr.bf16.mxu0 0
  %688 = vmatpush1.bf16.msra.mxu0 %v344
  %689 = vmatprep.subr.bf16.mxu0 0
  %690 = vmatpush1.bf16.msra.mxu0 %v345
  %691 = vmatprep.subr.bf16.mxu0 0
  %692 = vmatpush1.bf16.msra.mxu0 %v346
  %693 = vmatprep.subr.bf16.mxu0 0
  %694 = vmatpush1.bf16.msra.mxu0 %v347
  %695 = vmatprep.subr.bf16.mxu0 0
  %696 = vmatpush1.bf16.msra.mxu0 %v348
  %697 = vmatprep.subr.bf16.mxu0 0
  %698 = vmatpush1.bf16.msra.mxu0 %v349
  %699 = vmatprep.subr.bf16.mxu0 0
  %700 = vmatpush1.bf16.msra.mxu0 %v350
  %701 = vmatprep.mubr.bf16.mxu0 %v119
  %702 = vmatmul.mubr.bf16.gmra.mrb[0].mxu0 %v117
  %v703 = vpop.f32.mrb[0].mxu0
  %v704 = vadd.f32 %v664, %v703
  %v705 = vpop.f32.mrb[0].mxu0
  %v706 = vpop.f32.mrb[0].mxu0
  %v707 = vpop.f32.mrb[0].mxu0
  %708 = vdwg.mxu0
  %v709 = vmax.f32 %v704, 0.0
  %v710 = vpack.c.bf16 %v709, %v709
  %v711 = vld [vmem:[%s3] sm:$0xff]
  %v712 = vld [vmem:[%s3 + $0x8] sm:$0xff]
  %v713 = vld [vmem:[%s3 + $0x10] sm:$0xff]
  %v714 = vld [vmem:[%s3 + $0x18] sm:$0xff]
  %v715 = vld [vmem:[%s3 + $0x20] sm:$0xff]
  %v716 = vld [vmem:[%s3 + $0x28] sm:$0xff]
  %v717 = vld [vmem:[%s3 + $0x30] sm:$0xff]
  %v718 = vld [vmem:[%s3 + $0x38] sm:$0xff]
  %v719 = vld [vmem:[%s3 + $0x40] sm:$0xff]
  %v720 = vld [vmem:[%s3 + $0x48] sm:$0xff]
  %v721 = vld [vmem:[%s3 + $0x50] sm:$0xff]
  %v722 = vld [vmem:[%s3 + $0x58] sm:$0xff]
  %v723 = vld [vmem:[%s3 + $0x60] sm:$0xff]
  %v724 = vld [vmem:[%s3 + $0x68] sm:$0xff]
  %v725 = vld [vmem:[%s3 + $0x70] sm:$0xff]
  %v726 = vld [vmem:[%s3 + $0x78] sm:$0xff]
  %v727 = vld [vmem:[%s3 + $0x80] sm:$0xff]
  %v728 = vld [vmem:[%s3 + $0x88] sm:$0xff]
  %v729 = vld [vmem:[%s3 + $0x90] sm:$0xff]
  %v730 = vld [vmem:[%s3 + $0x98] sm:$0xff]
  %v731 = vld [vmem:[%s3 + $0xa0] sm:$0xff]
  %v732 = vld [vmem:[%s3 + $0xa8] sm:$0xff]
  %v733 = vld [vmem:[%s3 + $0xb0] sm:$0xff]
  %v734 = vld [vmem:[%s3 + $0xb8] sm:$0xff]
  %v735 = vld [vmem:[%s3 + $0xc0] sm:$0xff]
  %v736 = vld [vmem:[%s3 + $0xc8] sm:$0xff]
  %v737 = vld [vmem:[%s3 + $0xd0] sm:$0xff]
  %v738 = vld [vmem:[%s3 + $0xd8] sm:$0xff]
  %v739 = vld [vmem:[%s3 + $0xe0] sm:$0xff]
  %v740 = vld [vmem:[%s3 + $0xe8] sm:$0xff]
  %v741 = vld [vmem:[%s3 + $0xf0] sm:$0xff]
  %v742 = vld [vmem:[%s3 + $0xf8] sm:$0xff]
  %v743 = vld [vmem:[%s3 + $0x100] sm:$0xff]
  %v744 = vld [vmem:[%s3 + $0x108] sm:$0xff]
  %v745 = vld [vmem:[%s3 + $0x110] sm:$0xff]
  %v746 = vld [vmem:[%s3 + $0x118] sm:$0xff]
  %v747 = vld [vmem:[%s3 + $0x120] sm:$0xff]
  %v748 = vld [vmem:[%s3 + $0x128] sm:$0xff]
  %v749 = vld [vmem:[%s3 + $0x130] sm:$0xff]
  %v750 = vld [vmem:[%s3 + $0x138] sm:$0xff]
  %v751 = vld [vmem:[%s3 + $0x140] sm:$0xff]
  %v752 = vld [vmem:[%s3 + $0x148] sm:$0xff]
  %v753 = vld [vmem:[%s3 + $0x150] sm:$0xff]
  %v754 = vld [vmem:[%s3 + $0x158] sm:$0xff]
  %v755 = vld [vmem:[%s3 + $0x160] sm:$0xff]
  %v756 = vld [vmem:[%s3 + $0x168] sm:$0xff]
  %v757 = vld [vmem:[%s3 + $0x170] sm:$0xff]
  %v758 = vld [vmem:[%s3 + $0x178] sm:$0xff]
  %v759 = vld [vmem:[%s3 + $0x180] sm:$0xff]
  %v760 = vld [vmem:[%s3 + $0x188] sm:$0xff]
  %v761 = vld [vmem:[%s3 + $0x190] sm:$0xff]
  %v762 = vld [vmem:[%s3 + $0x198] sm:$0xff]
  %v763 = vld [vmem:[%s3 + $0x1a0] sm:$0xff]
  %v764 = vld [vmem:[%s3 + $0x1a8] sm:$0xff]
  %v765 = vld [vmem:[%s3 + $0x1b0] sm:$0xff]
  %v766 = vld [vmem:[%s3 + $0x1b8] sm:$0xff]
  %v767 = vld [vmem:[%s3 + $0x1c0] sm:$0xff]
  %v768 = vld [vmem:[%s3 + $0x1c8] sm:$0xff]
  %v769 = vld [vmem:[%s3 + $0x1d0] sm:$0xff]
  %v770 = vld [vmem:[%s3 + $0x1d8] sm:$0xff]
  %v771 = vld [vmem:[%s3 + $0x1e0] sm:$0xff]
  %v772 = vld [vmem:[%s3 + $0x1e8] sm:$0xff]
  %v773 = vld [vmem:[%s3 + $0x1f0] sm:$0xff]
  %v774 = vld [vmem:[%s3 + $0x1f8] sm:$0xff]
  %v775 = vld [vmem:[%s3 + $0x200] sm:$0xff]
  %v776 = vld [vmem:[%s3 + $0x208] sm:$0xff]
  %v777 = vld [vmem:[%s3 + $0x210] sm:$0xff]
  %v778 = vld [vmem:[%s3 + $0x218] sm:$0xff]
  %v779 = vld [vmem:[%s3 + $0x220] sm:$0xff]
  %v780 = vld [vmem:[%s3 + $0x228] sm:$0xff]
  %v781 = vld [vmem:[%s3 + $0x230] sm:$0xff]
  %v782 = vld [vmem:[%s3 + $0x238] sm:$0xff]
  %v783 = vld [vmem:[%s3 + $0x240] sm:$0xff]
  %v784 = vld [vmem:[%s3 + $0x248] sm:$0xff]
  %v785 = vld [vmem:[%s3 + $0x250] sm:$0xff]
  %v786 = vld [vmem:[%s3 + $0x258] sm:$0xff]
  %v787 = vld [vmem:[%s3 + $0x260] sm:$0xff]
  %v788 = vld [vmem:[%s3 + $0x268] sm:$0xff]
  %v789 = vld [vmem:[%s3 + $0x270] sm:$0xff]
  %v790 = vld [vmem:[%s3 + $0x278] sm:$0xff]
  %v791 = vld [vmem:[%s3 + $0x280] sm:$0xff]
  %v792 = vld [vmem:[%s3 + $0x288] sm:$0xff]
  %v793 = vld [vmem:[%s3 + $0x290] sm:$0xff]
  %v794 = vld [vmem:[%s3 + $0x298] sm:$0xff]
  %v795 = vld [vmem:[%s3 + $0x2a0] sm:$0xff]
  %v796 = vld [vmem:[%s3 + $0x2a8] sm:$0xff]
  %v797 = vld [vmem:[%s3 + $0x2b0] sm:$0xff]
  %v798 = vld [vmem:[%s3 + $0x2b8] sm:$0xff]
  %v799 = vld [vmem:[%s3 + $0x2c0] sm:$0xff]
  %v800 = vld [vmem:[%s3 + $0x2c8] sm:$0xff]
  %v801 = vld [vmem:[%s3 + $0x2d0] sm:$0xff]
  %v802 = vld [vmem:[%s3 + $0x2d8] sm:$0xff]
  %v803 = vld [vmem:[%s3 + $0x2e0] sm:$0xff]
  %v804 = vld [vmem:[%s3 + $0x2e8] sm:$0xff]
  %v805 = vld [vmem:[%s3 + $0x2f0] sm:$0xff]
  %v806 = vld [vmem:[%s3 + $0x2f8] sm:$0xff]
  %v807 = vld [vmem:[%s3 + $0x300] sm:$0xff]
  %v808 = vld [vmem:[%s3 + $0x308] sm:$0xff]
  %v809 = vld [vmem:[%s3 + $0x310] sm:$0xff]
  %v810 = vld [vmem:[%s3 + $0x318] sm:$0xff]
  %v811 = vld [vmem:[%s3 + $0x320] sm:$0xff]
  %v812 = vld [vmem:[%s3 + $0x328] sm:$0xff]
  %v813 = vld [vmem:[%s3 + $0x330] sm:$0xff]
  %v814 = vld [vmem:[%s3 + $0x338] sm:$0xff]
  %v815 = vld [vmem:[%s3 + $0x340] sm:$0xff]
  %v816 = vld [vmem:[%s3 + $0x348] sm:$0xff]
  %v817 = vld [vmem:[%s3 + $0x350] sm:$0xff]
  %v818 = vld [vmem:[%s3 + $0x358] sm:$0xff]
  %v819 = vld [vmem:[%s3 + $0x360] sm:$0xff]
  %v820 = vld [vmem:[%s3 + $0x368] sm:$0xff]
  %v821 = vld [vmem:[%s3 + $0x370] sm:$0xff]
  %v822 = vld [vmem:[%s3 + $0x378] sm:$0xff]
  %v823 = vld [vmem:[%s3 + $0x380] sm:$0xff]
  %v824 = vld [vmem:[%s3 + $0x388] sm:$0xff]
  %v825 = vld [vmem:[%s3 + $0x390] sm:$0xff]
  %v826 = vld [vmem:[%s3 + $0x398] sm:$0xff]
  %v827 = vld [vmem:[%s3 + $0x3a0] sm:$0xff]
  %v828 = vld [vmem:[%s3 + $0x3a8] sm:$0xff]
  %v829 = vld [vmem:[%s3 + $0x3b0] sm:$0xff]
  %v830 = vld [vmem:[%s3 + $0x3b8] sm:$0xff]
  %v831 = vld [vmem:[%s3 + $0x3c0] sm:$0xff]
  %v832 = vld [vmem:[%s3 + $0x3c8] sm:$0xff]
  %v833 = vld [vmem:[%s3 + $0x3d0] sm:$0xff]
  %v834 = vld [vmem:[%s3 + $0x3d8] sm:$0xff]
  %v835 = vld [vmem:[%s3 + $0x3e0] sm:$0xff]
  %v836 = vld [vmem:[%s3 + $0x3e8] sm:$0xff]
  %v837 = vld [vmem:[%s3 + $0x3f0] sm:$0xff]
  %v838 = vld [vmem:[%s3 + $0x3f8] sm:$0xff]
  %v839 = vld [vmem:[%s3 + $0x400] sm:$0xff]
  %v840 = vld [vmem:[%s3 + $0x408] sm:$0xff]
  %v841 = vld [vmem:[%s3 + $0x410] sm:$0xff]
  %v842 = vld [vmem:[%s3 + $0x418] sm:$0xff]
  %v843 = vld [vmem:[%s3 + $0x420] sm:$0xff]
  %v844 = vld [vmem:[%s3 + $0x428] sm:$0xff]
  %v845 = vld [vmem:[%s3 + $0x430] sm:$0xff]
  %v846 = vld [vmem:[%s3 + $0x438] sm:$0xff]
  %v847 = vld [vmem:[%s3 + $0x440] sm:$0xff]
  %v848 = vld [vmem:[%s3 + $0x448] sm:$0xff]
  %v849 = vld [vmem:[%s3 + $0x450] sm:$0xff]
  %v850 = vld [vmem:[%s3 + $0x458] sm:$0xff]
  %v851 = vld [vmem:[%s3 + $0x460] sm:$0xff]
  %v852 = vld [vmem:[%s3 + $0x468] sm:$0xff]
  %v853 = vld [vmem:[%s3 + $0x470] sm:$0xff]
  %v854 = vld [vmem:[%s3 + $0x478] sm:$0xff]
  %v855 = vld [vmem:[%s3 + $0x480] sm:$0xff]
  %v856 = vld [vmem:[%s3 + $0x488] sm:$0xff]
  %v857 = vld [vmem:[%s3 + $0x490] sm:$0xff]
  %v858 = vld [vmem:[%s3 + $0x498] sm:$0xff]
  %v859 = vld [vmem:[%s3 + $0x4a0] sm:$0xff]
  %v860 = vld [vmem:[%s3 + $0x4a8] sm:$0xff]
  %v861 = vld [vmem:[%s3 + $0x4b0] sm:$0xff]
  %v862 = vld [vmem:[%s3 + $0x4b8] sm:$0xff]
  %v863 = vld [vmem:[%s3 + $0x4c0] sm:$0xff]
  %v864 = vld [vmem:[%s3 + $0x4c8] sm:$0xff]
  %v865 = vld [vmem:[%s3 + $0x4d0] sm:$0xff]
  %v866 = vld [vmem:[%s3 + $0x4d8] sm:$0xff]
  %v867 = vld [vmem:[%s3 + $0x4e0] sm:$0xff]
  %v868 = vld [vmem:[%s3 + $0x4e8] sm:$0xff]
  %v869 = vld [vmem:[%s3 + $0x4f0] sm:$0xff]
  %v870 = vld [vmem:[%s3 + $0x4f8] sm:$0xff]
  %v871 = vld [vmem:[%s3 + $0x500] sm:$0xff]
  %v872 = vld [vmem:[%s3 + $0x508] sm:$0xff]
  %v873 = vld [vmem:[%s3 + $0x510] sm:$0xff]
  %v874 = vld [vmem:[%s3 + $0x518] sm:$0xff]
  %v875 = vld [vmem:[%s3 + $0x520] sm:$0xff]
  %v876 = vld [vmem:[%s3 + $0x528] sm:$0xff]
  %v877 = vld [vmem:[%s3 + $0x530] sm:$0xff]
  %v878 = vld [vmem:[%s3 + $0x538] sm:$0xff]
  %v879 = vld [vmem:[%s3 + $0x540] sm:$0xff]
  %v880 = vld [vmem:[%s3 + $0x548] sm:$0xff]
  %v881 = vld [vmem:[%s3 + $0x550] sm:$0xff]
  %v882 = vld [vmem:[%s3 + $0x558] sm:$0xff]
  %v883 = vld [vmem:[%s3 + $0x560] sm:$0xff]
  %v884 = vld [vmem:[%s3 + $0x568] sm:$0xff]
  %v885 = vld [vmem:[%s3 + $0x570] sm:$0xff]
  %v886 = vld [vmem:[%s3 + $0x578] sm:$0xff]
  %v887 = vld [vmem:[%s3 + $0x580] sm:$0xff]
  %v888 = vld [vmem:[%s3 + $0x588] sm:$0xff]
  %v889 = vld [vmem:[%s3 + $0x590] sm:$0xff]
  %v890 = vld [vmem:[%s3 + $0x598] sm:$0xff]
  %v891 = vld [vmem:[%s3 + $0x5a0] sm:$0xff]
  %v892 = vld [vmem:[%s3 + $0x5a8] sm:$0xff]
  %v893 = vld [vmem:[%s3 + $0x5b0] sm:$0xff]
  %v894 = vld [vmem:[%s3 + $0x5b8] sm:$0xff]
  %v895 = vld [vmem:[%s3 + $0x5c0] sm:$0xff]
  %v896 = vld [vmem:[%s3 + $0x5c8] sm:$0xff]
  %v897 = vld [vmem:[%s3 + $0x5d0] sm:$0xff]
  %v898 = vld [vmem:[%s3 + $0x5d8] sm:$0xff]
  %v899 = vld [vmem:[%s3 + $0x5e0] sm:$0xff]
  %v900 = vld [vmem:[%s3 + $0x5e8] sm:$0xff]
  %v901 = vld [vmem:[%s3 + $0x5f0] sm:$0xff]
  %v902 = vld [vmem:[%s3 + $0x5f8] sm:$0xff]
  %v903 = vld [vmem:[%s4] sm:$0x3f]
  %v905 = vlaneseq
  %v906 = vshrl.u32 %v905, 7
  %v907 = vsub.s32 0, %v906
  %v908 = vrot.slane %v903, %v907
  %v909 = vlaneseq
  %v910 = vshrl.u32 %v909, 7
  %v911 = vsub.s32 1, %v910
  %v912 = vrot.slane %v903, %v911
  %v913 = vlaneseq
  %v914 = vshrl.u32 %v913, 7
  %v915 = vsub.s32 2, %v914
  %v916 = vrot.slane %v903, %v915
  %v917 = vlaneseq
  %v918 = vshrl.u32 %v917, 7
  %v919 = vsub.s32 3, %v918
  %v920 = vrot.slane %v903, %v919
  %v921 = vlaneseq
  %v922 = vshrl.u32 %v921, 7
  %v923 = vsub.s32 4, %v922
  %v924 = vrot.slane %v903, %v923
  %v925 = vlaneseq
  %v926 = vshrl.u32 %v925, 7
  %v927 = vsub.s32 5, %v926
  %v928 = vrot.slane %v903, %v927
  %v1127 = vunpack.c.l.b16 %v711
  %v1128 = vunpack.c.h.b16 %v711
  %v1129 = vunpack.c.l.b16 %v712
  %v1130 = vunpack.c.h.b16 %v712
  %v1131 = vunpack.c.l.b16 %v713
  %v1132 = vunpack.c.h.b16 %v713
  %v1133 = vunpack.c.l.b16 %v714
  %v1134 = vunpack.c.h.b16 %v714
  %v1135 = vunpack.c.l.b16 %v715
  %v1136 = vunpack.c.h.b16 %v715
  %v1137 = vunpack.c.l.b16 %v716
  %v1138 = vunpack.c.h.b16 %v716
  %v1139 = vunpack.c.l.b16 %v717
  %v1140 = vunpack.c.h.b16 %v717
  %v1141 = vunpack.c.l.b16 %v718
  %v1142 = vunpack.c.h.b16 %v718
  %v1143 = vunpack.c.l.b16 %v719
  %v1144 = vunpack.c.h.b16 %v719
  %v1145 = vunpack.c.l.b16 %v720
  %v1146 = vunpack.c.h.b16 %v720
  %v1147 = vunpack.c.l.b16 %v721
  %v1148 = vunpack.c.h.b16 %v721
  %v1149 = vunpack.c.l.b16 %v722
  %v1150 = vunpack.c.h.b16 %v722
  %v1151 = vunpack.c.l.b16 %v723
  %v1152 = vunpack.c.h.b16 %v723
  %v1153 = vunpack.c.l.b16 %v724
  %v1154 = vunpack.c.h.b16 %v724
  %v1155 = vunpack.c.l.b16 %v725
  %v1156 = vunpack.c.h.b16 %v725
  %v1157 = vunpack.c.l.b16 %v726
  %v1158 = vunpack.c.h.b16 %v726
  %v1159 = vunpack.c.l.b16 %v727
  %v1160 = vunpack.c.h.b16 %v727
  %v1161 = vunpack.c.l.b16 %v728
  %v1162 = vunpack.c.h.b16 %v728
  %v1163 = vunpack.c.l.b16 %v729
  %v1164 = vunpack.c.h.b16 %v729
  %v1165 = vunpack.c.l.b16 %v730
  %v1166 = vunpack.c.h.b16 %v730
  %v1167 = vunpack.c.l.b16 %v731
  %v1168 = vunpack.c.h.b16 %v731
  %v1169 = vunpack.c.l.b16 %v732
  %v1170 = vunpack.c.h.b16 %v732
  %v1171 = vunpack.c.l.b16 %v733
  %v1172 = vunpack.c.h.b16 %v733
  %v1173 = vunpack.c.l.b16 %v734
  %v1174 = vunpack.c.h.b16 %v734
  %v1175 = vunpack.c.l.b16 %v735
  %v1176 = vunpack.c.h.b16 %v735
  %v1177 = vunpack.c.l.b16 %v736
  %v1178 = vunpack.c.h.b16 %v736
  %v1179 = vunpack.c.l.b16 %v737
  %v1180 = vunpack.c.h.b16 %v737
  %v1181 = vunpack.c.l.b16 %v738
  %v1182 = vunpack.c.h.b16 %v738
  %v1183 = vunpack.c.l.b16 %v739
  %v1184 = vunpack.c.h.b16 %v739
  %v1185 = vunpack.c.l.b16 %v740
  %v1186 = vunpack.c.h.b16 %v740
  %v1187 = vunpack.c.l.b16 %v741
  %v1188 = vunpack.c.h.b16 %v741
  %v1189 = vunpack.c.l.b16 %v742
  %v1190 = vunpack.c.h.b16 %v742
  %v1191 = vunpack.c.l.b16 %v743
  %v1192 = vunpack.c.h.b16 %v743
  %v1193 = vunpack.c.l.b16 %v744
  %v1194 = vunpack.c.h.b16 %v744
  %v1195 = vunpack.c.l.b16 %v745
  %v1196 = vunpack.c.h.b16 %v745
  %v1197 = vunpack.c.l.b16 %v746
  %v1198 = vunpack.c.h.b16 %v746
  %v1199 = vunpack.c.l.b16 %v747
  %v1200 = vunpack.c.h.b16 %v747
  %v1201 = vunpack.c.l.b16 %v748
  %v1202 = vunpack.c.h.b16 %v748
  %v1203 = vunpack.c.l.b16 %v749
  %v1204 = vunpack.c.h.b16 %v749
  %v1205 = vunpack.c.l.b16 %v750
  %v1206 = vunpack.c.h.b16 %v750
  %v1207 = vunpack.c.l.b16 %v751
  %v1208 = vunpack.c.h.b16 %v751
  %v1209 = vunpack.c.l.b16 %v752
  %v1210 = vunpack.c.h.b16 %v752
  %v1211 = vunpack.c.l.b16 %v753
  %v1212 = vunpack.c.h.b16 %v753
  %v1213 = vunpack.c.l.b16 %v754
  %v1214 = vunpack.c.h.b16 %v754
  %v1215 = vunpack.c.l.b16 %v755
  %v1216 = vunpack.c.h.b16 %v755
  %v1217 = vunpack.c.l.b16 %v756
  %v1218 = vunpack.c.h.b16 %v756
  %v1219 = vunpack.c.l.b16 %v757
  %v1220 = vunpack.c.h.b16 %v757
  %v1221 = vunpack.c.l.b16 %v758
  %v1222 = vunpack.c.h.b16 %v758
  %v1223 = vunpack.c.l.b16 %v759
  %v1224 = vunpack.c.h.b16 %v759
  %v1225 = vunpack.c.l.b16 %v760
  %v1226 = vunpack.c.h.b16 %v760
  %v1227 = vunpack.c.l.b16 %v761
  %v1228 = vunpack.c.h.b16 %v761
  %v1229 = vunpack.c.l.b16 %v762
  %v1230 = vunpack.c.h.b16 %v762
  %v1231 = vunpack.c.l.b16 %v763
  %v1232 = vunpack.c.h.b16 %v763
  %v1233 = vunpack.c.l.b16 %v764
  %v1234 = vunpack.c.h.b16 %v764
  %v1235 = vunpack.c.l.b16 %v765
  %v1236 = vunpack.c.h.b16 %v765
  %v1237 = vunpack.c.l.b16 %v766
  %v1238 = vunpack.c.h.b16 %v766
  %v1239 = vunpack.c.l.b16 %v767
  %v1240 = vunpack.c.h.b16 %v767
  %v1241 = vunpack.c.l.b16 %v768
  %v1242 = vunpack.c.h.b16 %v768
  %v1243 = vunpack.c.l.b16 %v769
  %v1244 = vunpack.c.h.b16 %v769
  %v1245 = vunpack.c.l.b16 %v770
  %v1246 = vunpack.c.h.b16 %v770
  %v1247 = vunpack.c.l.b16 %v771
  %v1248 = vunpack.c.h.b16 %v771
  %v1249 = vunpack.c.l.b16 %v772
  %v1250 = vunpack.c.h.b16 %v772
  %v1251 = vunpack.c.l.b16 %v773
  %v1252 = vunpack.c.h.b16 %v773
  %v1253 = vunpack.c.l.b16 %v774
  %v1254 = vunpack.c.h.b16 %v774
  %v1255 = vunpack.c.l.b16 %v775
  %v1256 = vunpack.c.h.b16 %v775
  %v1257 = vunpack.c.l.b16 %v776
  %v1258 = vunpack.c.h.b16 %v776
  %v1259 = vunpack.c.l.b16 %v777
  %v1260 = vunpack.c.h.b16 %v777
  %v1261 = vunpack.c.l.b16 %v778
  %v1262 = vunpack.c.h.b16 %v778
  %v1263 = vunpack.c.l.b16 %v779
  %v1264 = vunpack.c.h.b16 %v779
  %v1265 = vunpack.c.l.b16 %v780
  %v1266 = vunpack.c.h.b16 %v780
  %v1267 = vunpack.c.l.b16 %v781
  %v1268 = vunpack.c.h.b16 %v781
  %v1269 = vunpack.c.l.b16 %v782
  %v1270 = vunpack.c.h.b16 %v782
  %v1271 = vunpack.c.l.b16 %v783
  %v1272 = vunpack.c.h.b16 %v783
  %v1273 = vunpack.c.l.b16 %v784
  %v1274 = vunpack.c.h.b16 %v784
  %v1275 = vunpack.c.l.b16 %v785
  %v1276 = vunpack.c.h.b16 %v785
  %v1277 = vunpack.c.l.b16 %v786
  %v1278 = vunpack.c.h.b16 %v786
  %v1279 = vunpack.c.l.b16 %v787
  %v1280 = vunpack.c.h.b16 %v787
  %v1281 = vunpack.c.l.b16 %v788
  %v1282 = vunpack.c.h.b16 %v788
  %v1283 = vunpack.c.l.b16 %v789
  %v1284 = vunpack.c.h.b16 %v789
  %v1285 = vunpack.c.l.b16 %v790
  %v1286 = vunpack.c.h.b16 %v790
  %v1287 = vunpack.c.l.b16 %v791
  %v1288 = vunpack.c.h.b16 %v791
  %v1289 = vunpack.c.l.b16 %v792
  %v1290 = vunpack.c.h.b16 %v792
  %v1291 = vunpack.c.l.b16 %v793
  %v1292 = vunpack.c.h.b16 %v793
  %v1293 = vunpack.c.l.b16 %v794
  %v1294 = vunpack.c.h.b16 %v794
  %v1295 = vunpack.c.l.b16 %v795
  %v1296 = vunpack.c.h.b16 %v795
  %v1297 = vunpack.c.l.b16 %v796
  %v1298 = vunpack.c.h.b16 %v796
  %v1299 = vunpack.c.l.b16 %v797
  %v1300 = vunpack.c.h.b16 %v797
  %v1301 = vunpack.c.l.b16 %v798
  %v1302 = vunpack.c.h.b16 %v798
  %v1303 = vunpack.c.l.b16 %v799
  %v1304 = vunpack.c.h.b16 %v799
  %v1305 = vunpack.c.l.b16 %v800
  %v1306 = vunpack.c.h.b16 %v800
  %v1307 = vunpack.c.l.b16 %v801
  %v1308 = vunpack.c.h.b16 %v801
  %v1309 = vunpack.c.l.b16 %v802
  %v1310 = vunpack.c.h.b16 %v802
  %v1311 = vunpack.c.l.b16 %v803
  %v1312 = vunpack.c.h.b16 %v803
  %v1313 = vunpack.c.l.b16 %v804
  %v1314 = vunpack.c.h.b16 %v804
  %v1315 = vunpack.c.l.b16 %v805
  %v1316 = vunpack.c.h.b16 %v805
  %v1317 = vunpack.c.l.b16 %v806
  %v1318 = vunpack.c.h.b16 %v806
  %v1319 = vunpack.c.l.b16 %v807
  %v1320 = vunpack.c.h.b16 %v807
  %v1321 = vunpack.c.l.b16 %v808
  %v1322 = vunpack.c.h.b16 %v808
  %v1323 = vunpack.c.l.b16 %v809
  %v1324 = vunpack.c.h.b16 %v809
  %v1325 = vunpack.c.l.b16 %v810
  %v1326 = vunpack.c.h.b16 %v810
  %v1327 = vunpack.c.l.b16 %v811
  %v1328 = vunpack.c.h.b16 %v811
  %v1329 = vunpack.c.l.b16 %v812
  %v1330 = vunpack.c.h.b16 %v812
  %v1331 = vunpack.c.l.b16 %v813
  %v1332 = vunpack.c.h.b16 %v813
  %v1333 = vunpack.c.l.b16 %v814
  %v1334 = vunpack.c.h.b16 %v814
  %v1335 = vunpack.c.l.b16 %v815
  %v1336 = vunpack.c.h.b16 %v815
  %v1337 = vunpack.c.l.b16 %v816
  %v1338 = vunpack.c.h.b16 %v816
  %v1339 = vunpack.c.l.b16 %v817
  %v1340 = vunpack.c.h.b16 %v817
  %v1341 = vunpack.c.l.b16 %v818
  %v1342 = vunpack.c.h.b16 %v818
  %v1343 = vunpack.c.l.b16 %v819
  %v1344 = vunpack.c.h.b16 %v819
  %v1345 = vunpack.c.l.b16 %v820
  %v1346 = vunpack.c.h.b16 %v820
  %v1347 = vunpack.c.l.b16 %v821
  %v1348 = vunpack.c.h.b16 %v821
  %v1349 = vunpack.c.l.b16 %v822
  %v1350 = vunpack.c.h.b16 %v822
  %v1351 = vunpack.c.l.b16 %v823
  %v1352 = vunpack.c.h.b16 %v823
  %v1353 = vunpack.c.l.b16 %v824
  %v1354 = vunpack.c.h.b16 %v824
  %v1355 = vunpack.c.l.b16 %v825
  %v1356 = vunpack.c.h.b16 %v825
  %v1357 = vunpack.c.l.b16 %v826
  %v1358 = vunpack.c.h.b16 %v826
  %v1359 = vunpack.c.l.b16 %v827
  %v1360 = vunpack.c.h.b16 %v827
  %v1361 = vunpack.c.l.b16 %v828
  %v1362 = vunpack.c.h.b16 %v828
  %v1363 = vunpack.c.l.b16 %v829
  %v1364 = vunpack.c.h.b16 %v829
  %v1365 = vunpack.c.l.b16 %v830
  %v1366 = vunpack.c.h.b16 %v830
  %v1367 = vunpack.c.l.b16 %v831
  %v1368 = vunpack.c.h.b16 %v831
  %v1369 = vunpack.c.l.b16 %v832
  %v1370 = vunpack.c.h.b16 %v832
  %v1371 = vunpack.c.l.b16 %v833
  %v1372 = vunpack.c.h.b16 %v833
  %v1373 = vunpack.c.l.b16 %v834
  %v1374 = vunpack.c.h.b16 %v834
  %v1375 = vunpack.c.l.b16 %v835
  %v1376 = vunpack.c.h.b16 %v835
  %v1377 = vunpack.c.l.b16 %v836
  %v1378 = vunpack.c.h.b16 %v836
  %v1379 = vunpack.c.l.b16 %v837
  %v1380 = vunpack.c.h.b16 %v837
  %v1381 = vunpack.c.l.b16 %v838
  %v1382 = vunpack.c.h.b16 %v838
  %v1383 = vunpack.c.l.b16 %v839
  %v1384 = vunpack.c.h.b16 %v839
  %v1385 = vunpack.c.l.b16 %v840
  %v1386 = vunpack.c.h.b16 %v840
  %v1387 = vunpack.c.l.b16 %v841
  %v1388 = vunpack.c.h.b16 %v841
  %v1389 = vunpack.c.l.b16 %v842
  %v1390 = vunpack.c.h.b16 %v842
  %v1391 = vunpack.c.l.b16 %v843
  %v1392 = vunpack.c.h.b16 %v843
  %v1393 = vunpack.c.l.b16 %v844
  %v1394 = vunpack.c.h.b16 %v844
  %v1395 = vunpack.c.l.b16 %v845
  %v1396 = vunpack.c.h.b16 %v845
  %v1397 = vunpack.c.l.b16 %v846
  %v1398 = vunpack.c.h.b16 %v846
  %v1399 = vunpack.c.l.b16 %v847
  %v1400 = vunpack.c.h.b16 %v847
  %v1401 = vunpack.c.l.b16 %v848
  %v1402 = vunpack.c.h.b16 %v848
  %v1403 = vunpack.c.l.b16 %v849
  %v1404 = vunpack.c.h.b16 %v849
  %v1405 = vunpack.c.l.b16 %v850
  %v1406 = vunpack.c.h.b16 %v850
  %v1407 = vunpack.c.l.b16 %v851
  %v1408 = vunpack.c.h.b16 %v851
  %v1409 = vunpack.c.l.b16 %v852
  %v1410 = vunpack.c.h.b16 %v852
  %v1411 = vunpack.c.l.b16 %v853
  %v1412 = vunpack.c.h.b16 %v853
  %v1413 = vunpack.c.l.b16 %v854
  %v1414 = vunpack.c.h.b16 %v854
  %v1415 = vunpack.c.l.b16 %v855
  %v1416 = vunpack.c.h.b16 %v855
  %v1417 = vunpack.c.l.b16 %v856
  %v1418 = vunpack.c.h.b16 %v856
  %v1419 = vunpack.c.l.b16 %v857
  %v1420 = vunpack.c.h.b16 %v857
  %v1421 = vunpack.c.l.b16 %v858
  %v1422 = vunpack.c.h.b16 %v858
  %v1423 = vunpack.c.l.b16 %v859
  %v1424 = vunpack.c.h.b16 %v859
  %v1425 = vunpack.c.l.b16 %v860
  %v1426 = vunpack.c.h.b16 %v860
  %v1427 = vunpack.c.l.b16 %v861
  %v1428 = vunpack.c.h.b16 %v861
  %v1429 = vunpack.c.l.b16 %v862
  %v1430 = vunpack.c.h.b16 %v862
  %v1431 = vunpack.c.l.b16 %v863
  %v1432 = vunpack.c.h.b16 %v863
  %v1433 = vunpack.c.l.b16 %v864
  %v1434 = vunpack.c.h.b16 %v864
  %v1435 = vunpack.c.l.b16 %v865
  %v1436 = vunpack.c.h.b16 %v865
  %v1437 = vunpack.c.l.b16 %v866
  %v1438 = vunpack.c.h.b16 %v866
  %v1439 = vunpack.c.l.b16 %v867
  %v1440 = vunpack.c.h.b16 %v867
  %v1441 = vunpack.c.l.b16 %v868
  %v1442 = vunpack.c.h.b16 %v868
  %v1443 = vunpack.c.l.b16 %v869
  %v1444 = vunpack.c.h.b16 %v869
  %v1445 = vunpack.c.l.b16 %v870
  %v1446 = vunpack.c.h.b16 %v870
  %v1447 = vunpack.c.l.b16 %v871
  %v1448 = vunpack.c.h.b16 %v871
  %v1449 = vunpack.c.l.b16 %v872
  %v1450 = vunpack.c.h.b16 %v872
  %v1451 = vunpack.c.l.b16 %v873
  %v1452 = vunpack.c.h.b16 %v873
  %v1453 = vunpack.c.l.b16 %v874
  %v1454 = vunpack.c.h.b16 %v874
  %v1455 = vunpack.c.l.b16 %v875
  %v1456 = vunpack.c.h.b16 %v875
  %v1457 = vunpack.c.l.b16 %v876
  %v1458 = vunpack.c.h.b16 %v876
  %v1459 = vunpack.c.l.b16 %v877
  %v1460 = vunpack.c.h.b16 %v877
  %v1461 = vunpack.c.l.b16 %v878
  %v1462 = vunpack.c.h.b16 %v878
  %v1463 = vunpack.c.l.b16 %v879
  %v1464 = vunpack.c.h.b16 %v879
  %v1465 = vunpack.c.l.b16 %v880
  %v1466 = vunpack.c.h.b16 %v880
  %v1467 = vunpack.c.l.b16 %v881
  %v1468 = vunpack.c.h.b16 %v881
  %v1469 = vunpack.c.l.b16 %v882
  %v1470 = vunpack.c.h.b16 %v882
  %v1471 = vunpack.c.l.b16 %v883
  %v1472 = vunpack.c.h.b16 %v883
  %v1473 = vunpack.c.l.b16 %v884
  %v1474 = vunpack.c.h.b16 %v884
  %v1475 = vunpack.c.l.b16 %v885
  %v1476 = vunpack.c.h.b16 %v885
  %v1477 = vunpack.c.l.b16 %v886
  %v1478 = vunpack.c.h.b16 %v886
  %v1479 = vunpack.c.l.b16 %v887
  %v1480 = vunpack.c.h.b16 %v887
  %v1481 = vunpack.c.l.b16 %v888
  %v1482 = vunpack.c.h.b16 %v888
  %v1483 = vunpack.c.l.b16 %v889
  %v1484 = vunpack.c.h.b16 %v889
  %v1485 = vunpack.c.l.b16 %v890
  %v1486 = vunpack.c.h.b16 %v890
  %v1487 = vunpack.c.l.b16 %v891
  %v1488 = vunpack.c.h.b16 %v891
  %v1489 = vunpack.c.l.b16 %v892
  %v1490 = vunpack.c.h.b16 %v892
  %v1491 = vunpack.c.l.b16 %v893
  %v1492 = vunpack.c.h.b16 %v893
  %v1493 = vunpack.c.l.b16 %v894
  %v1494 = vunpack.c.h.b16 %v894
  %v1495 = vunpack.c.l.b16 %v895
  %v1496 = vunpack.c.h.b16 %v895
  %v1497 = vunpack.c.l.b16 %v896
  %v1498 = vunpack.c.h.b16 %v896
  %v1499 = vunpack.c.l.b16 %v897
  %v1500 = vunpack.c.h.b16 %v897
  %v1501 = vunpack.c.l.b16 %v898
  %v1502 = vunpack.c.h.b16 %v898
  %v1503 = vunpack.c.l.b16 %v899
  %v1504 = vunpack.c.h.b16 %v899
  %v1505 = vunpack.c.l.b16 %v900
  %v1506 = vunpack.c.h.b16 %v900
  %v1507 = vunpack.c.l.b16 %v901
  %v1508 = vunpack.c.h.b16 %v901
  %v1509 = vunpack.c.l.b16 %v902
  %v1510 = vunpack.c.h.b16 %v902
  %v1511 = vpack.c.b16 %v1133, %v1127
  %v1512 = vpack.c.b16 %v1134, %v1128
  %v1513 = vpack.c.b16 %v1135, %v1129
  %v1514 = vpack.c.b16 %v1136, %v1130
  %v1515 = vpack.c.b16 %v1137, %v1131
  %v1516 = vpack.c.b16 %v1138, %v1132
  %v1517 = vpack.c.b16 %v1145, %v1139
  %v1518 = vpack.c.b16 %v1146, %v1140
  %v1519 = vpack.c.b16 %v1147, %v1141
  %v1520 = vpack.c.b16 %v1148, %v1142
  %v1521 = vpack.c.b16 %v1149, %v1143
  %v1522 = vpack.c.b16 %v1150, %v1144
  %v1523 = vpack.c.b16 %v1157, %v1151
  %v1524 = vpack.c.b16 %v1158, %v1152
  %v1525 = vpack.c.b16 %v1159, %v1153
  %v1526 = vpack.c.b16 %v1160, %v1154
  %v1527 = vpack.c.b16 %v1161, %v1155
  %v1528 = vpack.c.b16 %v1162, %v1156
  %v1529 = vpack.c.b16 %v1169, %v1163
  %v1530 = vpack.c.b16 %v1170, %v1164
  %v1531 = vpack.c.b16 %v1171, %v1165
  %v1532 = vpack.c.b16 %v1172, %v1166
  %v1533 = vpack.c.b16 %v1173, %v1167
  %v1534 = vpack.c.b16 %v1174, %v1168
  %v1535 = vpack.c.b16 %v1181, %v1175
  %v1536 = vpack.c.b16 %v1182, %v1176
  %v1537 = vpack.c.b16 %v1183, %v1177
  %v1538 = vpack.c.b16 %v1184, %v1178
  %v1539 = vpack.c.b16 %v1185, %v1179
  %v1540 = vpack.c.b16 %v1186, %v1180
  %v1541 = vpack.c.b16 %v1193, %v1187
  %v1542 = vpack.c.b16 %v1194, %v1188
  %v1543 = vpack.c.b16 %v1195, %v1189
  %v1544 = vpack.c.b16 %v1196, %v1190
  %v1545 = vpack.c.b16 %v1197, %v1191
  %v1546 = vpack.c.b16 %v1198, %v1192
  %v1547 = vpack.c.b16 %v1205, %v1199
  %v1548 = vpack.c.b16 %v1206, %v1200
  %v1549 = vpack.c.b16 %v1207, %v1201
  %v1550 = vpack.c.b16 %v1208, %v1202
  %v1551 = vpack.c.b16 %v1209, %v1203
  %v1552 = vpack.c.b16 %v1210, %v1204
  %v1553 = vpack.c.b16 %v1217, %v1211
  %v1554 = vpack.c.b16 %v1218, %v1212
  %v1555 = vpack.c.b16 %v1219, %v1213
  %v1556 = vpack.c.b16 %v1220, %v1214
  %v1557 = vpack.c.b16 %v1221, %v1215
  %v1558 = vpack.c.b16 %v1222, %v1216
  %v1559 = vpack.c.b16 %v1229, %v1223
  %v1560 = vpack.c.b16 %v1230, %v1224
  %v1561 = vpack.c.b16 %v1231, %v1225
  %v1562 = vpack.c.b16 %v1232, %v1226
  %v1563 = vpack.c.b16 %v1233, %v1227
  %v1564 = vpack.c.b16 %v1234, %v1228
  %v1565 = vpack.c.b16 %v1241, %v1235
  %v1566 = vpack.c.b16 %v1242, %v1236
  %v1567 = vpack.c.b16 %v1243, %v1237
  %v1568 = vpack.c.b16 %v1244, %v1238
  %v1569 = vpack.c.b16 %v1245, %v1239
  %v1570 = vpack.c.b16 %v1246, %v1240
  %v1571 = vpack.c.b16 %v1253, %v1247
  %v1572 = vpack.c.b16 %v1254, %v1248
  %v1573 = vpack.c.b16 %v1255, %v1249
  %v1574 = vpack.c.b16 %v1256, %v1250
  %v1575 = vpack.c.b16 %v1257, %v1251
  %v1576 = vpack.c.b16 %v1258, %v1252
  %v1577 = vpack.c.b16 %v1265, %v1259
  %v1578 = vpack.c.b16 %v1266, %v1260
  %v1579 = vpack.c.b16 %v1267, %v1261
  %v1580 = vpack.c.b16 %v1268, %v1262
  %v1581 = vpack.c.b16 %v1269, %v1263
  %v1582 = vpack.c.b16 %v1270, %v1264
  %v1583 = vpack.c.b16 %v1277, %v1271
  %v1584 = vpack.c.b16 %v1278, %v1272
  %v1585 = vpack.c.b16 %v1279, %v1273
  %v1586 = vpack.c.b16 %v1280, %v1274
  %v1587 = vpack.c.b16 %v1281, %v1275
  %v1588 = vpack.c.b16 %v1282, %v1276
  %v1589 = vpack.c.b16 %v1289, %v1283
  %v1590 = vpack.c.b16 %v1290, %v1284
  %v1591 = vpack.c.b16 %v1291, %v1285
  %v1592 = vpack.c.b16 %v1292, %v1286
  %v1593 = vpack.c.b16 %v1293, %v1287
  %v1594 = vpack.c.b16 %v1294, %v1288
  %v1595 = vpack.c.b16 %v1301, %v1295
  %v1596 = vpack.c.b16 %v1302, %v1296
  %v1597 = vpack.c.b16 %v1303, %v1297
  %v1598 = vpack.c.b16 %v1304, %v1298
  %v1599 = vpack.c.b16 %v1305, %v1299
  %v1600 = vpack.c.b16 %v1306, %v1300
  %v1601 = vpack.c.b16 %v1313, %v1307
  %v1602 = vpack.c.b16 %v1314, %v1308
  %v1603 = vpack.c.b16 %v1315, %v1309
  %v1604 = vpack.c.b16 %v1316, %v1310
  %v1605 = vpack.c.b16 %v1317, %v1311
  %v1606 = vpack.c.b16 %v1318, %v1312
  %v1607 = vpack.c.b16 %v1325, %v1319
  %v1608 = vpack.c.b16 %v1326, %v1320
  %v1609 = vpack.c.b16 %v1327, %v1321
  %v1610 = vpack.c.b16 %v1328, %v1322
  %v1611 = vpack.c.b16 %v1329, %v1323
  %v1612 = vpack.c.b16 %v1330, %v1324
  %v1613 = vpack.c.b16 %v1337, %v1331
  %v1614 = vpack.c.b16 %v1338, %v1332
  %v1615 = vpack.c.b16 %v1339, %v1333
  %v1616 = vpack.c.b16 %v1340, %v1334
  %v1617 = vpack.c.b16 %v1341, %v1335
  %v1618 = vpack.c.b16 %v1342, %v1336
  %v1619 = vpack.c.b16 %v1349, %v1343
  %v1620 = vpack.c.b16 %v1350, %v1344
  %v1621 = vpack.c.b16 %v1351, %v1345
  %v1622 = vpack.c.b16 %v1352, %v1346
  %v1623 = vpack.c.b16 %v1353, %v1347
  %v1624 = vpack.c.b16 %v1354, %v1348
  %v1625 = vpack.c.b16 %v1361, %v1355
  %v1626 = vpack.c.b16 %v1362, %v1356
  %v1627 = vpack.c.b16 %v1363, %v1357
  %v1628 = vpack.c.b16 %v1364, %v1358
  %v1629 = vpack.c.b16 %v1365, %v1359
  %v1630 = vpack.c.b16 %v1366, %v1360
  %v1631 = vpack.c.b16 %v1373, %v1367
  %v1632 = vpack.c.b16 %v1374, %v1368
  %v1633 = vpack.c.b16 %v1375, %v1369
  %v1634 = vpack.c.b16 %v1376, %v1370
  %v1635 = vpack.c.b16 %v1377, %v1371
  %v1636 = vpack.c.b16 %v1378, %v1372
  %v1637 = vpack.c.b16 %v1385, %v1379
  %v1638 = vpack.c.b16 %v1386, %v1380
  %v1639 = vpack.c.b16 %v1387, %v1381
  %v1640 = vpack.c.b16 %v1388, %v1382
  %v1641 = vpack.c.b16 %v1389, %v1383
  %v1642 = vpack.c.b16 %v1390, %v1384
  %v1643 = vpack.c.b16 %v1397, %v1391
  %v1644 = vpack.c.b16 %v1398, %v1392
  %v1645 = vpack.c.b16 %v1399, %v1393
  %v1646 = vpack.c.b16 %v1400, %v1394
  %v1647 = vpack.c.b16 %v1401, %v1395
  %v1648 = vpack.c.b16 %v1402, %v1396
  %v1649 = vpack.c.b16 %v1409, %v1403
  %v1650 = vpack.c.b16 %v1410, %v1404
  %v1651 = vpack.c.b16 %v1411, %v1405
  %v1652 = vpack.c.b16 %v1412, %v1406
  %v1653 = vpack.c.b16 %v1413, %v1407
  %v1654 = vpack.c.b16 %v1414, %v1408
  %v1655 = vpack.c.b16 %v1421, %v1415
  %v1656 = vpack.c.b16 %v1422, %v1416
  %v1657 = vpack.c.b16 %v1423, %v1417
  %v1658 = vpack.c.b16 %v1424, %v1418
  %v1659 = vpack.c.b16 %v1425, %v1419
  %v1660 = vpack.c.b16 %v1426, %v1420
  %v1661 = vpack.c.b16 %v1433, %v1427
  %v1662 = vpack.c.b16 %v1434, %v1428
  %v1663 = vpack.c.b16 %v1435, %v1429
  %v1664 = vpack.c.b16 %v1436, %v1430
  %v1665 = vpack.c.b16 %v1437, %v1431
  %v1666 = vpack.c.b16 %v1438, %v1432
  %v1667 = vpack.c.b16 %v1445, %v1439
  %v1668 = vpack.c.b16 %v1446, %v1440
  %v1669 = vpack.c.b16 %v1447, %v1441
  %v1670 = vpack.c.b16 %v1448, %v1442
  %v1671 = vpack.c.b16 %v1449, %v1443
  %v1672 = vpack.c.b16 %v1450, %v1444
  %v1673 = vpack.c.b16 %v1457, %v1451
  %v1674 = vpack.c.b16 %v1458, %v1452
  %v1675 = vpack.c.b16 %v1459, %v1453
  %v1676 = vpack.c.b16 %v1460, %v1454
  %v1677 = vpack.c.b16 %v1461, %v1455
  %v1678 = vpack.c.b16 %v1462, %v1456
  %v1679 = vpack.c.b16 %v1469, %v1463
  %v1680 = vpack.c.b16 %v1470, %v1464
  %v1681 = vpack.c.b16 %v1471, %v1465
  %v1682 = vpack.c.b16 %v1472, %v1466
  %v1683 = vpack.c.b16 %v1473, %v1467
  %v1684 = vpack.c.b16 %v1474, %v1468
  %v1685 = vpack.c.b16 %v1481, %v1475
  %v1686 = vpack.c.b16 %v1482, %v1476
  %v1687 = vpack.c.b16 %v1483, %v1477
  %v1688 = vpack.c.b16 %v1484, %v1478
  %v1689 = vpack.c.b16 %v1485, %v1479
  %v1690 = vpack.c.b16 %v1486, %v1480
  %v1691 = vpack.c.b16 %v1493, %v1487
  %v1692 = vpack.c.b16 %v1494, %v1488
  %v1693 = vpack.c.b16 %v1495, %v1489
  %v1694 = vpack.c.b16 %v1496, %v1490
  %v1695 = vpack.c.b16 %v1497, %v1491
  %v1696 = vpack.c.b16 %v1498, %v1492
  %v1697 = vpack.c.b16 %v1505, %v1499
  %v1698 = vpack.c.b16 %v1506, %v1500
  %v1699 = vpack.c.b16 %v1507, %v1501
  %v1700 = vpack.c.b16 %v1508, %v1502
  %v1701 = vpack.c.b16 %v1509, %v1503
  %v1702 = vpack.c.b16 %v1510, %v1504
  %1895 = vmatprep.subr.bf16.mxu0 %v1512
  %1896 = vmatpush1.bf16.msra.mxu0 %v1511
  %1897 = vmatprep.subr.bf16.mxu0 %v1518
  %1898 = vmatpush1.bf16.msra.mxu0 %v1517
  %1899 = vmatprep.subr.bf16.mxu0 %v1524
  %1900 = vmatpush1.bf16.msra.mxu0 %v1523
  %1901 = vmatprep.subr.bf16.mxu0 %v1530
  %1902 = vmatpush1.bf16.msra.mxu0 %v1529
  %1903 = vmatprep.subr.bf16.mxu0 %v1536
  %1904 = vmatpush1.bf16.msra.mxu0 %v1535
  %1905 = vmatprep.subr.bf16.mxu0 %v1542
  %1906 = vmatpush1.bf16.msra.mxu0 %v1541
  %1907 = vmatprep.subr.bf16.mxu0 %v1548
  %1908 = vmatpush1.bf16.msra.mxu0 %v1547
  %1909 = vmatprep.subr.bf16.mxu0 %v1554
  %1910 = vmatpush1.bf16.msra.mxu0 %v1553
  %1911 = vmatprep.subr.bf16.mxu0 %v1560
  %1912 = vmatpush1.bf16.msra.mxu0 %v1559
  %1913 = vmatprep.subr.bf16.mxu0 %v1566
  %1914 = vmatpush1.bf16.msra.mxu0 %v1565
  %1915 = vmatprep.subr.bf16.mxu0 %v1572
  %1916 = vmatpush1.bf16.msra.mxu0 %v1571
  %1917 = vmatprep.subr.bf16.mxu0 %v1578
  %1918 = vmatpush1.bf16.msra.mxu0 %v1577
  %1919 = vmatprep.subr.bf16.mxu0 %v1584
  %1920 = vmatpush1.bf16.msra.mxu0 %v1583
  %1921 = vmatprep.subr.bf16.mxu0 %v1590
  %1922 = vmatpush1.bf16.msra.mxu0 %v1589
  %1923 = vmatprep.subr.bf16.mxu0 %v1596
  %1924 = vmatpush1.bf16.msra.mxu0 %v1595
  %1925 = vmatprep.subr.bf16.mxu0 %v1602
  %1926 = vmatpush1.bf16.msra.mxu0 %v1601
  %1927 = vmatprep.mubr.bf16.mxu0 %v546
  %1928 = vmatmul.mubr.bf16.gmra.mrb[0].mxu0 %v464
  %v1929 = vpop.f32.mrb[0].mxu0
  %v1930 = vadd.f32 %v908, %v1929
  %v1931 = vpop.f32.mrb[0].mxu0
  %v1932 = vadd.f32 %v912, %v1931
  %v1933 = vpop.f32.mrb[0].mxu0
  %v1934 = vpop.f32.mrb[0].mxu0
  %1935 = vdwg.mxu0
  %1936 = vmatprep.subr.bf16.mxu0 %v1608
  %1937 = vmatpush1.bf16.msra.mxu0 %v1607
  %1938 = vmatprep.subr.bf16.mxu0 %v1614
  %1939 = vmatpush1.bf16.msra.mxu0 %v1613
  %1940 = vmatprep.subr.bf16.mxu0 %v1620
  %1941 = vmatpush1.bf16.msra.mxu0 %v1619
  %1942 = vmatprep.subr.bf16.mxu0 %v1626
  %1943 = vmatpush1.bf16.msra.mxu0 %v1625
  %1944 = vmatprep.subr.bf16.mxu0 %v1632
  %1945 = vmatpush1.bf16.msra.mxu0 %v1631
  %1946 = vmatprep.subr.bf16.mxu0 %v1638
  %1947 = vmatpush1.bf16.msra.mxu0 %v1637
  %1948 = vmatprep.subr.bf16.mxu0 %v1644
  %1949 = vmatpush1.bf16.msra.mxu0 %v1643
  %1950 = vmatprep.subr.bf16.mxu0 %v1650
  %1951 = vmatpush1.bf16.msra.mxu0 %v1649
  %1952 = vmatprep.subr.bf16.mxu0 %v1656
  %1953 = vmatpush1.bf16.msra.mxu0 %v1655
  %1954 = vmatprep.subr.bf16.mxu0 %v1662
  %1955 = vmatpush1.bf16.msra.mxu0 %v1661
  %1956 = vmatprep.subr.bf16.mxu0 %v1668
  %1957 = vmatpush1.bf16.msra.mxu0 %v1667
  %1958 = vmatprep.subr.bf16.mxu0 %v1674
  %1959 = vmatpush1.bf16.msra.mxu0 %v1673
  %1960 = vmatprep.subr.bf16.mxu0 %v1680
  %1961 = vmatpush1.bf16.msra.mxu0 %v1679
  %1962 = vmatprep.subr.bf16.mxu0 %v1686
  %1963 = vmatpush1.bf16.msra.mxu0 %v1685
  %1964 = vmatprep.subr.bf16.mxu0 %v1692
  %1965 = vmatpush1.bf16.msra.mxu0 %v1691
  %1966 = vmatprep.subr.bf16.mxu0 %v1698
  %1967 = vmatpush1.bf16.msra.mxu0 %v1697
  %1968 = vmatprep.mubr.bf16.mxu0 %v710
  %1969 = vmatmul.mubr.bf16.gmra.mrb[0].mxu0 %v628
  %v1970 = vpop.f32.mrb[0].mxu0
  %v1971 = vadd.f32 %v1930, %v1970
  %v1972 = vpop.f32.mrb[0].mxu0
  %v1973 = vadd.f32 %v1932, %v1972
  %v1974 = vpop.f32.mrb[0].mxu0
  %v1975 = vpop.f32.mrb[0].mxu0
  %1976 = vdwg.mxu0
  %1977 = vmatprep.subr.bf16.mxu0 %v1514
  %1978 = vmatpush1.bf16.msra.mxu0 %v1513
  %1979 = vmatprep.subr.bf16.mxu0 %v1520
  %1980 = vmatpush1.bf16.msra.mxu0 %v1519
  %1981 = vmatprep.subr.bf16.mxu0 %v1526
  %1982 = vmatpush1.bf16.msra.mxu0 %v1525
  %1983 = vmatprep.subr.bf16.mxu0 %v1532
  %1984 = vmatpush1.bf16.msra.mxu0 %v1531
  %1985 = vmatprep.subr.bf16.mxu0 %v1538
  %1986 = vmatpush1.bf16.msra.mxu0 %v1537
  %1987 = vmatprep.subr.bf16.mxu0 %v1544
  %1988 = vmatpush1.bf16.msra.mxu0 %v1543
  %1989 = vmatprep.subr.bf16.mxu0 %v1550
  %1990 = vmatpush1.bf16.msra.mxu0 %v1549
  %1991 = vmatprep.subr.bf16.mxu0 %v1556
  %1992 = vmatpush1.bf16.msra.mxu0 %v1555
  %1993 = vmatprep.subr.bf16.mxu0 %v1562
  %1994 = vmatpush1.bf16.msra.mxu0 %v1561
  %1995 = vmatprep.subr.bf16.mxu0 %v1568
  %1996 = vmatpush1.bf16.msra.mxu0 %v1567
  %1997 = vmatprep.subr.bf16.mxu0 %v1574
  %1998 = vmatpush1.bf16.msra.mxu0 %v1573
  %1999 = vmatprep.subr.bf16.mxu0 %v1580
  %2000 = vmatpush1.bf16.msra.mxu0 %v1579
  %2001 = vmatprep.subr.bf16.mxu0 %v1586
  %2002 = vmatpush1.bf16.msra.mxu0 %v1585
  %2003 = vmatprep.subr.bf16.mxu0 %v1592
  %2004 = vmatpush1.bf16.msra.mxu0 %v1591
  %2005 = vmatprep.subr.bf16.mxu0 %v1598
  %2006 = vmatpush1.bf16.msra.mxu0 %v1597
  %2007 = vmatprep.subr.bf16.mxu0 %v1604
  %2008 = vmatpush1.bf16.msra.mxu0 %v1603
  %2009 = vmatprep.mubr.bf16.mxu0 %v546
  %2010 = vmatmul.mubr.bf16.gmra.mrb[0].mxu0 %v464
  %v2011 = vpop.f32.mrb[0].mxu0
  %v2012 = vadd.f32 %v916, %v2011
  %v2013 = vpop.f32.mrb[0].mxu0
  %v2014 = vadd.f32 %v920, %v2013
  %v2015 = vpop.f32.mrb[0].mxu0
  %v2016 = vpop.f32.mrb[0].mxu0
  %2017 = vdwg.mxu0
  %2018 = vmatprep.subr.bf16.mxu0 %v1610
  %2019 = vmatpush1.bf16.msra.mxu0 %v1609
  %2020 = vmatprep.subr.bf16.mxu0 %v1616
  %2021 = vmatpush1.bf16.msra.mxu0 %v1615
  %2022 = vmatprep.subr.bf16.mxu0 %v1622
  %2023 = vmatpush1.bf16.msra.mxu0 %v1621
  %2024 = vmatprep.subr.bf16.mxu0 %v1628
  %2025 = vmatpush1.bf16.msra.mxu0 %v1627
  %2026 = vmatprep.subr.bf16.mxu0 %v1634
  %2027 = vmatpush1.bf16.msra.mxu0 %v1633
  %2028 = vmatprep.subr.bf16.mxu0 %v1640
  %2029 = vmatpush1.bf16.msra.mxu0 %v1639
  %2030 = vmatprep.subr.bf16.mxu0 %v1646
  %2031 = vmatpush1.bf16.msra.mxu0 %v1645
  %2032 = vmatprep.subr.bf16.mxu0 %v1652
  %2033 = vmatpush1.bf16.msra.mxu0 %v1651
  %2034 = vmatprep.subr.bf16.mxu0 %v1658
  %2035 = vmatpush1.bf16.msra.mxu0 %v1657
  %2036 = vmatprep.subr.bf16.mxu0 %v1664
  %2037 = vmatpush1.bf16.msra.mxu0 %v1663
  %2038 = vmatprep.subr.bf16.mxu0 %v1670
  %2039 = vmatpush1.bf16.msra.mxu0 %v1669
  %2040 = vmatprep.subr.bf16.mxu0 %v1676
  %2041 = vmatpush1.bf16.msra.mxu0 %v1675
  %2042 = vmatprep.subr.bf16.mxu0 %v1682
  %2043 = vmatpush1.bf16.msra.mxu0 %v1681
  %2044 = vmatprep.subr.bf16.mxu0 %v1688
  %2045 = vmatpush1.bf16.msra.mxu0 %v1687
  %2046 = vmatprep.subr.bf16.mxu0 %v1694
  %2047 = vmatpush1.bf16.msra.mxu0 %v1693
  %2048 = vmatprep.subr.bf16.mxu0 %v1700
  %2049 = vmatpush1.bf16.msra.mxu0 %v1699
  %2050 = vmatprep.mubr.bf16.mxu0 %v710
  %2051 = vmatmul.mubr.bf16.gmra.mrb[0].mxu0 %v628
  %v2052 = vpop.f32.mrb[0].mxu0
  %v2053 = vadd.f32 %v2012, %v2052
  %v2054 = vpop.f32.mrb[0].mxu0
  %v2055 = vadd.f32 %v2014, %v2054
  %v2056 = vpop.f32.mrb[0].mxu0
  %v2057 = vpop.f32.mrb[0].mxu0
  %2058 = vdwg.mxu0
  %2059 = vmatprep.subr.bf16.mxu0 %v1516
  %2060 = vmatpush1.bf16.msra.mxu0 %v1515
  %2061 = vmatprep.subr.bf16.mxu0 %v1522
  %2062 = vmatpush1.bf16.msra.mxu0 %v1521
  %2063 = vmatprep.subr.bf16.mxu0 %v1528
  %2064 = vmatpush1.bf16.msra.mxu0 %v1527
  %2065 = vmatprep.subr.bf16.mxu0 %v1534
  %2066 = vmatpush1.bf16.msra.mxu0 %v1533
  %2067 = vmatprep.subr.bf16.mxu0 %v1540
  %2068 = vmatpush1.bf16.msra.mxu0 %v1539
  %2069 = vmatprep.subr.bf16.mxu0 %v1546
  %2070 = vmatpush1.bf16.msra.mxu0 %v1545
  %2071 = vmatprep.subr.bf16.mxu0 %v1552
  %2072 = vmatpush1.bf16.msra.mxu0 %v1551
  %2073 = vmatprep.subr.bf16.mxu0 %v1558
  %2074 = vmatpush1.bf16.msra.mxu0 %v1557
  %2075 = vmatprep.subr.bf16.mxu0 %v1564
  %2076 = vmatpush1.bf16.msra.mxu0 %v1563
  %2077 = vmatprep.subr.bf16.mxu0 %v1570
  %2078 = vmatpush1.bf16.msra.mxu0 %v1569
  %2079 = vmatprep.subr.bf16.mxu0 %v1576
  %2080 = vmatpush1.bf16.msra.mxu0 %v1575
  %2081 = vmatprep.subr.bf16.mxu0 %v1582
  %2082 = vmatpush1.bf16.msra.mxu0 %v1581
  %2083 = vmatprep.subr.bf16.mxu0 %v1588
  %2084 = vmatpush1.bf16.msra.mxu0 %v1587
  %2085 = vmatprep.subr.bf16.mxu0 %v1594
  %2086 = vmatpush1.bf16.msra.mxu0 %v1593
  %2087 = vmatprep.subr.bf16.mxu0 %v1600
  %2088 = vmatpush1.bf16.msra.mxu0 %v1599
  %2089 = vmatprep.subr.bf16.mxu0 %v1606
  %2090 = vmatpush1.bf16.msra.mxu0 %v1605
  %2091 = vmatprep.mubr.bf16.mxu0 %v546
  %2092 = vmatmul.mubr.bf16.gmra.mrb[0].mxu0 %v464
  %v2093 = vpop.f32.mrb[0].mxu0
  %v2094 = vadd.f32 %v924, %v2093
  %v2095 = vpop.f32.mrb[0].mxu0
  %v2096 = vadd.f32 %v928, %v2095
  %v2097 = vpop.f32.mrb[0].mxu0
  %v2098 = vpop.f32.mrb[0].mxu0
  %2099 = vdwg.mxu0
  %2100 = vmatprep.subr.bf16.mxu0 %v1612
  %2101 = vmatpush1.bf16.msra.mxu0 %v1611
  %2102 = vmatprep.subr.bf16.mxu0 %v1618
  %2103 = vmatpush1.bf16.msra.mxu0 %v1617
  %2104 = vmatprep.subr.bf16.mxu0 %v1624
  %2105 = vmatpush1.bf16.msra.mxu0 %v1623
  %2106 = vmatprep.subr.bf16.mxu0 %v1630
  %2107 = vmatpush1.bf16.msra.mxu0 %v1629
  %2108 = vmatprep.subr.bf16.mxu0 %v1636
  %2109 = vmatpush1.bf16.msra.mxu0 %v1635
  %2110 = vmatprep.subr.bf16.mxu0 %v1642
  %2111 = vmatpush1.bf16.msra.mxu0 %v1641
  %2112 = vmatprep.subr.bf16.mxu0 %v1648
  %2113 = vmatpush1.bf16.msra.mxu0 %v1647
  %2114 = vmatprep.subr.bf16.mxu0 %v1654
  %2115 = vmatpush1.bf16.msra.mxu0 %v1653
  %2116 = vmatprep.subr.bf16.mxu0 %v1660
  %2117 = vmatpush1.bf16.msra.mxu0 %v1659
  %2118 = vmatprep.subr.bf16.mxu0 %v1666
  %2119 = vmatpush1.bf16.msra.mxu0 %v1665
  %2120 = vmatprep.subr.bf16.mxu0 %v1672
  %2121 = vmatpush1.bf16.msra.mxu0 %v1671
  %2122 = vmatprep.subr.bf16.mxu0 %v1678
  %2123 = vmatpush1.bf16.msra.mxu0 %v1677
  %2124 = vmatprep.subr.bf16.mxu0 %v1684
  %2125 = vmatpush1.bf16.msra.mxu0 %v1683
  %2126 = vmatprep.subr.bf16.mxu0 %v1690
  %2127 = vmatpush1.bf16.msra.mxu0 %v1689
  %2128 = vmatprep.subr.bf16.mxu0 %v1696
  %2129 = vmatpush1.bf16.msra.mxu0 %v1695
  %2130 = vmatprep.subr.bf16.mxu0 %v1702
  %2131 = vmatpush1.bf16.msra.mxu0 %v1701
  %2132 = vmatprep.mubr.bf16.mxu0 %v710
  %2133 = vmatmul.mubr.bf16.gmra.mrb[0].mxu0 %v628
  %v2134 = vpop.f32.mrb[0].mxu0
  %v2135 = vadd.f32 %v2094, %v2134
  %v2136 = vpop.f32.mrb[0].mxu0
  %v2137 = vadd.f32 %v2096, %v2136
  %v2138 = vpop.f32.mrb[0].mxu0
  %v2139 = vpop.f32.mrb[0].mxu0
  %2140 = vdwg.mxu0
  %v2141 = vmax.f32 %v1971, 0.0
  %v2142 = vmax.f32 %v1973, 0.0
  %v2143 = vmax.f32 %v2053, 0.0
  %v2144 = vmax.f32 %v2055, 0.0
  %v2145 = vmax.f32 %v2135, 0.0
  %v2146 = vmax.f32 %v2137, 0.0
  %v2147 = vpack.c.bf16 %v2141, %v2141
  %v2148 = vpack.c.bf16 %v2142, %v2142
  %v2149 = vpack.c.bf16 %v2143, %v2143
  %v2150 = vpack.c.bf16 %v2144, %v2144
  %v2151 = vpack.c.bf16 %v2145, %v2145
  %v2152 = vpack.c.bf16 %v2146, %v2146
  %v2153 = vld [vmem:[%s5] sm:$0xf]
  %v2154 = vld [vmem:[%s5 + $0x4] sm:$0xf]
  %v2155 = vld [vmem:[%s5 + $0x8] sm:$0xf]
  %v2156 = vld [vmem:[%s5 + $0xc] sm:$0xf]
  %v2157 = vld [vmem:[%s5 + $0x10] sm:$0xf]
  %v2158 = vld [vmem:[%s5 + $0x14] sm:$0xf]
  %v2159 = vld [vmem:[%s5 + $0x18] sm:$0xf]
  %v2160 = vld [vmem:[%s5 + $0x1c] sm:$0xf]
  %v2161 = vld [vmem:[%s5 + $0x20] sm:$0xf]
  %v2162 = vld [vmem:[%s5 + $0x24] sm:$0xf]
  %v2163 = vld [vmem:[%s5 + $0x28] sm:$0xf]
  %v2164 = vld [vmem:[%s5 + $0x2c] sm:$0xf]
  %v2165 = vld [vmem:[%s5 + $0x30] sm:$0xf]
  %v2166 = vld [vmem:[%s5 + $0x34] sm:$0xf]
  %v2167 = vld [vmem:[%s5 + $0x38] sm:$0xf]
  %v2168 = vld [vmem:[%s5 + $0x3c] sm:$0xf]
  %v2169 = vld [vmem:[%s5 + $0x40] sm:$0xf]
  %v2170 = vld [vmem:[%s5 + $0x44] sm:$0xf]
  %v2171 = vld [vmem:[%s5 + $0x48] sm:$0xf]
  %v2172 = vld [vmem:[%s5 + $0x4c] sm:$0xf]
  %v2173 = vld [vmem:[%s5 + $0x50] sm:$0xf]
  %v2174 = vld [vmem:[%s5 + $0x54] sm:$0xf]
  %v2175 = vld [vmem:[%s5 + $0x58] sm:$0xf]
  %v2176 = vld [vmem:[%s5 + $0x5c] sm:$0xf]
  %v2177 = vld [vmem:[%s5 + $0x60] sm:$0xf]
  %v2178 = vld [vmem:[%s5 + $0x64] sm:$0xf]
  %v2179 = vld [vmem:[%s5 + $0x68] sm:$0xf]
  %v2180 = vld [vmem:[%s5 + $0x6c] sm:$0xf]
  %v2181 = vld [vmem:[%s5 + $0x70] sm:$0xf]
  %v2182 = vld [vmem:[%s5 + $0x74] sm:$0xf]
  %v2183 = vld [vmem:[%s5 + $0x78] sm:$0xf]
  %v2184 = vld [vmem:[%s5 + $0x7c] sm:$0xf]
  %v2185 = vld [vmem:[%s5 + $0x80] sm:$0xf]
  %v2186 = vld [vmem:[%s5 + $0x84] sm:$0xf]
  %v2187 = vld [vmem:[%s5 + $0x88] sm:$0xf]
  %v2188 = vld [vmem:[%s5 + $0x8c] sm:$0xf]
  %v2189 = vld [vmem:[%s5 + $0x90] sm:$0xf]
  %v2190 = vld [vmem:[%s5 + $0x94] sm:$0xf]
  %v2191 = vld [vmem:[%s5 + $0x98] sm:$0xf]
  %v2192 = vld [vmem:[%s5 + $0x9c] sm:$0xf]
  %v2193 = vld [vmem:[%s5 + $0xa0] sm:$0xf]
  %v2194 = vld [vmem:[%s5 + $0xa4] sm:$0xf]
  %v2195 = vld [vmem:[%s5 + $0xa8] sm:$0xf]
  %v2196 = vld [vmem:[%s5 + $0xac] sm:$0xf]
  %v2197 = vld [vmem:[%s5 + $0xb0] sm:$0xf]
  %v2198 = vld [vmem:[%s5 + $0xb4] sm:$0xf]
  %v2199 = vld [vmem:[%s5 + $0xb8] sm:$0xf]
  %v2200 = vld [vmem:[%s5 + $0xbc] sm:$0xf]
  %v2201 = vld [vmem:[%s5 + $0xc0] sm:$0xf]
  %v2202 = vld [vmem:[%s5 + $0xc4] sm:$0xf]
  %v2203 = vld [vmem:[%s5 + $0xc8] sm:$0xf]
  %v2204 = vld [vmem:[%s5 + $0xcc] sm:$0xf]
  %v2205 = vld [vmem:[%s5 + $0xd0] sm:$0xf]
  %v2206 = vld [vmem:[%s5 + $0xd4] sm:$0xf]
  %v2207 = vld [vmem:[%s5 + $0xd8] sm:$0xf]
  %v2208 = vld [vmem:[%s5 + $0xdc] sm:$0xf]
  %v2209 = vld [vmem:[%s5 + $0xe0] sm:$0xf]
  %v2210 = vld [vmem:[%s5 + $0xe4] sm:$0xf]
  %v2211 = vld [vmem:[%s5 + $0xe8] sm:$0xf]
  %v2212 = vld [vmem:[%s5 + $0xec] sm:$0xf]
  %v2213 = vld [vmem:[%s5 + $0xf0] sm:$0xf]
  %v2214 = vld [vmem:[%s5 + $0xf4] sm:$0xf]
  %v2215 = vld [vmem:[%s5 + $0xf8] sm:$0xf]
  %v2216 = vld [vmem:[%s5 + $0xfc] sm:$0xf]
  %v2217 = vld [vmem:[%s5 + $0x100] sm:$0xf]
  %v2218 = vld [vmem:[%s5 + $0x104] sm:$0xf]
  %v2219 = vld [vmem:[%s5 + $0x108] sm:$0xf]
  %v2220 = vld [vmem:[%s5 + $0x10c] sm:$0xf]
  %v2221 = vld [vmem:[%s5 + $0x110] sm:$0xf]
  %v2222 = vld [vmem:[%s5 + $0x114] sm:$0xf]
  %v2223 = vld [vmem:[%s5 + $0x118] sm:$0xf]
  %v2224 = vld [vmem:[%s5 + $0x11c] sm:$0xf]
  %v2225 = vld [vmem:[%s5 + $0x120] sm:$0xf]
  %v2226 = vld [vmem:[%s5 + $0x124] sm:$0xf]
  %v2227 = vld [vmem:[%s5 + $0x128] sm:$0xf]
  %v2228 = vld [vmem:[%s5 + $0x12c] sm:$0xf]
  %v2229 = vld [vmem:[%s5 + $0x130] sm:$0xf]
  %v2230 = vld [vmem:[%s5 + $0x134] sm:$0xf]
  %v2231 = vld [vmem:[%s5 + $0x138] sm:$0xf]
  %v2232 = vld [vmem:[%s5 + $0x13c] sm:$0xf]
  %v2233 = vld [vmem:[%s5 + $0x140] sm:$0xf]
  %v2234 = vld [vmem:[%s5 + $0x144] sm:$0xf]
  %v2235 = vld [vmem:[%s5 + $0x148] sm:$0xf]
  %v2236 = vld [vmem:[%s5 + $0x14c] sm:$0xf]
  %v2237 = vld [vmem:[%s5 + $0x150] sm:$0xf]
  %v2238 = vld [vmem:[%s5 + $0x154] sm:$0xf]
  %v2239 = vld [vmem:[%s5 + $0x158] sm:$0xf]
  %v2240 = vld [vmem:[%s5 + $0x15c] sm:$0xf]
  %v2241 = vld [vmem:[%s5 + $0x160] sm:$0xf]
  %v2242 = vld [vmem:[%s5 + $0x164] sm:$0xf]
  %v2243 = vld [vmem:[%s5 + $0x168] sm:$0xf]
  %v2244 = vld [vmem:[%s5 + $0x16c] sm:$0xf]
  %v2245 = vld [vmem:[%s5 + $0x170] sm:$0xf]
  %v2246 = vld [vmem:[%s5 + $0x174] sm:$0xf]
  %v2247 = vld [vmem:[%s5 + $0x178] sm:$0xf]
  %v2248 = vld [vmem:[%s5 + $0x17c] sm:$0xf]
  %v2249 = vld [vmem:[%s6] sm:$0x1]
  %v2251 = vlaneseq
  %v2252 = vshrl.u32 %v2251, 7
  %v2253 = vsub.s32 0, %v2252
  %v2254 = vrot.slane %v2249, %v2253
  %v2352 = vunpack.c.l.b16 %v2153
  %v2353 = vunpack.c.l.b16 %v2154
  %v2354 = vunpack.c.l.b16 %v2155
  %v2355 = vunpack.c.l.b16 %v2156
  %v2356 = vunpack.c.l.b16 %v2157
  %v2357 = vunpack.c.l.b16 %v2158
  %v2358 = vunpack.c.l.b16 %v2159
  %v2359 = vunpack.c.l.b16 %v2160
  %v2360 = vunpack.c.l.b16 %v2161
  %v2361 = vunpack.c.l.b16 %v2162
  %v2362 = vunpack.c.l.b16 %v2163
  %v2363 = vunpack.c.l.b16 %v2164
  %v2364 = vunpack.c.l.b16 %v2165
  %v2365 = vunpack.c.l.b16 %v2166
  %v2366 = vunpack.c.l.b16 %v2167
  %v2367 = vunpack.c.l.b16 %v2168
  %v2368 = vunpack.c.l.b16 %v2169
  %v2369 = vunpack.c.l.b16 %v2170
  %v2370 = vunpack.c.l.b16 %v2171
  %v2371 = vunpack.c.l.b16 %v2172
  %v2372 = vunpack.c.l.b16 %v2173
  %v2373 = vunpack.c.l.b16 %v2174
  %v2374 = vunpack.c.l.b16 %v2175
  %v2375 = vunpack.c.l.b16 %v2176
  %v2376 = vunpack.c.l.b16 %v2177
  %v2377 = vunpack.c.l.b16 %v2178
  %v2378 = vunpack.c.l.b16 %v2179
  %v2379 = vunpack.c.l.b16 %v2180
  %v2380 = vunpack.c.l.b16 %v2181
  %v2381 = vunpack.c.l.b16 %v2182
  %v2382 = vunpack.c.l.b16 %v2183
  %v2383 = vunpack.c.l.b16 %v2184
  %v2384 = vunpack.c.l.b16 %v2185
  %v2385 = vunpack.c.l.b16 %v2186
  %v2386 = vunpack.c.l.b16 %v2187
  %v2387 = vunpack.c.l.b16 %v2188
  %v2388 = vunpack.c.l.b16 %v2189
  %v2389 = vunpack.c.l.b16 %v2190
  %v2390 = vunpack.c.l.b16 %v2191
  %v2391 = vunpack.c.l.b16 %v2192
  %v2392 = vunpack.c.l.b16 %v2193
  %v2393 = vunpack.c.l.b16 %v2194
  %v2394 = vunpack.c.l.b16 %v2195
  %v2395 = vunpack.c.l.b16 %v2196
  %v2396 = vunpack.c.l.b16 %v2197
  %v2397 = vunpack.c.l.b16 %v2198
  %v2398 = vunpack.c.l.b16 %v2199
  %v2399 = vunpack.c.l.b16 %v2200
  %v2400 = vunpack.c.l.b16 %v2201
  %v2401 = vunpack.c.l.b16 %v2202
  %v2402 = vunpack.c.l.b16 %v2203
  %v2403 = vunpack.c.l.b16 %v2204
  %v2404 = vunpack.c.l.b16 %v2205
  %v2405 = vunpack.c.l.b16 %v2206
  %v2406 = vunpack.c.l.b16 %v2207
  %v2407 = vunpack.c.l.b16 %v2208
  %v2408 = vunpack.c.l.b16 %v2209
  %v2409 = vunpack.c.l.b16 %v2210
  %v2410 = vunpack.c.l.b16 %v2211
  %v2411 = vunpack.c.l.b16 %v2212
  %v2412 = vunpack.c.l.b16 %v2213
  %v2413 = vunpack.c.l.b16 %v2214
  %v2414 = vunpack.c.l.b16 %v2215
  %v2415 = vunpack.c.l.b16 %v2216
  %v2416 = vunpack.c.l.b16 %v2217
  %v2417 = vunpack.c.l.b16 %v2218
  %v2418 = vunpack.c.l.b16 %v2219
  %v2419 = vunpack.c.l.b16 %v2220
  %v2420 = vunpack.c.l.b16 %v2221
  %v2421 = vunpack.c.l.b16 %v2222
  %v2422 = vunpack.c.l.b16 %v2223
  %v2423 = vunpack.c.l.b16 %v2224
  %v2424 = vunpack.c.l.b16 %v2225
  %v2425 = vunpack.c.l.b16 %v2226
  %v2426 = vunpack.c.l.b16 %v2227
  %v2427 = vunpack.c.l.b16 %v2228
  %v2428 = vunpack.c.l.b16 %v2229
  %v2429 = vunpack.c.l.b16 %v2230
  %v2430 = vunpack.c.l.b16 %v2231
  %v2431 = vunpack.c.l.b16 %v2232
  %v2432 = vunpack.c.l.b16 %v2233
  %v2433 = vunpack.c.l.b16 %v2234
  %v2434 = vunpack.c.l.b16 %v2235
  %v2435 = vunpack.c.l.b16 %v2236
  %v2436 = vunpack.c.l.b16 %v2237
  %v2437 = vunpack.c.l.b16 %v2238
  %v2438 = vunpack.c.l.b16 %v2239
  %v2439 = vunpack.c.l.b16 %v2240
  %v2440 = vunpack.c.l.b16 %v2241
  %v2441 = vunpack.c.l.b16 %v2242
  %v2442 = vunpack.c.l.b16 %v2243
  %v2443 = vunpack.c.l.b16 %v2244
  %v2444 = vunpack.c.l.b16 %v2245
  %v2445 = vunpack.c.l.b16 %v2246
  %v2446 = vunpack.c.l.b16 %v2247
  %v2447 = vunpack.c.l.b16 %v2248
  %v2448 = vpack.c.b16 %v2353, %v2352
  %v2449 = vpack.c.b16 %v2355, %v2354
  %v2450 = vpack.c.b16 %v2357, %v2356
  %v2451 = vpack.c.b16 %v2359, %v2358
  %v2452 = vpack.c.b16 %v2361, %v2360
  %v2453 = vpack.c.b16 %v2363, %v2362
  %v2454 = vpack.c.b16 %v2365, %v2364
  %v2455 = vpack.c.b16 %v2367, %v2366
  %v2456 = vpack.c.b16 %v2369, %v2368
  %v2457 = vpack.c.b16 %v2371, %v2370
  %v2458 = vpack.c.b16 %v2373, %v2372
  %v2459 = vpack.c.b16 %v2375, %v2374
  %v2460 = vpack.c.b16 %v2377, %v2376
  %v2461 = vpack.c.b16 %v2379, %v2378
  %v2462 = vpack.c.b16 %v2381, %v2380
  %v2463 = vpack.c.b16 %v2383, %v2382
  %v2464 = vpack.c.b16 %v2385, %v2384
  %v2465 = vpack.c.b16 %v2387, %v2386
  %v2466 = vpack.c.b16 %v2389, %v2388
  %v2467 = vpack.c.b16 %v2391, %v2390
  %v2468 = vpack.c.b16 %v2393, %v2392
  %v2469 = vpack.c.b16 %v2395, %v2394
  %v2470 = vpack.c.b16 %v2397, %v2396
  %v2471 = vpack.c.b16 %v2399, %v2398
  %v2472 = vpack.c.b16 %v2401, %v2400
  %v2473 = vpack.c.b16 %v2403, %v2402
  %v2474 = vpack.c.b16 %v2405, %v2404
  %v2475 = vpack.c.b16 %v2407, %v2406
  %v2476 = vpack.c.b16 %v2409, %v2408
  %v2477 = vpack.c.b16 %v2411, %v2410
  %v2478 = vpack.c.b16 %v2413, %v2412
  %v2479 = vpack.c.b16 %v2415, %v2414
  %v2480 = vpack.c.b16 %v2417, %v2416
  %v2481 = vpack.c.b16 %v2419, %v2418
  %v2482 = vpack.c.b16 %v2421, %v2420
  %v2483 = vpack.c.b16 %v2423, %v2422
  %v2484 = vpack.c.b16 %v2425, %v2424
  %v2485 = vpack.c.b16 %v2427, %v2426
  %v2486 = vpack.c.b16 %v2429, %v2428
  %v2487 = vpack.c.b16 %v2431, %v2430
  %v2488 = vpack.c.b16 %v2433, %v2432
  %v2489 = vpack.c.b16 %v2435, %v2434
  %v2490 = vpack.c.b16 %v2437, %v2436
  %v2491 = vpack.c.b16 %v2439, %v2438
  %v2492 = vpack.c.b16 %v2441, %v2440
  %v2493 = vpack.c.b16 %v2443, %v2442
  %v2494 = vpack.c.b16 %v2445, %v2444
  %v2495 = vpack.c.b16 %v2447, %v2446
  %2544 = vmatprep.subr.bf16.mxu0 0
  %2545 = vmatpush1.bf16.msra.mxu0 %v2448
  %2546 = vmatprep.subr.bf16.mxu0 0
  %2547 = vmatpush1.bf16.msra.mxu0 %v2449
  %2548 = vmatprep.subr.bf16.mxu0 0
  %2549 = vmatpush1.bf16.msra.mxu0 %v2450
  %2550 = vmatprep.subr.bf16.mxu0 0
  %2551 = vmatpush1.bf16.msra.mxu0 %v2451
  %2552 = vmatprep.subr.bf16.mxu0 0
  %2553 = vmatpush1.bf16.msra.mxu0 %v2452
  %2554 = vmatprep.subr.bf16.mxu0 0
  %2555 = vmatpush1.bf16.msra.mxu0 %v2453
  %2556 = vmatprep.subr.bf16.mxu0 0
  %2557 = vmatpush1.bf16.msra.mxu0 %v2454
  %2558 = vmatprep.subr.bf16.mxu0 0
  %2559 = vmatpush1.bf16.msra.mxu0 %v2455
  %2560 = vmatprep.subr.bf16.mxu0 0
  %2561 = vmatpush1.bf16.msra.mxu0 %v2456
  %2562 = vmatprep.subr.bf16.mxu0 0
  %2563 = vmatpush1.bf16.msra.mxu0 %v2457
  %2564 = vmatprep.subr.bf16.mxu0 0
  %2565 = vmatpush1.bf16.msra.mxu0 %v2458
  %2566 = vmatprep.subr.bf16.mxu0 0
  %2567 = vmatpush1.bf16.msra.mxu0 %v2459
  %2568 = vmatprep.subr.bf16.mxu0 0
  %2569 = vmatpush1.bf16.msra.mxu0 %v2460
  %2570 = vmatprep.subr.bf16.mxu0 0
  %2571 = vmatpush1.bf16.msra.mxu0 %v2461
  %2572 = vmatprep.subr.bf16.mxu0 0
  %2573 = vmatpush1.bf16.msra.mxu0 %v2462
  %2574 = vmatprep.subr.bf16.mxu0 0
  %2575 = vmatpush1.bf16.msra.mxu0 %v2463
  %2576 = vmatprep.mubr.bf16.mxu0 %v2148
  %2577 = vmatmul.mubr.bf16.gmra.mrb[0].mxu0 %v2147
  %v2578 = vpop.f32.mrb[0].mxu0
  %v2579 = vadd.f32 %v2254, %v2578
  %v2580 = vpop.f32.mrb[0].mxu0
  %v2581 = vpop.f32.mrb[0].mxu0
  %v2582 = vpop.f32.mrb[0].mxu0
  %2583 = vdwg.mxu0
  %2584 = vmatprep.subr.bf16.mxu0 0
  %2585 = vmatpush1.bf16.msra.mxu0 %v2464
  %2586 = vmatprep.subr.bf16.mxu0 0
  %2587 = vmatpush1.bf16.msra.mxu0 %v2465
  %2588 = vmatprep.subr.bf16.mxu0 0
  %2589 = vmatpush1.bf16.msra.mxu0 %v2466
  %2590 = vmatprep.subr.bf16.mxu0 0
  %2591 = vmatpush1.bf16.msra.mxu0 %v2467
  %2592 = vmatprep.subr.bf16.mxu0 0
  %2593 = vmatpush1.bf16.msra.mxu0 %v2468
  %2594 = vmatprep.subr.bf16.mxu0 0
  %2595 = vmatpush1.bf16.msra.mxu0 %v2469
  %2596 = vmatprep.subr.bf16.mxu0 0
  %2597 = vmatpush1.bf16.msra.mxu0 %v2470
  %2598 = vmatprep.subr.bf16.mxu0 0
  %2599 = vmatpush1.bf16.msra.mxu0 %v2471
  %2600 = vmatprep.subr.bf16.mxu0 0
  %2601 = vmatpush1.bf16.msra.mxu0 %v2472
  %2602 = vmatprep.subr.bf16.mxu0 0
  %2603 = vmatpush1.bf16.msra.mxu0 %v2473
  %2604 = vmatprep.subr.bf16.mxu0 0
  %2605 = vmatpush1.bf16.msra.mxu0 %v2474
  %2606 = vmatprep.subr.bf16.mxu0 0
  %2607 = vmatpush1.bf16.msra.mxu0 %v2475
  %2608 = vmatprep.subr.bf16.mxu0 0
  %2609 = vmatpush1.bf16.msra.mxu0 %v2476
  %2610 = vmatprep.subr.bf16.mxu0 0
  %2611 = vmatpush1.bf16.msra.mxu0 %v2477
  %2612 = vmatprep.subr.bf16.mxu0 0
  %2613 = vmatpush1.bf16.msra.mxu0 %v2478
  %2614 = vmatprep.subr.bf16.mxu0 0
  %2615 = vmatpush1.bf16.msra.mxu0 %v2479
  %2616 = vmatprep.mubr.bf16.mxu0 %v2150
  %2617 = vmatmul.mubr.bf16.gmra.mrb[0].mxu0 %v2149
  %v2618 = vpop.f32.mrb[0].mxu0
  %v2619 = vadd.f32 %v2579, %v2618
  %v2620 = vpop.f32.mrb[0].mxu0
  %v2621 = vpop.f32.mrb[0].mxu0
  %v2622 = vpop.f32.mrb[0].mxu0
  %2623 = vdwg.mxu0
  %2624 = vmatprep.subr.bf16.mxu0 0
  %2625 = vmatpush1.bf16.msra.mxu0 %v2480
  %2626 = vmatprep.subr.bf16.mxu0 0
  %2627 = vmatpush1.bf16.msra.mxu0 %v2481
  %2628 = vmatprep.subr.bf16.mxu0 0
  %2629 = vmatpush1.bf16.msra.mxu0 %v2482
  %2630 = vmatprep.subr.bf16.mxu0 0
  %2631 = vmatpush1.bf16.msra.mxu0 %v2483
  %2632 = vmatprep.subr.bf16.mxu0 0
  %2633 = vmatpush1.bf16.msra.mxu0 %v2484
  %2634 = vmatprep.subr.bf16.mxu0 0
  %2635 = vmatpush1.bf16.msra.mxu0 %v2485
  %2636 = vmatprep.subr.bf16.mxu0 0
  %2637 = vmatpush1.bf16.msra.mxu0 %v2486
  %2638 = vmatprep.subr.bf16.mxu0 0
  %2639 = vmatpush1.bf16.msra.mxu0 %v2487
  %2640 = vmatprep.subr.bf16.mxu0 0
  %2641 = vmatpush1.bf16.msra.mxu0 %v2488
  %2642 = vmatprep.subr.bf16.mxu0 0
  %2643 = vmatpush1.bf16.msra.mxu0 %v2489
  %2644 = vmatprep.subr.bf16.mxu0 0
  %2645 = vmatpush1.bf16.msra.mxu0 %v2490
  %2646 = vmatprep.subr.bf16.mxu0 0
  %2647 = vmatpush1.bf16.msra.mxu0 %v2491
  %2648 = vmatprep.subr.bf16.mxu0 0
  %2649 = vmatpush1.bf16.msra.mxu0 %v2492
  %2650 = vmatprep.subr.bf16.mxu0 0
  %2651 = vmatpush1.bf16.msra.mxu0 %v2493
  %2652 = vmatprep.subr.bf16.mxu0 0
  %2653 = vmatpush1.bf16.msra.mxu0 %v2494
  %2654 = vmatprep.subr.bf16.mxu0 0
  %2655 = vmatpush1.bf16.msra.mxu0 %v2495
  %2656 = vmatprep.mubr.bf16.mxu0 %v2152
  %2657 = vmatmul.mubr.bf16.gmra.mrb[0].mxu0 %v2151
  %v2658 = vpop.f32.mrb[0].mxu0
  %v2659 = vadd.f32 %v2619, %v2658
  %v2660 = vpop.f32.mrb[0].mxu0
  %v2661 = vpop.f32.mrb[0].mxu0
  %v2662 = vpop.f32.mrb[0].mxu0
  %2663 = vdwg.mxu0
  %v2664 = vmax.f32 %v2659, 0.0
  %v2665 = vld [vmem:[%s7] sm:$0x1]
  %v2667 = vlaneseq
  %v2668 = vshrl.u32 %v2667, 7
  %v2669 = vsub.s32 0, %v2668
  %v2670 = vrot.slane %v2665, %v2669
  %v2672 = vmul.f32 %v2664, %v2670
  %vm2673 = vcmask 254976
  %v2674 = vsel %vm2673, %v2672, 0.0
  %2675 = vadd.xlane.f32.xlu0 %v2674
  %v2676 = vpop.xlane.xlu0 %2675
  %v2677 = vld [vmem:[#allocation2] sm:$0x1]
  %v2679 = vlaneseq
  %v2680 = vshrl.u32 %v2679, 7
  %v2681 = vsub.s32 0, %v2680
  %v2682 = vrot.slane %v2677, %v2681
  %v2684 = vadd.f32 %v2676, %v2682
  %vm2685 = vcmask 1024
  %2686 = vst.msk [vmem:[%s9] sm:$0x3] %vm2685, %v2684
  // Predicated region
  $region38: #{critic_forward.5} parent=0 // pred_check
    _
  $region39: #{critic_forward.5} parent=0 // pred_check_branch
    %2688 = sbr.rel (0) target = $region41
  $region40: #{critic_forward.5} parent=0 // pred_region
    _
  $region41: #{critic_forward.5} parent=0 // pred_fallthru
    _
  // Predicated region
  $region42: #{critic_forward.5} parent=0 // pred_check
    _
  $region43: #{critic_forward.5} parent=0 // pred_check_branch
    %2690 = sbr.rel (0) target = $region45
  $region44: #{critic_forward.5} parent=0 // pred_region
    _
  $region45: #{critic_forward.5} parent=0 // pred_fallthru
    _

</llo_original>
